<compile_context>
chip_gen: v5e
topology: v5e:2x2
jax: 0.10.0
libtpu: 0.0.40
codegen_flags: <defaults>
</compile_context>

<pallas_src>
import jax
import jax.numpy as jnp
from jax.experimental import pallas as pl
from jax.experimental.pallas import tpu as pltpu

IN_F, H1, H2, OUT_F = 6, 2048, 512, 5


def mlp_kernel(x_ref, w1_ref, b1_ref, w2q_ref, s2_ref, b2_ref, w3_ref, b3_ref,
               o_ref):
    # Layer 1: Linear(6, 2048) + ReLU  (bf16 operands, f32 accumulation)
    x = x_ref[...].astype(jnp.bfloat16)          # no-op if x already bf16
    h1 = jnp.dot(x, w1_ref[...], preferred_element_type=jnp.float32)
    h1 = jnp.maximum(h1 + b1_ref[...], 0.0)

    # Layer 2: Linear(2048, 512) + ReLU, int8 weights dequantized on the fly.
    # int8 values are exactly representable in bf16; the per-output-channel
    # scale is applied to the f32 accumulator (cheaper than scaling w2 itself).
    w2 = w2q_ref[...].astype(jnp.bfloat16)
    h2 = jnp.dot(h1.astype(jnp.bfloat16), w2,
                 preferred_element_type=jnp.float32)
    h2 = jnp.maximum(h2 * s2_ref[...] + b2_ref[...], 0.0)

    # Dropout(0.1): identity at inference.

    # Layer 3: Linear(512, 5)
    o = jnp.dot(h2.astype(jnp.bfloat16), w3_ref[...],
                preferred_element_type=jnp.float32)
    o_ref[...] = o + b3_ref[...]


def modele_sans_description(x, params, tb=1024):
    """x: [B, 6] (f32 or bf16).  params: (w1 bf16 [6,2048], b1 f32 [1,2048],
    w2q int8 [2048,512], s2 f32 [1,512], b2 f32 [1,512],
    w3 bf16 [512,5], b3 f32 [1,5])."""
    w1, b1, w2q, s2, b2, w3, b3 = params
    B = x.shape[0]

    # Batch tile: full batch if it fits, else tb (multiple of 16 so bf16 x
    # blocks tile cleanly).  Ragged final block is handled by Pallas (masked
    # output writeback) -- no host-side pad / slice round-trip.
    TB = B if B <= tb else tb
    grid = (pl.cdiv(B, TB),)

    const = lambda shape: pl.BlockSpec(shape, lambda b: (0, 0))

    param_bytes = sum(int(p.size) * p.dtype.itemsize
                      for p in (w1, b1, w2q, s2, b2, w3, b3))
    cost = pl.CostEstimate(
        flops=2 * B * (IN_F * H1 + H1 * H2 + H2 * OUT_F),
        transcendentals=0,
        bytes_accessed=int(x.size) * x.dtype.itemsize
        + B * OUT_F * 4 + param_bytes,
    )

    out = pl.pallas_call(
        mlp_kernel,
        out_shape=jax.ShapeDtypeStruct((B, OUT_F), jnp.float32),
        grid=grid,
        in_specs=[
            pl.BlockSpec((TB, IN_F), lambda b: (b, 0)),   # x: tiled over batch
            const((IN_F, H1)),                            # w1 (resident)
            const((1, H1)),                               # b1
            const((H1, H2)),                              # w2 int8
            const((1, H2)),                               # s2 per-channel scale
            const((1, H2)),                               # b2
            const((H2, OUT_F)),                           # w3
            const((1, OUT_F)),                            # b3
        ],
        out_specs=pl.BlockSpec((TB, OUT_F), lambda b: (b, 0)),
        compiler_params=pltpu.CompilerParams(
            dimension_semantics=("parallel",)
        ),
        cost_estimate=cost,
    )(x, w1, b1, w2q, s2, b2, w3, b3)

    return out


def init_params(key):
    """Kaiming-normal (fan_in, gain=sqrt(2)) weights, zero biases — matches
    nn.init.kaiming_normal_ on PyTorch's (out, in) weight, stored here as
    (in, out).  w1/w3 -> bf16; w2 -> int8 with per-output-channel f32 scale."""
    k1, k2, k3 = jax.random.split(key, 3)

    def kaiming(k, fan_in, fan_out):
        std = (2.0 / fan_in) ** 0.5
        return jax.random.normal(k, (fan_in, fan_out), dtype=jnp.float32) * std

    w1 = kaiming(k1, IN_F, H1).astype(jnp.bfloat16)
    b1 = jnp.zeros((1, H1), jnp.float32)

    w2_f32 = kaiming(k2, H1, H2)
    s2 = jnp.maximum(jnp.max(jnp.abs(w2_f32), axis=0, keepdims=True),
                     1e-8) / 127.0                       # [1, H2] f32
    w2q = jnp.clip(jnp.round(w2_f32 / s2), -127, 127).astype(jnp.int8)

    b2 = jnp.zeros((1, H2), jnp.float32)
    w3 = kaiming(k3, H2, OUT_F).astype(jnp.bfloat16)
    b3 = jnp.zeros((1, OUT_F), jnp.float32)
    return (w1, b1, w2q, s2, b2, w3, b3)


def _reference(x_bf16, params):
    """Pure-JAX reference with the same bf16/int8-quantized weights."""
    w1, b1, w2q, s2, b2, w3, b3 = params
    h1 = jnp.maximum(
        jnp.dot(x_bf16, w1, preferred_element_type=jnp.float32) + b1, 0.0)
    h2 = jnp.dot(h1.astype(jnp.bfloat16), w2q.astype(jnp.bfloat16),
                 preferred_element_type=jnp.float32) * s2 + b2
    h2 = jnp.maximum(h2, 0.0)
    return jnp.dot(h2.astype(jnp.bfloat16), w3,
                   preferred_element_type=jnp.float32) + b3


if __name__ == "__main__":
    key = jax.random.PRNGKey(0)
    kx, kp, kx2 = jax.random.split(key, 3)
    params = init_params(kp)

    # --- small batch: single full-batch block -------------------------------
    B = 8
    x = jax.random.normal(kx, (B, IN_F), dtype=jnp.float32).astype(jnp.bfloat16)
    out = jax.block_until_ready(modele_sans_description(x, params))
    ref = _reference(x, params)
    assert out.shape == (B, OUT_F)
    assert jnp.allclose(out, ref, atol=1e-2, rtol=1e-2), (
        float(jnp.max(jnp.abs(out - ref))))

    # --- multi-tile + ragged final block (exercises the no-pad path) --------
    B2 = 40
    x2 = jax.random.normal(kx2, (B2, IN_F), dtype=jnp.float32).astype(jnp.bfloat16)
    out2 = jax.block_until_ready(modele_sans_description(x2, params, tb=16))
    ref2 = _reference(x2, params)
    assert out2.shape == (B2, OUT_F)
    assert jnp.allclose(out2, ref2, atol=1e-2, rtol=1e-2), (
        float(jnp.max(jnp.abs(out2 - ref2))))

    print("KERNEL_OK")
</pallas_src>

<mosaic_0001>
module attributes {stable_mosaic.version = 11 : i64} {
  func.func @mlp_kernel(%arg0: i32, %arg1: memref<8x6xbf16, #tpu.memory_space<vmem>>, %arg2: memref<6x2048xbf16, #tpu.memory_space<vmem>>, %arg3: memref<1x2048xf32, #tpu.memory_space<vmem>>, %arg4: memref<2048x512xi8, #tpu.memory_space<vmem>>, %arg5: memref<1x512xf32, #tpu.memory_space<vmem>>, %arg6: memref<1x512xf32, #tpu.memory_space<vmem>>, %arg7: memref<512x5xbf16, #tpu.memory_space<vmem>>, %arg8: memref<1x5xf32, #tpu.memory_space<vmem>>, %arg9: memref<8x5xf32, #tpu.memory_space<vmem>>) attributes {dimension_semantics = [#tpu.dimension_semantics<parallel>], iteration_bounds = array<i64: 1>, scalar_prefetch = 0 : i64, scratch_operands = 0 : i64, tpu.core_type = #tpu.core_type<tc>, window_params = [{transform_indices = @transform_0, window_bounds = array<i64: 8, 6>}, {pipeline_mode = #tpu.pipeline_mode<synchronous>, transform_indices = @transform_1, window_bounds = array<i64: 6, 2048>}, {pipeline_mode = #tpu.pipeline_mode<synchronous>, transform_indices = @transform_2, window_bounds = array<i64: 1, 2048>}, {pipeline_mode = #tpu.pipeline_mode<synchronous>, transform_indices = @transform_3, window_bounds = array<i64: 2048, 512>}, {pipeline_mode = #tpu.pipeline_mode<synchronous>, transform_indices = @transform_4, window_bounds = array<i64: 1, 512>}, {pipeline_mode = #tpu.pipeline_mode<synchronous>, transform_indices = @transform_5, window_bounds = array<i64: 1, 512>}, {pipeline_mode = #tpu.pipeline_mode<synchronous>, transform_indices = @transform_6, window_bounds = array<i64: 512, 5>}, {pipeline_mode = #tpu.pipeline_mode<synchronous>, transform_indices = @transform_7, window_bounds = array<i64: 1, 5>}, {transform_indices = @transform_8, window_bounds = array<i64: 8, 5>}]} {
    %c0 = arith.constant 0 : index
    %c0_0 = arith.constant 0 : index
    %0 = vector.load %arg1[%c0, %c0_0] : memref<8x6xbf16, #tpu.memory_space<vmem>>, vector<8x6xbf16>
    %c0_1 = arith.constant 0 : index
    %c0_2 = arith.constant 0 : index
    %1 = vector.load %arg2[%c0_1, %c0_2] : memref<6x2048xbf16, #tpu.memory_space<vmem>>, vector<6x2048xbf16>
    %cst = arith.constant dense<0.000000e+00> : vector<8x2048xf32>
    %2 = tpu.matmul %0, %1, %cst {dimension_numbers = #tpu.dot_dimension_numbers<[1], [0], [0], [1], [0, 0, 1, 1], [], []>} : vector<8x6xbf16>, vector<6x2048xbf16>, vector<8x2048xf32> -> vector<8x2048xf32>
    %c0_3 = arith.constant 0 : index
    %c0_4 = arith.constant 0 : index
    %3 = vector.load %arg3[%c0_3, %c0_4] : memref<1x2048xf32, #tpu.memory_space<vmem>>, vector<1x2048xf32>
    %4 = vector.broadcast %3 : vector<1x2048xf32> to vector<8x2048xf32>
    %5 = arith.addf %2, %4 : vector<8x2048xf32>
    %cst_5 = arith.constant 0.000000e+00 : f32
    %6 = vector.broadcast %cst_5 : f32 to vector<8x2048xf32>
    %7 = arith.maximumf %5, %6 : vector<8x2048xf32>
    %c0_6 = arith.constant 0 : index
    %c0_7 = arith.constant 0 : index
    %8 = vector.load %arg4[%c0_6, %c0_7] : memref<2048x512xi8, #tpu.memory_space<vmem>>, vector<2048x512xi8>
    %9 = arith.sitofp %8 : vector<2048x512xi8> to vector<2048x512xbf16>
    %10 = arith.truncf %7 : vector<8x2048xf32> to vector<8x2048xbf16>
    %cst_8 = arith.constant dense<0.000000e+00> : vector<8x512xf32>
    %11 = tpu.matmul %10, %9, %cst_8 {dimension_numbers = #tpu.dot_dimension_numbers<[1], [0], [0], [1], [0, 0, 1, 1], [], []>} : vector<8x2048xbf16>, vector<2048x512xbf16>, vector<8x512xf32> -> vector<8x512xf32>
    %c0_9 = arith.constant 0 : index
    %c0_10 = arith.constant 0 : index
    %12 = vector.load %arg5[%c0_9, %c0_10] : memref<1x512xf32, #tpu.memory_space<vmem>>, vector<1x512xf32>
    %13 = vector.broadcast %12 : vector<1x512xf32> to vector<8x512xf32>
    %14 = arith.mulf %11, %13 : vector<8x512xf32>
    %c0_11 = arith.constant 0 : index
    %c0_12 = arith.constant 0 : index
    %15 = vector.load %arg6[%c0_11, %c0_12] : memref<1x512xf32, #tpu.memory_space<vmem>>, vector<1x512xf32>
    %16 = vector.broadcast %15 : vector<1x512xf32> to vector<8x512xf32>
    %17 = arith.addf %14, %16 : vector<8x512xf32>
    %cst_13 = arith.constant 0.000000e+00 : f32
    %18 = vector.broadcast %cst_13 : f32 to vector<8x512xf32>
    %19 = arith.maximumf %17, %18 : vector<8x512xf32>
    %20 = arith.truncf %19 : vector<8x512xf32> to vector<8x512xbf16>
    %c0_14 = arith.constant 0 : index
    %c0_15 = arith.constant 0 : index
    %21 = vector.load %arg7[%c0_14, %c0_15] : memref<512x5xbf16, #tpu.memory_space<vmem>>, vector<512x5xbf16>
    %cst_16 = arith.constant dense<0.000000e+00> : vector<8x5xf32>
    %22 = tpu.matmul %20, %21, %cst_16 {dimension_numbers = #tpu.dot_dimension_numbers<[1], [0], [0], [1], [0, 0, 1, 1], [], []>} : vector<8x512xbf16>, vector<512x5xbf16>, vector<8x5xf32> -> vector<8x5xf32>
    %c0_17 = arith.constant 0 : index
    %c0_18 = arith.constant 0 : index
    %23 = vector.load %arg8[%c0_17, %c0_18] : memref<1x5xf32, #tpu.memory_space<vmem>>, vector<1x5xf32>
    %24 = vector.broadcast %23 : vector<1x5xf32> to vector<8x5xf32>
    %25 = arith.addf %22, %24 : vector<8x5xf32>
    %c0_19 = arith.constant 0 : index
    %c0_20 = arith.constant 0 : index
    %26 = vector.load %arg9[%c0_19, %c0_20] : memref<8x5xf32, #tpu.memory_space<vmem>>, vector<8x5xf32>
    tpu.vector_store %arg9[%c0_19, %c0_20], %25 {strides = array<i32>} : memref<8x5xf32, #tpu.memory_space<vmem>>, vector<8x5xf32>,
    return
  }
  func.func @transform_0(%arg0: i32) -> (i32, i32) {
    %c0_i32 = arith.constant 0 : i32
    %c0_i32_0 = arith.constant 0 : i32
    return %arg0, %c0_i32 : i32, i32
  }
  func.func @transform_1(%arg0: i32) -> (i32, i32) {
    %c0_i32 = arith.constant 0 : i32
    %c0_i32_0 = arith.constant 0 : i32
    %c0_i32_1 = arith.constant 0 : i32
    return %c0_i32, %c0_i32_0 : i32, i32
  }
  func.func @transform_2(%arg0: i32) -> (i32, i32) {
    %c0_i32 = arith.constant 0 : i32
    %c0_i32_0 = arith.constant 0 : i32
    %c0_i32_1 = arith.constant 0 : i32
    return %c0_i32, %c0_i32_0 : i32, i32
  }
  func.func @transform_3(%arg0: i32) -> (i32, i32) {
    %c0_i32 = arith.constant 0 : i32
    %c0_i32_0 = arith.constant 0 : i32
    %c0_i32_1 = arith.constant 0 : i32
    return %c0_i32, %c0_i32_0 : i32, i32
  }
  func.func @transform_4(%arg0: i32) -> (i32, i32) {
    %c0_i32 = arith.constant 0 : i32
    %c0_i32_0 = arith.constant 0 : i32
    %c0_i32_1 = arith.constant 0 : i32
    return %c0_i32, %c0_i32_0 : i32, i32
  }
  func.func @transform_5(%arg0: i32) -> (i32, i32) {
    %c0_i32 = arith.constant 0 : i32
    %c0_i32_0 = arith.constant 0 : i32
    %c0_i32_1 = arith.constant 0 : i32
    return %c0_i32, %c0_i32_0 : i32, i32
  }
  func.func @transform_6(%arg0: i32) -> (i32, i32) {
    %c0_i32 = arith.constant 0 : i32
    %c0_i32_0 = arith.constant 0 : i32
    %c0_i32_1 = arith.constant 0 : i32
    return %c0_i32, %c0_i32_0 : i32, i32
  }
  func.func @transform_7(%arg0: i32) -> (i32, i32) {
    %c0_i32 = arith.constant 0 : i32
    %c0_i32_0 = arith.constant 0 : i32
    %c0_i32_1 = arith.constant 0 : i32
    return %c0_i32, %c0_i32_0 : i32, i32
  }
  func.func @transform_8(%arg0: i32) -> (i32, i32) {
    %c0_i32 = arith.constant 0 : i32
    %c0_i32_0 = arith.constant 0 : i32
    return %arg0, %c0_i32 : i32, i32
  }
}

</mosaic_0001>

<llo_original>
// kernel: tpu_custom_call.1
$region0: #{tpu_custom_call.1}
  #allocation0 [shape = 'u32[]', space=smem, size = 0x4, offset = 0x4, fixed_abs, tag = 'smem constant byte address 0x4 - core index']
  #allocation1 [shape = 'u32[72,128]{1,0:T(1,128)}', space=vmem, size = 0x9000, scoped, tag = 'internal scratch']
  %s0 = inlined_call_operand.vmem [shape: bf16[8,6], index: 0, kind: input, shape index: {}]
  %s1 = inlined_call_operand.vmem [shape: bf16[6,2048], index: 1, kind: input, shape index: {}]
  %s2 = inlined_call_operand.vmem [shape: f32[1,2048], index: 2, kind: input, shape index: {}]
  %s3 = inlined_call_operand.hbm [shape: s8[2048,512], index: 3, kind: input, shape index: {}]
  %s4 = inlined_call_operand.vmem [shape: f32[1,512], index: 4, kind: input, shape index: {}]
  %s5 = inlined_call_operand.vmem [shape: f32[1,512], index: 5, kind: input, shape index: {}]
  %s6 = inlined_call_operand.vmem [shape: bf16[512,5], index: 6, kind: input, shape index: {}]
  %s7 = inlined_call_operand.vmem [shape: f32[1,5], index: 7, kind: input, shape index: {}]
  %s8 = inlined_call_operand.hbm [shape: f32[8,5], index: 8, kind: output, shape index: {}]
  %s9 = sld [smem:[#allocation0]]
  $region46: #{tpu_custom_call.1} parent=0
    _
  %s11 = ssub.s32 1, %s9
  %s12 = scalar_select 0, %s11, %s9
  $region1: #{tpu_custom_call.1} parent=0
    #allocation2 [shape = 'u8[1048576]{0}', space=vmem, size = 0x100000, scoped, tag = 'input window, operand 3, single buffered']
    #allocation3 [shape = 's32[1]{0}', space=sflag, size = 0x4, scoped, tag = 'scoped memory for tpu_custom_call.1']
    #allocation4 [shape = 's32[1]{0}', space=sflag, size = 0x4, scoped, tag = 'scoped memory for tpu_custom_call.1']
    #allocation5 [shape = 'u8[4096]{0}', space=vmem, size = 0x1000, scoped, tag = 'output window, operand 0, single buffered']
    %13 = vsyncpa [#allocation3], 0
    %14 = vsyncpa [#allocation4], 0
    // Predicated region
    $region2: #{tpu_custom_call.1} parent=1 // pred_check
      _
    $region3: #{tpu_custom_call.1} parent=1 // pred_check_branch
      %16 = sbr.rel (0) target = $region5
    $region4: #{tpu_custom_call.1} parent=1 // pred_region
      _
    $region5: #{tpu_custom_call.1} parent=1 // pred_fallthru
      _
    // Predicated region
    $region6: #{tpu_custom_call.1} parent=1 // pred_check
      _
    $region7: #{tpu_custom_call.1} parent=1 // pred_check_branch
      %18 = sbr.rel (0) target = $region9
    $region8: #{tpu_custom_call.1} parent=1 // pred_region
      _
    $region9: #{tpu_custom_call.1} parent=1 // pred_fallthru
      _
    // Predicated region
    $region10: #{tpu_custom_call.1} parent=1 // pred_check
      _
    $region11: #{tpu_custom_call.1} parent=1 // pred_check_branch
      %20 = sbr.rel (0) target = $region13
    $region12: #{tpu_custom_call.1} parent=1 // pred_region
      _
    $region13: #{tpu_custom_call.1} parent=1 // pred_fallthru
      _
    // Predicated region
    $region14: #{tpu_custom_call.1} parent=1 // pred_check
      _
    $region15: #{tpu_custom_call.1} parent=1 // pred_check_branch
      %22 = sbr.rel (0) target = $region17
    $region16: #{tpu_custom_call.1} parent=1 // pred_region
      %24 = vsyncadd [#allocation3], 0
      %s25 = sshll.u32 %s3, 4
      %s26 = int_to_ptr.hbm [resolvable:$true] %s25
      %s27 = sshll.u32 [#allocation2], 4
      %s28 = int_to_ptr.vmem [resolvable:$true] %s27
      %33 = dma.hbm_to_vmem [thread:$0]  %s26, 32768, %s28, [#allocation3], 512, 512, 32
    $region17: #{tpu_custom_call.1} parent=1 // pred_fallthru
      _
    // Predicated region
    $region18: #{tpu_custom_call.1} parent=1 // pred_check
      _
    $region19: #{tpu_custom_call.1} parent=1 // pred_check_branch
      %35 = sbr.rel (0) target = $region21
    $region20: #{tpu_custom_call.1} parent=1 // pred_region
      _
    $region21: #{tpu_custom_call.1} parent=1 // pred_fallthru
      _
    // Predicated region
    $region22: #{tpu_custom_call.1} parent=1 // pred_check
      _
    $region23: #{tpu_custom_call.1} parent=1 // pred_check_branch
      %37 = sbr.rel (0) target = $region25
    $region24: #{tpu_custom_call.1} parent=1 // pred_region
      _
    $region25: #{tpu_custom_call.1} parent=1 // pred_fallthru
      _
    // Predicated region
    $region26: #{tpu_custom_call.1} parent=1 // pred_check
      _
    $region27: #{tpu_custom_call.1} parent=1 // pred_check_branch
      %39 = sbr.rel (0) target = $region29
    $region28: #{tpu_custom_call.1} parent=1 // pred_region
      _
    $region29: #{tpu_custom_call.1} parent=1 // pred_fallthru
      _
    // Predicated region
    $region30: #{tpu_custom_call.1} parent=1 // pred_check
      _
    $region31: #{tpu_custom_call.1} parent=1 // pred_check_branch
      %41 = sbr.rel (0) target = $region33
    $region32: #{tpu_custom_call.1} parent=1 // pred_region
      _
    $region33: #{tpu_custom_call.1} parent=1 // pred_fallthru
      _
    // Predicated region
    $region34: #{tpu_custom_call.1} parent=1 // pred_check
      _
    $region35: #{tpu_custom_call.1} parent=1 // pred_check_branch
      %43 = sbr.rel (0) target = $region37
    $region36: #{tpu_custom_call.1} parent=1 // pred_region
      %45 = dma.done [#allocation3], 32768
    $region37: #{tpu_custom_call.1} parent=1 // pred_fallthru
      _
    %v47 = vld [vmem:[%s0] sm:$0xf]
    %v48 = vld [vmem:[%s1] sm:$0x77]
    %v49 = vld [vmem:[%s1 + $0x8] sm:$0x77]
    %v50 = vld [vmem:[%s1 + $0x10] sm:$0x77]
    %v51 = vld [vmem:[%s1 + $0x18] sm:$0x77]
    %v52 = vld [vmem:[%s1 + $0x20] sm:$0x77]
    %v53 = vld [vmem:[%s1 + $0x28] sm:$0x77]
    %v54 = vld [vmem:[%s1 + $0x30] sm:$0x77]
    %v55 = vld [vmem:[%s1 + $0x38] sm:$0x77]
    %v56 = vld [vmem:[%s2] sm:$0xff]
    %v57 = vld [vmem:[%s2 + $0x8] sm:$0xff]
    %v60 = vperm.slane %v56, 0
    %v61 = vperm.slane %v56, 1
    %v62 = vperm.slane %v56, 2
    %v63 = vperm.slane %v56, 3
    %v64 = vperm.slane %v56, 4
    %v65 = vperm.slane %v56, 5
    %v66 = vperm.slane %v56, 6
    %v67 = vperm.slane %v56, 7
    %v68 = vperm.slane %v57, 0
    %v69 = vperm.slane %v57, 1
    %v70 = vperm.slane %v57, 2
    %v71 = vperm.slane %v57, 3
    %v72 = vperm.slane %v57, 4
    %v73 = vperm.slane %v57, 5
    %v74 = vperm.slane %v57, 6
    %v75 = vperm.slane %v57, 7
    %v100 = vunpack.c.l.b16 %v48
    %v101 = vunpack.c.h.b16 %v48
    %v102 = vunpack.c.l.b16 %v49
    %v103 = vunpack.c.h.b16 %v49
    %v104 = vunpack.c.l.b16 %v50
    %v105 = vunpack.c.h.b16 %v50
    %v106 = vunpack.c.l.b16 %v51
    %v107 = vunpack.c.h.b16 %v51
    %v108 = vunpack.c.l.b16 %v52
    %v109 = vunpack.c.h.b16 %v52
    %v110 = vunpack.c.l.b16 %v53
    %v111 = vunpack.c.h.b16 %v53
    %v112 = vunpack.c.l.b16 %v54
    %v113 = vunpack.c.h.b16 %v54
    %v114 = vunpack.c.l.b16 %v55
    %v115 = vunpack.c.h.b16 %v55
    %v116 = vpack.c.b16 %v100, %v100
    %v117 = vpack.c.b16 %v101, %v101
    %v118 = vpack.c.b16 %v102, %v102
    %v119 = vpack.c.b16 %v103, %v103
    %v120 = vpack.c.b16 %v104, %v104
    %v121 = vpack.c.b16 %v105, %v105
    %v122 = vpack.c.b16 %v106, %v106
    %v123 = vpack.c.b16 %v107, %v107
    %v124 = vpack.c.b16 %v108, %v108
    %v125 = vpack.c.b16 %v109, %v109
    %v126 = vpack.c.b16 %v110, %v110
    %v127 = vpack.c.b16 %v111, %v111
    %v128 = vpack.c.b16 %v112, %v112
    %v129 = vpack.c.b16 %v113, %v113
    %v130 = vpack.c.b16 %v114, %v114
    %v131 = vpack.c.b16 %v115, %v115
    %vm132 = vcmask 48128
    %v134 = vsel %vm132, %v47, 0
    %vm136 = vcmask 1042432
    %v138 = vsel %vm136, %v116, 0
    %v141 = vsel %vm136, %v117, 0
    %v144 = vsel %vm136, %v118, 0
    %v147 = vsel %vm136, %v119, 0
    %v150 = vsel %vm136, %v120, 0
    %v153 = vsel %vm136, %v121, 0
    %v156 = vsel %vm136, %v122, 0
    %v159 = vsel %vm136, %v123, 0
    %v162 = vsel %vm136, %v124, 0
    %v165 = vsel %vm136, %v125, 0
    %v168 = vsel %vm136, %v126, 0
    %v171 = vsel %vm136, %v127, 0
    %v174 = vsel %vm136, %v128, 0
    %v177 = vsel %vm136, %v129, 0
    %v180 = vsel %vm136, %v130, 0
    %v183 = vsel %vm136, %v131, 0
    %185 = vmatpush.bf16.msra.mxu0 0
    %186 = vmatpush.bf16.msra.mxu0 0
    %187 = vmatpush.bf16.msra.mxu0 0
    %188 = vmatpush.bf16.msra.mxu0 0
    %189 = vmatpush.bf16.msra.mxu0 0
    %190 = vmatpush.bf16.msra.mxu0 0
    %191 = vmatpush.bf16.msra.mxu0 0
    %192 = vmatpush.bf16.msra.mxu0 %v138
    %193 = vmatmul.bf16.gmra.mxu0 %v134
    %v194 = vpop.f32.mrf.mxu0
    %v195 = vadd.f32 %v60, %v194
    %v196 = vpop.f32.mrf.mxu0
    %197 = vdwg.mxu0
    %198 = vmatpush.bf16.msra.mxu0 0
    %199 = vmatpush.bf16.msra.mxu0 0
    %200 = vmatpush.bf16.msra.mxu0 0
    %201 = vmatpush.bf16.msra.mxu0 0
    %202 = vmatpush.bf16.msra.mxu0 0
    %203 = vmatpush.bf16.msra.mxu0 0
    %204 = vmatpush.bf16.msra.mxu0 0
    %205 = vmatpush.bf16.msra.mxu0 %v141
    %206 = vmatmul.bf16.gmra.mxu0 %v134
    %v207 = vpop.f32.mrf.mxu0
    %v208 = vadd.f32 %v61, %v207
    %v209 = vpop.f32.mrf.mxu0
    %210 = vdwg.mxu0
    %211 = vmatpush.bf16.msra.mxu0 0
    %212 = vmatpush.bf16.msra.mxu0 0
    %213 = vmatpush.bf16.msra.mxu0 0
    %214 = vmatpush.bf16.msra.mxu0 0
    %215 = vmatpush.bf16.msra.mxu0 0
    %216 = vmatpush.bf16.msra.mxu0 0
    %217 = vmatpush.bf16.msra.mxu0 0
    %218 = vmatpush.bf16.msra.mxu0 %v144
    %219 = vmatmul.bf16.gmra.mxu0 %v134
    %v220 = vpop.f32.mrf.mxu0
    %v221 = vadd.f32 %v62, %v220
    %v222 = vpop.f32.mrf.mxu0
    %223 = vdwg.mxu0
    %224 = vmatpush.bf16.msra.mxu0 0
    %225 = vmatpush.bf16.msra.mxu0 0
    %226 = vmatpush.bf16.msra.mxu0 0
    %227 = vmatpush.bf16.msra.mxu0 0
    %228 = vmatpush.bf16.msra.mxu0 0
    %229 = vmatpush.bf16.msra.mxu0 0
    %230 = vmatpush.bf16.msra.mxu0 0
    %231 = vmatpush.bf16.msra.mxu0 %v147
    %232 = vmatmul.bf16.gmra.mxu0 %v134
    %v233 = vpop.f32.mrf.mxu0
    %v234 = vadd.f32 %v63, %v233
    %v235 = vpop.f32.mrf.mxu0
    %236 = vdwg.mxu0
    %237 = vmatpush.bf16.msra.mxu0 0
    %238 = vmatpush.bf16.msra.mxu0 0
    %239 = vmatpush.bf16.msra.mxu0 0
    %240 = vmatpush.bf16.msra.mxu0 0
    %241 = vmatpush.bf16.msra.mxu0 0
    %242 = vmatpush.bf16.msra.mxu0 0
    %243 = vmatpush.bf16.msra.mxu0 0
    %244 = vmatpush.bf16.msra.mxu0 %v150
    %245 = vmatmul.bf16.gmra.mxu0 %v134
    %v246 = vpop.f32.mrf.mxu0
    %v247 = vadd.f32 %v64, %v246
    %v248 = vpop.f32.mrf.mxu0
    %249 = vdwg.mxu0
    %250 = vmatpush.bf16.msra.mxu0 0
    %251 = vmatpush.bf16.msra.mxu0 0
    %252 = vmatpush.bf16.msra.mxu0 0
    %253 = vmatpush.bf16.msra.mxu0 0
    %254 = vmatpush.bf16.msra.mxu0 0
    %255 = vmatpush.bf16.msra.mxu0 0
    %256 = vmatpush.bf16.msra.mxu0 0
    %257 = vmatpush.bf16.msra.mxu0 %v153
    %258 = vmatmul.bf16.gmra.mxu0 %v134
    %v259 = vpop.f32.mrf.mxu0
    %v260 = vadd.f32 %v65, %v259
    %v261 = vpop.f32.mrf.mxu0
    %262 = vdwg.mxu0
    %263 = vmatpush.bf16.msra.mxu0 0
    %264 = vmatpush.bf16.msra.mxu0 0
    %265 = vmatpush.bf16.msra.mxu0 0
    %266 = vmatpush.bf16.msra.mxu0 0
    %267 = vmatpush.bf16.msra.mxu0 0
    %268 = vmatpush.bf16.msra.mxu0 0
    %269 = vmatpush.bf16.msra.mxu0 0
    %270 = vmatpush.bf16.msra.mxu0 %v156
    %271 = vmatmul.bf16.gmra.mxu0 %v134
    %v272 = vpop.f32.mrf.mxu0
    %v273 = vadd.f32 %v66, %v272
    %v274 = vpop.f32.mrf.mxu0
    %275 = vdwg.mxu0
    %276 = vmatpush.bf16.msra.mxu0 0
    %277 = vmatpush.bf16.msra.mxu0 0
    %278 = vmatpush.bf16.msra.mxu0 0
    %279 = vmatpush.bf16.msra.mxu0 0
    %280 = vmatpush.bf16.msra.mxu0 0
    %281 = vmatpush.bf16.msra.mxu0 0
    %282 = vmatpush.bf16.msra.mxu0 0
    %283 = vmatpush.bf16.msra.mxu0 %v159
    %284 = vmatmul.bf16.gmra.mxu0 %v134
    %v285 = vpop.f32.mrf.mxu0
    %v286 = vadd.f32 %v67, %v285
    %v287 = vpop.f32.mrf.mxu0
    %288 = vdwg.mxu0
    %289 = vmatpush.bf16.msra.mxu0 0
    %290 = vmatpush.bf16.msra.mxu0 0
    %291 = vmatpush.bf16.msra.mxu0 0
    %292 = vmatpush.bf16.msra.mxu0 0
    %293 = vmatpush.bf16.msra.mxu0 0
    %294 = vmatpush.bf16.msra.mxu0 0
    %295 = vmatpush.bf16.msra.mxu0 0
    %296 = vmatpush.bf16.msra.mxu0 %v162
    %297 = vmatmul.bf16.gmra.mxu0 %v134
    %v298 = vpop.f32.mrf.mxu0
    %v299 = vadd.f32 %v68, %v298
    %v300 = vpop.f32.mrf.mxu0
    %301 = vdwg.mxu0
    %302 = vmatpush.bf16.msra.mxu0 0
    %303 = vmatpush.bf16.msra.mxu0 0
    %304 = vmatpush.bf16.msra.mxu0 0
    %305 = vmatpush.bf16.msra.mxu0 0
    %306 = vmatpush.bf16.msra.mxu0 0
    %307 = vmatpush.bf16.msra.mxu0 0
    %308 = vmatpush.bf16.msra.mxu0 0
    %309 = vmatpush.bf16.msra.mxu0 %v165
    %310 = vmatmul.bf16.gmra.mxu0 %v134
    %v311 = vpop.f32.mrf.mxu0
    %v312 = vadd.f32 %v69, %v311
    %v313 = vpop.f32.mrf.mxu0
    %314 = vdwg.mxu0
    %315 = vmatpush.bf16.msra.mxu0 0
    %316 = vmatpush.bf16.msra.mxu0 0
    %317 = vmatpush.bf16.msra.mxu0 0
    %318 = vmatpush.bf16.msra.mxu0 0
    %319 = vmatpush.bf16.msra.mxu0 0
    %320 = vmatpush.bf16.msra.mxu0 0
    %321 = vmatpush.bf16.msra.mxu0 0
    %322 = vmatpush.bf16.msra.mxu0 %v168
    %323 = vmatmul.bf16.gmra.mxu0 %v134
    %v324 = vpop.f32.mrf.mxu0
    %v325 = vadd.f32 %v70, %v324
    %v326 = vpop.f32.mrf.mxu0
    %327 = vdwg.mxu0
    %328 = vmatpush.bf16.msra.mxu0 0
    %329 = vmatpush.bf16.msra.mxu0 0
    %330 = vmatpush.bf16.msra.mxu0 0
    %331 = vmatpush.bf16.msra.mxu0 0
    %332 = vmatpush.bf16.msra.mxu0 0
    %333 = vmatpush.bf16.msra.mxu0 0
    %334 = vmatpush.bf16.msra.mxu0 0
    %335 = vmatpush.bf16.msra.mxu0 %v171
    %336 = vmatmul.bf16.gmra.mxu0 %v134
    %v337 = vpop.f32.mrf.mxu0
    %v338 = vadd.f32 %v71, %v337
    %v339 = vpop.f32.mrf.mxu0
    %340 = vdwg.mxu0
    %341 = vmatpush.bf16.msra.mxu0 0
    %342 = vmatpush.bf16.msra.mxu0 0
    %343 = vmatpush.bf16.msra.mxu0 0
    %344 = vmatpush.bf16.msra.mxu0 0
    %345 = vmatpush.bf16.msra.mxu0 0
    %346 = vmatpush.bf16.msra.mxu0 0
    %347 = vmatpush.bf16.msra.mxu0 0
    %348 = vmatpush.bf16.msra.mxu0 %v174
    %349 = vmatmul.bf16.gmra.mxu0 %v134
    %v350 = vpop.f32.mrf.mxu0
    %v351 = vadd.f32 %v72, %v350
    %v352 = vpop.f32.mrf.mxu0
    %353 = vdwg.mxu0
    %354 = vmatpush.bf16.msra.mxu0 0
    %355 = vmatpush.bf16.msra.mxu0 0
    %356 = vmatpush.bf16.msra.mxu0 0
    %357 = vmatpush.bf16.msra.mxu0 0
    %358 = vmatpush.bf16.msra.mxu0 0
    %359 = vmatpush.bf16.msra.mxu0 0
    %360 = vmatpush.bf16.msra.mxu0 0
    %361 = vmatpush.bf16.msra.mxu0 %v177
    %362 = vmatmul.bf16.gmra.mxu0 %v134
    %v363 = vpop.f32.mrf.mxu0
    %v364 = vadd.f32 %v73, %v363
    %v365 = vpop.f32.mrf.mxu0
    %366 = vdwg.mxu0
    %367 = vmatpush.bf16.msra.mxu0 0
    %368 = vmatpush.bf16.msra.mxu0 0
    %369 = vmatpush.bf16.msra.mxu0 0
    %370 = vmatpush.bf16.msra.mxu0 0
    %371 = vmatpush.bf16.msra.mxu0 0
    %372 = vmatpush.bf16.msra.mxu0 0
    %373 = vmatpush.bf16.msra.mxu0 0
    %374 = vmatpush.bf16.msra.mxu0 %v180
    %375 = vmatmul.bf16.gmra.mxu0 %v134
    %v376 = vpop.f32.mrf.mxu0
    %v377 = vadd.f32 %v74, %v376
    %v378 = vpop.f32.mrf.mxu0
    %379 = vdwg.mxu0
    %380 = vmatpush.bf16.msra.mxu0 0
    %381 = vmatpush.bf16.msra.mxu0 0
    %382 = vmatpush.bf16.msra.mxu0 0
    %383 = vmatpush.bf16.msra.mxu0 0
    %384 = vmatpush.bf16.msra.mxu0 0
    %385 = vmatpush.bf16.msra.mxu0 0
    %386 = vmatpush.bf16.msra.mxu0 0
    %387 = vmatpush.bf16.msra.mxu0 %v183
    %388 = vmatmul.bf16.gmra.mxu0 %v134
    %v389 = vpop.f32.mrf.mxu0
    %v390 = vadd.f32 %v75, %v389
    %v391 = vpop.f32.mrf.mxu0
    %392 = vdwg.mxu0
    %v393 = vmax.f32 %v195, 0.0
    %v394 = vmax.f32 %v208, 0.0
    %v395 = vmax.f32 %v221, 0.0
    %v396 = vmax.f32 %v234, 0.0
    %v397 = vmax.f32 %v247, 0.0
    %v398 = vmax.f32 %v260, 0.0
    %v399 = vmax.f32 %v273, 0.0
    %v400 = vmax.f32 %v286, 0.0
    %v401 = vmax.f32 %v299, 0.0
    %v402 = vmax.f32 %v312, 0.0
    %v403 = vmax.f32 %v325, 0.0
    %v404 = vmax.f32 %v338, 0.0
    %v405 = vmax.f32 %v351, 0.0
    %v406 = vmax.f32 %v364, 0.0
    %v407 = vmax.f32 %v377, 0.0
    %v408 = vmax.f32 %v390, 0.0
    %v409 = vld [vmem:[#allocation2] sm:$0xff]
    %v410 = vld [vmem:[#allocation2 + $0x8] sm:$0xff]
    %v411 = vld [vmem:[#allocation2 + $0x10] sm:$0xff]
    %v412 = vld [vmem:[#allocation2 + $0x18] sm:$0xff]
    %v413 = vld [vmem:[#allocation2 + $0x20] sm:$0xff]
    %v414 = vld [vmem:[#allocation2 + $0x28] sm:$0xff]
    %v415 = vld [vmem:[#allocation2 + $0x30] sm:$0xff]
    %v416 = vld [vmem:[#allocation2 + $0x38] sm:$0xff]
    %v417 = vld [vmem:[#allocation2 + $0x40] sm:$0xff]
    %v418 = vld [vmem:[#allocation2 + $0x48] sm:$0xff]
    %v419 = vld [vmem:[#allocation2 + $0x50] sm:$0xff]
    %v420 = vld [vmem:[#allocation2 + $0x58] sm:$0xff]
    %v421 = vld [vmem:[#allocation2 + $0x60] sm:$0xff]
    %v422 = vld [vmem:[#allocation2 + $0x68] sm:$0xff]
    %v423 = vld [vmem:[#allocation2 + $0x70] sm:$0xff]
    %v424 = vld [vmem:[#allocation2 + $0x78] sm:$0xff]
    %v425 = vld [vmem:[#allocation2 + $0x80] sm:$0xff]
    %v426 = vld [vmem:[#allocation2 + $0x88] sm:$0xff]
    %v427 = vld [vmem:[#allocation2 + $0x90] sm:$0xff]
    %v428 = vld [vmem:[#allocation2 + $0x98] sm:$0xff]
    %v429 = vld [vmem:[#allocation2 + $0xa0] sm:$0xff]
    %v430 = vld [vmem:[#allocation2 + $0xa8] sm:$0xff]
    %v431 = vld [vmem:[#allocation2 + $0xb0] sm:$0xff]
    %v432 = vld [vmem:[#allocation2 + $0xb8] sm:$0xff]
    %v433 = vld [vmem:[#allocation2 + $0xc0] sm:$0xff]
    %v434 = vld [vmem:[#allocation2 + $0xc8] sm:$0xff]
    %v435 = vld [vmem:[#allocation2 + $0xd0] sm:$0xff]
    %v436 = vld [vmem:[#allocation2 + $0xd8] sm:$0xff]
    %v437 = vld [vmem:[#allocation2 + $0xe0] sm:$0xff]
    %v438 = vld [vmem:[#allocation2 + $0xe8] sm:$0xff]
    %v439 = vld [vmem:[#allocation2 + $0xf0] sm:$0xff]
    %v440 = vld [vmem:[#allocation2 + $0xf8] sm:$0xff]
    %v441 = vld [vmem:[#allocation2 + $0x100] sm:$0xff]
    %v442 = vld [vmem:[#allocation2 + $0x108] sm:$0xff]
    %v443 = vld [vmem:[#allocation2 + $0x110] sm:$0xff]
    %v444 = vld [vmem:[#allocation2 + $0x118] sm:$0xff]
    %v445 = vld [vmem:[#allocation2 + $0x120] sm:$0xff]
    %v446 = vld [vmem:[#allocation2 + $0x128] sm:$0xff]
    %v447 = vld [vmem:[#allocation2 + $0x130] sm:$0xff]
    %v448 = vld [vmem:[#allocation2 + $0x138] sm:$0xff]
    %v449 = vld [vmem:[#allocation2 + $0x140] sm:$0xff]
    %v450 = vld [vmem:[#allocation2 + $0x148] sm:$0xff]
    %v451 = vld [vmem:[#allocation2 + $0x150] sm:$0xff]
    %v452 = vld [vmem:[#allocation2 + $0x158] sm:$0xff]
    %v453 = vld [vmem:[#allocation2 + $0x160] sm:$0xff]
    %v454 = vld [vmem:[#allocation2 + $0x168] sm:$0xff]
    %v455 = vld [vmem:[#allocation2 + $0x170] sm:$0xff]
    %v456 = vld [vmem:[#allocation2 + $0x178] sm:$0xff]
    %v457 = vld [vmem:[#allocation2 + $0x180] sm:$0xff]
    %v458 = vld [vmem:[#allocation2 + $0x188] sm:$0xff]
    %v459 = vld [vmem:[#allocation2 + $0x190] sm:$0xff]
    %v460 = vld [vmem:[#allocation2 + $0x198] sm:$0xff]
    %v461 = vld [vmem:[#allocation2 + $0x1a0] sm:$0xff]
    %v462 = vld [vmem:[#allocation2 + $0x1a8] sm:$0xff]
    %v463 = vld [vmem:[#allocation2 + $0x1b0] sm:$0xff]
    %v464 = vld [vmem:[#allocation2 + $0x1b8] sm:$0xff]
    %v465 = vld [vmem:[#allocation2 + $0x1c0] sm:$0xff]
    %v466 = vld [vmem:[#allocation2 + $0x1c8] sm:$0xff]
    %v467 = vld [vmem:[#allocation2 + $0x1d0] sm:$0xff]
    %v468 = vld [vmem:[#allocation2 + $0x1d8] sm:$0xff]
    %v469 = vld [vmem:[#allocation2 + $0x1e0] sm:$0xff]
    %v470 = vld [vmem:[#allocation2 + $0x1e8] sm:$0xff]
    %v471 = vld [vmem:[#allocation2 + $0x1f0] sm:$0xff]
    %v472 = vld [vmem:[#allocation2 + $0x1f8] sm:$0xff]
    %v473 = vld [vmem:[#allocation2 + $0x200] sm:$0xff]
    %v474 = vld [vmem:[#allocation2 + $0x208] sm:$0xff]
    %v475 = vld [vmem:[#allocation2 + $0x210] sm:$0xff]
    %v476 = vld [vmem:[#allocation2 + $0x218] sm:$0xff]
    %v477 = vld [vmem:[#allocation2 + $0x220] sm:$0xff]
    %v478 = vld [vmem:[#allocation2 + $0x228] sm:$0xff]
    %v479 = vld [vmem:[#allocation2 + $0x230] sm:$0xff]
    %v480 = vld [vmem:[#allocation2 + $0x238] sm:$0xff]
    %v481 = vld [vmem:[#allocation2 + $0x240] sm:$0xff]
    %v482 = vld [vmem:[#allocation2 + $0x248] sm:$0xff]
    %v483 = vld [vmem:[#allocation2 + $0x250] sm:$0xff]
    %v484 = vld [vmem:[#allocation2 + $0x258] sm:$0xff]
    %v485 = vld [vmem:[#allocation2 + $0x260] sm:$0xff]
    %v486 = vld [vmem:[#allocation2 + $0x268] sm:$0xff]
    %v487 = vld [vmem:[#allocation2 + $0x270] sm:$0xff]
    %v488 = vld [vmem:[#allocation2 + $0x278] sm:$0xff]
    %v489 = vld [vmem:[#allocation2 + $0x280] sm:$0xff]
    %v490 = vld [vmem:[#allocation2 + $0x288] sm:$0xff]
    %v491 = vld [vmem:[#allocation2 + $0x290] sm:$0xff]
    %v492 = vld [vmem:[#allocation2 + $0x298] sm:$0xff]
    %v493 = vld [vmem:[#allocation2 + $0x2a0] sm:$0xff]
    %v494 = vld [vmem:[#allocation2 + $0x2a8] sm:$0xff]
    %v495 = vld [vmem:[#allocation2 + $0x2b0] sm:$0xff]
    %v496 = vld [vmem:[#allocation2 + $0x2b8] sm:$0xff]
    %v497 = vld [vmem:[#allocation2 + $0x2c0] sm:$0xff]
    %v498 = vld [vmem:[#allocation2 + $0x2c8] sm:$0xff]
    %v499 = vld [vmem:[#allocation2 + $0x2d0] sm:$0xff]
    %v500 = vld [vmem:[#allocation2 + $0x2d8] sm:$0xff]
    %v501 = vld [vmem:[#allocation2 + $0x2e0] sm:$0xff]
    %v502 = vld [vmem:[#allocation2 + $0x2e8] sm:$0xff]
    %v503 = vld [vmem:[#allocation2 + $0x2f0] sm:$0xff]
    %v504 = vld [vmem:[#allocation2 + $0x2f8] sm:$0xff]
    %v505 = vld [vmem:[#allocation2 + $0x300] sm:$0xff]
    %v506 = vld [vmem:[#allocation2 + $0x308] sm:$0xff]
    %v507 = vld [vmem:[#allocation2 + $0x310] sm:$0xff]
    %v508 = vld [vmem:[#allocation2 + $0x318] sm:$0xff]
    %v509 = vld [vmem:[#allocation2 + $0x320] sm:$0xff]
    %v510 = vld [vmem:[#allocation2 + $0x328] sm:$0xff]
    %v511 = vld [vmem:[#allocation2 + $0x330] sm:$0xff]
    %v512 = vld [vmem:[#allocation2 + $0x338] sm:$0xff]
    %v513 = vld [vmem:[#allocation2 + $0x340] sm:$0xff]
    %v514 = vld [vmem:[#allocation2 + $0x348] sm:$0xff]
    %v515 = vld [vmem:[#allocation2 + $0x350] sm:$0xff]
    %v516 = vld [vmem:[#allocation2 + $0x358] sm:$0xff]
    %v517 = vld [vmem:[#allocation2 + $0x360] sm:$0xff]
    %v518 = vld [vmem:[#allocation2 + $0x368] sm:$0xff]
    %v519 = vld [vmem:[#allocation2 + $0x370] sm:$0xff]
    %v520 = vld [vmem:[#allocation2 + $0x378] sm:$0xff]
    %v521 = vld [vmem:[#allocation2 + $0x380] sm:$0xff]
    %v522 = vld [vmem:[#allocation2 + $0x388] sm:$0xff]
    %v523 = vld [vmem:[#allocation2 + $0x390] sm:$0xff]
    %v524 = vld [vmem:[#allocation2 + $0x398] sm:$0xff]
    %v525 = vld [vmem:[#allocation2 + $0x3a0] sm:$0xff]
    %v526 = vld [vmem:[#allocation2 + $0x3a8] sm:$0xff]
    %v527 = vld [vmem:[#allocation2 + $0x3b0] sm:$0xff]
    %v528 = vld [vmem:[#allocation2 + $0x3b8] sm:$0xff]
    %v529 = vld [vmem:[#allocation2 + $0x3c0] sm:$0xff]
    %v530 = vld [vmem:[#allocation2 + $0x3c8] sm:$0xff]
    %v531 = vld [vmem:[#allocation2 + $0x3d0] sm:$0xff]
    %v532 = vld [vmem:[#allocation2 + $0x3d8] sm:$0xff]
    %v533 = vld [vmem:[#allocation2 + $0x3e0] sm:$0xff]
    %v534 = vld [vmem:[#allocation2 + $0x3e8] sm:$0xff]
    %v535 = vld [vmem:[#allocation2 + $0x3f0] sm:$0xff]
    %v536 = vld [vmem:[#allocation2 + $0x3f8] sm:$0xff]
    %v537 = vld [vmem:[#allocation2 + $0x400] sm:$0xff]
    %v538 = vld [vmem:[#allocation2 + $0x408] sm:$0xff]
    %v539 = vld [vmem:[#allocation2 + $0x410] sm:$0xff]
    %v540 = vld [vmem:[#allocation2 + $0x418] sm:$0xff]
    %v541 = vld [vmem:[#allocation2 + $0x420] sm:$0xff]
    %v542 = vld [vmem:[#allocation2 + $0x428] sm:$0xff]
    %v543 = vld [vmem:[#allocation2 + $0x430] sm:$0xff]
    %v544 = vld [vmem:[#allocation2 + $0x438] sm:$0xff]
    %v545 = vld [vmem:[#allocation2 + $0x440] sm:$0xff]
    %v546 = vld [vmem:[#allocation2 + $0x448] sm:$0xff]
    %v547 = vld [vmem:[#allocation2 + $0x450] sm:$0xff]
    %v548 = vld [vmem:[#allocation2 + $0x458] sm:$0xff]
    %v549 = vld [vmem:[#allocation2 + $0x460] sm:$0xff]
    %v550 = vld [vmem:[#allocation2 + $0x468] sm:$0xff]
    %v551 = vld [vmem:[#allocation2 + $0x470] sm:$0xff]
    %v552 = vld [vmem:[#allocation2 + $0x478] sm:$0xff]
    %v553 = vld [vmem:[#allocation2 + $0x480] sm:$0xff]
    %v554 = vld [vmem:[#allocation2 + $0x488] sm:$0xff]
    %v555 = vld [vmem:[#allocation2 + $0x490] sm:$0xff]
    %v556 = vld [vmem:[#allocation2 + $0x498] sm:$0xff]
    %v557 = vld [vmem:[#allocation2 + $0x4a0] sm:$0xff]
    %v558 = vld [vmem:[#allocation2 + $0x4a8] sm:$0xff]
    %v559 = vld [vmem:[#allocation2 + $0x4b0] sm:$0xff]
    %v560 = vld [vmem:[#allocation2 + $0x4b8] sm:$0xff]
    %v561 = vld [vmem:[#allocation2 + $0x4c0] sm:$0xff]
    %v562 = vld [vmem:[#allocation2 + $0x4c8] sm:$0xff]
    %v563 = vld [vmem:[#allocation2 + $0x4d0] sm:$0xff]
    %v564 = vld [vmem:[#allocation2 + $0x4d8] sm:$0xff]
    %v565 = vld [vmem:[#allocation2 + $0x4e0] sm:$0xff]
    %v566 = vld [vmem:[#allocation2 + $0x4e8] sm:$0xff]
    %v567 = vld [vmem:[#allocation2 + $0x4f0] sm:$0xff]
    %v568 = vld [vmem:[#allocation2 + $0x4f8] sm:$0xff]
    %v569 = vld [vmem:[#allocation2 + $0x500] sm:$0xff]
    %v570 = vld [vmem:[#allocation2 + $0x508] sm:$0xff]
    %v571 = vld [vmem:[#allocation2 + $0x510] sm:$0xff]
    %v572 = vld [vmem:[#allocation2 + $0x518] sm:$0xff]
    %v573 = vld [vmem:[#allocation2 + $0x520] sm:$0xff]
    %v574 = vld [vmem:[#allocation2 + $0x528] sm:$0xff]
    %v575 = vld [vmem:[#allocation2 + $0x530] sm:$0xff]
    %v576 = vld [vmem:[#allocation2 + $0x538] sm:$0xff]
    %v577 = vld [vmem:[#allocation2 + $0x540] sm:$0xff]
    %v578 = vld [vmem:[#allocation2 + $0x548] sm:$0xff]
    %v579 = vld [vmem:[#allocation2 + $0x550] sm:$0xff]
    %v580 = vld [vmem:[#allocation2 + $0x558] sm:$0xff]
    %v581 = vld [vmem:[#allocation2 + $0x560] sm:$0xff]
    %v582 = vld [vmem:[#allocation2 + $0x568] sm:$0xff]
    %v583 = vld [vmem:[#allocation2 + $0x570] sm:$0xff]
    %v584 = vld [vmem:[#allocation2 + $0x578] sm:$0xff]
    %v585 = vld [vmem:[#allocation2 + $0x580] sm:$0xff]
    %v586 = vld [vmem:[#allocation2 + $0x588] sm:$0xff]
    %v587 = vld [vmem:[#allocation2 + $0x590] sm:$0xff]
    %v588 = vld [vmem:[#allocation2 + $0x598] sm:$0xff]
    %v589 = vld [vmem:[#allocation2 + $0x5a0] sm:$0xff]
    %v590 = vld [vmem:[#allocation2 + $0x5a8] sm:$0xff]
    %v591 = vld [vmem:[#allocation2 + $0x5b0] sm:$0xff]
    %v592 = vld [vmem:[#allocation2 + $0x5b8] sm:$0xff]
    %v593 = vld [vmem:[#allocation2 + $0x5c0] sm:$0xff]
    %v594 = vld [vmem:[#allocation2 + $0x5c8] sm:$0xff]
    %v595 = vld [vmem:[#allocation2 + $0x5d0] sm:$0xff]
    %v596 = vld [vmem:[#allocation2 + $0x5d8] sm:$0xff]
    %v597 = vld [vmem:[#allocation2 + $0x5e0] sm:$0xff]
    %v598 = vld [vmem:[#allocation2 + $0x5e8] sm:$0xff]
    %v599 = vld [vmem:[#allocation2 + $0x5f0] sm:$0xff]
    %v600 = vld [vmem:[#allocation2 + $0x5f8] sm:$0xff]
    %v601 = vld [vmem:[#allocation2 + $0x600] sm:$0xff]
    %v602 = vld [vmem:[#allocation2 + $0x608] sm:$0xff]
    %v603 = vld [vmem:[#allocation2 + $0x610] sm:$0xff]
    %v604 = vld [vmem:[#allocation2 + $0x618] sm:$0xff]
    %v605 = vld [vmem:[#allocation2 + $0x620] sm:$0xff]
    %v606 = vld [vmem:[#allocation2 + $0x628] sm:$0xff]
    %v607 = vld [vmem:[#allocation2 + $0x630] sm:$0xff]
    %v608 = vld [vmem:[#allocation2 + $0x638] sm:$0xff]
    %v609 = vld [vmem:[#allocation2 + $0x640] sm:$0xff]
    %v610 = vld [vmem:[#allocation2 + $0x648] sm:$0xff]
    %v611 = vld [vmem:[#allocation2 + $0x650] sm:$0xff]
    %v612 = vld [vmem:[#allocation2 + $0x658] sm:$0xff]
    %v613 = vld [vmem:[#allocation2 + $0x660] sm:$0xff]
    %v614 = vld [vmem:[#allocation2 + $0x668] sm:$0xff]
    %v615 = vld [vmem:[#allocation2 + $0x670] sm:$0xff]
    %v616 = vld [vmem:[#allocation2 + $0x678] sm:$0xff]
    %v617 = vld [vmem:[#allocation2 + $0x680] sm:$0xff]
    %v618 = vld [vmem:[#allocation2 + $0x688] sm:$0xff]
    %v619 = vld [vmem:[#allocation2 + $0x690] sm:$0xff]
    %v620 = vld [vmem:[#allocation2 + $0x698] sm:$0xff]
    %v621 = vld [vmem:[#allocation2 + $0x6a0] sm:$0xff]
    %v622 = vld [vmem:[#allocation2 + $0x6a8] sm:$0xff]
    %v623 = vld [vmem:[#allocation2 + $0x6b0] sm:$0xff]
    %v624 = vld [vmem:[#allocation2 + $0x6b8] sm:$0xff]
    %v625 = vld [vmem:[#allocation2 + $0x6c0] sm:$0xff]
    %v626 = vld [vmem:[#allocation2 + $0x6c8] sm:$0xff]
    %v627 = vld [vmem:[#allocation2 + $0x6d0] sm:$0xff]
    %v628 = vld [vmem:[#allocation2 + $0x6d8] sm:$0xff]
    %v629 = vld [vmem:[#allocation2 + $0x6e0] sm:$0xff]
    %v630 = vld [vmem:[#allocation2 + $0x6e8] sm:$0xff]
    %v631 = vld [vmem:[#allocation2 + $0x6f0] sm:$0xff]
    %v632 = vld [vmem:[#allocation2 + $0x6f8] sm:$0xff]
    %v633 = vld [vmem:[#allocation2 + $0x700] sm:$0xff]
    %v634 = vld [vmem:[#allocation2 + $0x708] sm:$0xff]
    %v635 = vld [vmem:[#allocation2 + $0x710] sm:$0xff]
    %v636 = vld [vmem:[#allocation2 + $0x718] sm:$0xff]
    %v637 = vld [vmem:[#allocation2 + $0x720] sm:$0xff]
    %v638 = vld [vmem:[#allocation2 + $0x728] sm:$0xff]
    %v639 = vld [vmem:[#allocation2 + $0x730] sm:$0xff]
    %v640 = vld [vmem:[#allocation2 + $0x738] sm:$0xff]
    %v641 = vld [vmem:[#allocation2 + $0x740] sm:$0xff]
    %v642 = vld [vmem:[#allocation2 + $0x748] sm:$0xff]
    %v643 = vld [vmem:[#allocation2 + $0x750] sm:$0xff]
    %v644 = vld [vmem:[#allocation2 + $0x758] sm:$0xff]
    %v645 = vld [vmem:[#allocation2 + $0x760] sm:$0xff]
    %v646 = vld [vmem:[#allocation2 + $0x768] sm:$0xff]
    %v647 = vld [vmem:[#allocation2 + $0x770] sm:$0xff]
    %v648 = vld [vmem:[#allocation2 + $0x778] sm:$0xff]
    %v649 = vld [vmem:[#allocation2 + $0x780] sm:$0xff]
    %v650 = vld [vmem:[#allocation2 + $0x788] sm:$0xff]
    %v651 = vld [vmem:[#allocation2 + $0x790] sm:$0xff]
    %v652 = vld [vmem:[#allocation2 + $0x798] sm:$0xff]
    %v653 = vld [vmem:[#allocation2 + $0x7a0] sm:$0xff]
    %v654 = vld [vmem:[#allocation2 + $0x7a8] sm:$0xff]
    %v655 = vld [vmem:[#allocation2 + $0x7b0] sm:$0xff]
    %v656 = vld [vmem:[#allocation2 + $0x7b8] sm:$0xff]
    %v657 = vld [vmem:[#allocation2 + $0x7c0] sm:$0xff]
    %v658 = vld [vmem:[#allocation2 + $0x7c8] sm:$0xff]
    %v659 = vld [vmem:[#allocation2 + $0x7d0] sm:$0xff]
    %v660 = vld [vmem:[#allocation2 + $0x7d8] sm:$0xff]
    %v661 = vld [vmem:[#allocation2 + $0x7e0] sm:$0xff]
    %v662 = vld [vmem:[#allocation2 + $0x7e8] sm:$0xff]
    %v663 = vld [vmem:[#allocation2 + $0x7f0] sm:$0xff]
    %v664 = vld [vmem:[#allocation2 + $0x7f8] sm:$0xff]
    %v665 = vunpack.c.0.s8 %v409
    %v666 = vunpack.c.0.s8 %v410
    %v667 = vunpack.c.0.s8 %v411
    %v668 = vunpack.c.0.s8 %v412
    %v669 = vunpack.c.1.s8 %v409
    %v670 = vunpack.c.1.s8 %v410
    %v671 = vunpack.c.1.s8 %v411
    %v672 = vunpack.c.1.s8 %v412
    %v673 = vunpack.c.2.s8 %v409
    %v674 = vunpack.c.2.s8 %v410
    %v675 = vunpack.c.2.s8 %v411
    %v676 = vunpack.c.2.s8 %v412
    %v677 = vunpack.c.3.s8 %v409
    %v678 = vunpack.c.3.s8 %v410
    %v679 = vunpack.c.3.s8 %v411
    %v680 = vunpack.c.3.s8 %v412
    %v681 = vunpack.c.0.s8 %v413
    %v682 = vunpack.c.0.s8 %v414
    %v683 = vunpack.c.0.s8 %v415
    %v684 = vunpack.c.0.s8 %v416
    %v685 = vunpack.c.1.s8 %v413
    %v686 = vunpack.c.1.s8 %v414
    %v687 = vunpack.c.1.s8 %v415
    %v688 = vunpack.c.1.s8 %v416
    %v689 = vunpack.c.2.s8 %v413
    %v690 = vunpack.c.2.s8 %v414
    %v691 = vunpack.c.2.s8 %v415
    %v692 = vunpack.c.2.s8 %v416
    %v693 = vunpack.c.3.s8 %v413
    %v694 = vunpack.c.3.s8 %v414
    %v695 = vunpack.c.3.s8 %v415
    %v696 = vunpack.c.3.s8 %v416
    %v697 = vunpack.c.0.s8 %v417
    %v698 = vunpack.c.0.s8 %v418
    %v699 = vunpack.c.0.s8 %v419
    %v700 = vunpack.c.0.s8 %v420
    %v701 = vunpack.c.1.s8 %v417
    %v702 = vunpack.c.1.s8 %v418
    %v703 = vunpack.c.1.s8 %v419
    %v704 = vunpack.c.1.s8 %v420
    %v705 = vunpack.c.2.s8 %v417
    %v706 = vunpack.c.2.s8 %v418
    %v707 = vunpack.c.2.s8 %v419
    %v708 = vunpack.c.2.s8 %v420
    %v709 = vunpack.c.3.s8 %v417
    %v710 = vunpack.c.3.s8 %v418
    %v711 = vunpack.c.3.s8 %v419
    %v712 = vunpack.c.3.s8 %v420
    %v713 = vunpack.c.0.s8 %v421
    %v714 = vunpack.c.0.s8 %v422
    %v715 = vunpack.c.0.s8 %v423
    %v716 = vunpack.c.0.s8 %v424
    %v717 = vunpack.c.1.s8 %v421
    %v718 = vunpack.c.1.s8 %v422
    %v719 = vunpack.c.1.s8 %v423
    %v720 = vunpack.c.1.s8 %v424
    %v721 = vunpack.c.2.s8 %v421
    %v722 = vunpack.c.2.s8 %v422
    %v723 = vunpack.c.2.s8 %v423
    %v724 = vunpack.c.2.s8 %v424
    %v725 = vunpack.c.3.s8 %v421
    %v726 = vunpack.c.3.s8 %v422
    %v727 = vunpack.c.3.s8 %v423
    %v728 = vunpack.c.3.s8 %v424
    %v729 = vunpack.c.0.s8 %v425
    %v730 = vunpack.c.0.s8 %v426
    %v731 = vunpack.c.0.s8 %v427
    %v732 = vunpack.c.0.s8 %v428
    %v733 = vunpack.c.1.s8 %v425
    %v734 = vunpack.c.1.s8 %v426
    %v735 = vunpack.c.1.s8 %v427
    %v736 = vunpack.c.1.s8 %v428
    %v737 = vunpack.c.2.s8 %v425
    %v738 = vunpack.c.2.s8 %v426
    %v739 = vunpack.c.2.s8 %v427
    %v740 = vunpack.c.2.s8 %v428
    %v741 = vunpack.c.3.s8 %v425
    %v742 = vunpack.c.3.s8 %v426
    %v743 = vunpack.c.3.s8 %v427
    %v744 = vunpack.c.3.s8 %v428
    %v745 = vunpack.c.0.s8 %v429
    %v746 = vunpack.c.0.s8 %v430
    %v747 = vunpack.c.0.s8 %v431
    %v748 = vunpack.c.0.s8 %v432
    %v749 = vunpack.c.1.s8 %v429
    %v750 = vunpack.c.1.s8 %v430
    %v751 = vunpack.c.1.s8 %v431
    %v752 = vunpack.c.1.s8 %v432
    %v753 = vunpack.c.2.s8 %v429
    %v754 = vunpack.c.2.s8 %v430
    %v755 = vunpack.c.2.s8 %v431
    %v756 = vunpack.c.2.s8 %v432
    %v757 = vunpack.c.3.s8 %v429
    %v758 = vunpack.c.3.s8 %v430
    %v759 = vunpack.c.3.s8 %v431
    %v760 = vunpack.c.3.s8 %v432
    %v761 = vunpack.c.0.s8 %v433
    %v762 = vunpack.c.0.s8 %v434
    %v763 = vunpack.c.0.s8 %v435
    %v764 = vunpack.c.0.s8 %v436
    %v765 = vunpack.c.1.s8 %v433
    %v766 = vunpack.c.1.s8 %v434
    %v767 = vunpack.c.1.s8 %v435
    %v768 = vunpack.c.1.s8 %v436
    %v769 = vunpack.c.2.s8 %v433
    %v770 = vunpack.c.2.s8 %v434
    %v771 = vunpack.c.2.s8 %v435
    %v772 = vunpack.c.2.s8 %v436
    %v773 = vunpack.c.3.s8 %v433
    %v774 = vunpack.c.3.s8 %v434
    %v775 = vunpack.c.3.s8 %v435
    %v776 = vunpack.c.3.s8 %v436
    %v777 = vunpack.c.0.s8 %v437
    %v778 = vunpack.c.0.s8 %v438
    %v779 = vunpack.c.0.s8 %v439
    %v780 = vunpack.c.0.s8 %v440
    %v781 = vunpack.c.1.s8 %v437
    %v782 = vunpack.c.1.s8 %v438
    %v783 = vunpack.c.1.s8 %v439
    %v784 = vunpack.c.1.s8 %v440
    %v785 = vunpack.c.2.s8 %v437
    %v786 = vunpack.c.2.s8 %v438
    %v787 = vunpack.c.2.s8 %v439
    %v788 = vunpack.c.2.s8 %v440
    %v789 = vunpack.c.3.s8 %v437
    %v790 = vunpack.c.3.s8 %v438
    %v791 = vunpack.c.3.s8 %v439
    %v792 = vunpack.c.3.s8 %v440
    %v793 = vunpack.c.0.s8 %v441
    %v794 = vunpack.c.0.s8 %v442
    %v795 = vunpack.c.0.s8 %v443
    %v796 = vunpack.c.0.s8 %v444
    %v797 = vunpack.c.1.s8 %v441
    %v798 = vunpack.c.1.s8 %v442
    %v799 = vunpack.c.1.s8 %v443
    %v800 = vunpack.c.1.s8 %v444
    %v801 = vunpack.c.2.s8 %v441
    %v802 = vunpack.c.2.s8 %v442
    %v803 = vunpack.c.2.s8 %v443
    %v804 = vunpack.c.2.s8 %v444
    %v805 = vunpack.c.3.s8 %v441
    %v806 = vunpack.c.3.s8 %v442
    %v807 = vunpack.c.3.s8 %v443
    %v808 = vunpack.c.3.s8 %v444
    %v809 = vunpack.c.0.s8 %v445
    %v810 = vunpack.c.0.s8 %v446
    %v811 = vunpack.c.0.s8 %v447
    %v812 = vunpack.c.0.s8 %v448
    %v813 = vunpack.c.1.s8 %v445
    %v814 = vunpack.c.1.s8 %v446
    %v815 = vunpack.c.1.s8 %v447
    %v816 = vunpack.c.1.s8 %v448
    %v817 = vunpack.c.2.s8 %v445
    %v818 = vunpack.c.2.s8 %v446
    %v819 = vunpack.c.2.s8 %v447
    %v820 = vunpack.c.2.s8 %v448
    %v821 = vunpack.c.3.s8 %v445
    %v822 = vunpack.c.3.s8 %v446
    %v823 = vunpack.c.3.s8 %v447
    %v824 = vunpack.c.3.s8 %v448
    %v825 = vunpack.c.0.s8 %v449
    %v826 = vunpack.c.0.s8 %v450
    %v827 = vunpack.c.0.s8 %v451
    %v828 = vunpack.c.0.s8 %v452
    %v829 = vunpack.c.1.s8 %v449
    %v830 = vunpack.c.1.s8 %v450
    %v831 = vunpack.c.1.s8 %v451
    %v832 = vunpack.c.1.s8 %v452
    %v833 = vunpack.c.2.s8 %v449
    %v834 = vunpack.c.2.s8 %v450
    %v835 = vunpack.c.2.s8 %v451
    %v836 = vunpack.c.2.s8 %v452
    %v837 = vunpack.c.3.s8 %v449
    %v838 = vunpack.c.3.s8 %v450
    %v839 = vunpack.c.3.s8 %v451
    %v840 = vunpack.c.3.s8 %v452
    %v841 = vunpack.c.0.s8 %v453
    %v842 = vunpack.c.0.s8 %v454
    %v843 = vunpack.c.0.s8 %v455
    %v844 = vunpack.c.0.s8 %v456
    %v845 = vunpack.c.1.s8 %v453
    %v846 = vunpack.c.1.s8 %v454
    %v847 = vunpack.c.1.s8 %v455
    %v848 = vunpack.c.1.s8 %v456
    %v849 = vunpack.c.2.s8 %v453
    %v850 = vunpack.c.2.s8 %v454
    %v851 = vunpack.c.2.s8 %v455
    %v852 = vunpack.c.2.s8 %v456
    %v853 = vunpack.c.3.s8 %v453
    %v854 = vunpack.c.3.s8 %v454
    %v855 = vunpack.c.3.s8 %v455
    %v856 = vunpack.c.3.s8 %v456
    %v857 = vunpack.c.0.s8 %v457
    %v858 = vunpack.c.0.s8 %v458
    %v859 = vunpack.c.0.s8 %v459
    %v860 = vunpack.c.0.s8 %v460
    %v861 = vunpack.c.1.s8 %v457
    %v862 = vunpack.c.1.s8 %v458
    %v863 = vunpack.c.1.s8 %v459
    %v864 = vunpack.c.1.s8 %v460
    %v865 = vunpack.c.2.s8 %v457
    %v866 = vunpack.c.2.s8 %v458
    %v867 = vunpack.c.2.s8 %v459
    %v868 = vunpack.c.2.s8 %v460
    %v869 = vunpack.c.3.s8 %v457
    %v870 = vunpack.c.3.s8 %v458
    %v871 = vunpack.c.3.s8 %v459
    %v872 = vunpack.c.3.s8 %v460
    %v873 = vunpack.c.0.s8 %v461
    %v874 = vunpack.c.0.s8 %v462
    %v875 = vunpack.c.0.s8 %v463
    %v876 = vunpack.c.0.s8 %v464
    %v877 = vunpack.c.1.s8 %v461
    %v878 = vunpack.c.1.s8 %v462
    %v879 = vunpack.c.1.s8 %v463
    %v880 = vunpack.c.1.s8 %v464
    %v881 = vunpack.c.2.s8 %v461
    %v882 = vunpack.c.2.s8 %v462
    %v883 = vunpack.c.2.s8 %v463
    %v884 = vunpack.c.2.s8 %v464
    %v885 = vunpack.c.3.s8 %v461
    %v886 = vunpack.c.3.s8 %v462
    %v887 = vunpack.c.3.s8 %v463
    %v888 = vunpack.c.3.s8 %v464
    %v889 = vunpack.c.0.s8 %v465
    %v890 = vunpack.c.0.s8 %v466
    %v891 = vunpack.c.0.s8 %v467
    %v892 = vunpack.c.0.s8 %v468
    %v893 = vunpack.c.1.s8 %v465
    %v894 = vunpack.c.1.s8 %v466
    %v895 = vunpack.c.1.s8 %v467
    %v896 = vunpack.c.1.s8 %v468
    %v897 = vunpack.c.2.s8 %v465
    %v898 = vunpack.c.2.s8 %v466
    %v899 = vunpack.c.2.s8 %v467
    %v900 = vunpack.c.2.s8 %v468
    %v901 = vunpack.c.3.s8 %v465
    %v902 = vunpack.c.3.s8 %v466
    %v903 = vunpack.c.3.s8 %v467
    %v904 = vunpack.c.3.s8 %v468
    %v905 = vunpack.c.0.s8 %v469
    %v906 = vunpack.c.0.s8 %v470
    %v907 = vunpack.c.0.s8 %v471
    %v908 = vunpack.c.0.s8 %v472
    %v909 = vunpack.c.1.s8 %v469
    %v910 = vunpack.c.1.s8 %v470
    %v911 = vunpack.c.1.s8 %v471
    %v912 = vunpack.c.1.s8 %v472
    %v913 = vunpack.c.2.s8 %v469
    %v914 = vunpack.c.2.s8 %v470
    %v915 = vunpack.c.2.s8 %v471
    %v916 = vunpack.c.2.s8 %v472
    %v917 = vunpack.c.3.s8 %v469
    %v918 = vunpack.c.3.s8 %v470
    %v919 = vunpack.c.3.s8 %v471
    %v920 = vunpack.c.3.s8 %v472
    %v921 = vunpack.c.0.s8 %v473
    %v922 = vunpack.c.0.s8 %v474
    %v923 = vunpack.c.0.s8 %v475
    %v924 = vunpack.c.0.s8 %v476
    %v925 = vunpack.c.1.s8 %v473
    %v926 = vunpack.c.1.s8 %v474
    %v927 = vunpack.c.1.s8 %v475
    %v928 = vunpack.c.1.s8 %v476
    %v929 = vunpack.c.2.s8 %v473
    %v930 = vunpack.c.2.s8 %v474
    %v931 = vunpack.c.2.s8 %v475
    %v932 = vunpack.c.2.s8 %v476
    %v933 = vunpack.c.3.s8 %v473
    %v934 = vunpack.c.3.s8 %v474
    %v935 = vunpack.c.3.s8 %v475
    %v936 = vunpack.c.3.s8 %v476
    %v937 = vunpack.c.0.s8 %v477
    %v938 = vunpack.c.0.s8 %v478
    %v939 = vunpack.c.0.s8 %v479
    %v940 = vunpack.c.0.s8 %v480
    %v941 = vunpack.c.1.s8 %v477
    %v942 = vunpack.c.1.s8 %v478
    %v943 = vunpack.c.1.s8 %v479
    %v944 = vunpack.c.1.s8 %v480
    %v945 = vunpack.c.2.s8 %v477
    %v946 = vunpack.c.2.s8 %v478
    %v947 = vunpack.c.2.s8 %v479
    %v948 = vunpack.c.2.s8 %v480
    %v949 = vunpack.c.3.s8 %v477
    %v950 = vunpack.c.3.s8 %v478
    %v951 = vunpack.c.3.s8 %v479
    %v952 = vunpack.c.3.s8 %v480
    %v953 = vunpack.c.0.s8 %v481
    %v954 = vunpack.c.0.s8 %v482
    %v955 = vunpack.c.0.s8 %v483
    %v956 = vunpack.c.0.s8 %v484
    %v957 = vunpack.c.1.s8 %v481
    %v958 = vunpack.c.1.s8 %v482
    %v959 = vunpack.c.1.s8 %v483
    %v960 = vunpack.c.1.s8 %v484
    %v961 = vunpack.c.2.s8 %v481
    %v962 = vunpack.c.2.s8 %v482
    %v963 = vunpack.c.2.s8 %v483
    %v964 = vunpack.c.2.s8 %v484
    %v965 = vunpack.c.3.s8 %v481
    %v966 = vunpack.c.3.s8 %v482
    %v967 = vunpack.c.3.s8 %v483
    %v968 = vunpack.c.3.s8 %v484
    %v969 = vunpack.c.0.s8 %v485
    %v970 = vunpack.c.0.s8 %v486
    %v971 = vunpack.c.0.s8 %v487
    %v972 = vunpack.c.0.s8 %v488
    %v973 = vunpack.c.1.s8 %v485
    %v974 = vunpack.c.1.s8 %v486
    %v975 = vunpack.c.1.s8 %v487
    %v976 = vunpack.c.1.s8 %v488
    %v977 = vunpack.c.2.s8 %v485
    %v978 = vunpack.c.2.s8 %v486
    %v979 = vunpack.c.2.s8 %v487
    %v980 = vunpack.c.2.s8 %v488
    %v981 = vunpack.c.3.s8 %v485
    %v982 = vunpack.c.3.s8 %v486
    %v983 = vunpack.c.3.s8 %v487
    %v984 = vunpack.c.3.s8 %v488
    %v985 = vunpack.c.0.s8 %v489
    %v986 = vunpack.c.0.s8 %v490
    %v987 = vunpack.c.0.s8 %v491
    %v988 = vunpack.c.0.s8 %v492
    %v989 = vunpack.c.1.s8 %v489
    %v990 = vunpack.c.1.s8 %v490
    %v991 = vunpack.c.1.s8 %v491
    %v992 = vunpack.c.1.s8 %v492
    %v993 = vunpack.c.2.s8 %v489
    %v994 = vunpack.c.2.s8 %v490
    %v995 = vunpack.c.2.s8 %v491
    %v996 = vunpack.c.2.s8 %v492
    %v997 = vunpack.c.3.s8 %v489
    %v998 = vunpack.c.3.s8 %v490
    %v999 = vunpack.c.3.s8 %v491
    %v1000 = vunpack.c.3.s8 %v492
    %v1001 = vunpack.c.0.s8 %v493
    %v1002 = vunpack.c.0.s8 %v494
    %v1003 = vunpack.c.0.s8 %v495
    %v1004 = vunpack.c.0.s8 %v496
    %v1005 = vunpack.c.1.s8 %v493
    %v1006 = vunpack.c.1.s8 %v494
    %v1007 = vunpack.c.1.s8 %v495
    %v1008 = vunpack.c.1.s8 %v496
    %v1009 = vunpack.c.2.s8 %v493
    %v1010 = vunpack.c.2.s8 %v494
    %v1011 = vunpack.c.2.s8 %v495
    %v1012 = vunpack.c.2.s8 %v496
    %v1013 = vunpack.c.3.s8 %v493
    %v1014 = vunpack.c.3.s8 %v494
    %v1015 = vunpack.c.3.s8 %v495
    %v1016 = vunpack.c.3.s8 %v496
    %v1017 = vunpack.c.0.s8 %v497
    %v1018 = vunpack.c.0.s8 %v498
    %v1019 = vunpack.c.0.s8 %v499
    %v1020 = vunpack.c.0.s8 %v500
    %v1021 = vunpack.c.1.s8 %v497
    %v1022 = vunpack.c.1.s8 %v498
    %v1023 = vunpack.c.1.s8 %v499
    %v1024 = vunpack.c.1.s8 %v500
    %v1025 = vunpack.c.2.s8 %v497
    %v1026 = vunpack.c.2.s8 %v498
    %v1027 = vunpack.c.2.s8 %v499
    %v1028 = vunpack.c.2.s8 %v500
    %v1029 = vunpack.c.3.s8 %v497
    %v1030 = vunpack.c.3.s8 %v498
    %v1031 = vunpack.c.3.s8 %v499
    %v1032 = vunpack.c.3.s8 %v500
    %v1033 = vunpack.c.0.s8 %v501
    %v1034 = vunpack.c.0.s8 %v502
    %v1035 = vunpack.c.0.s8 %v503
    %v1036 = vunpack.c.0.s8 %v504
    %v1037 = vunpack.c.1.s8 %v501
    %v1038 = vunpack.c.1.s8 %v502
    %v1039 = vunpack.c.1.s8 %v503
    %v1040 = vunpack.c.1.s8 %v504
    %v1041 = vunpack.c.2.s8 %v501
    %v1042 = vunpack.c.2.s8 %v502
    %v1043 = vunpack.c.2.s8 %v503
    %v1044 = vunpack.c.2.s8 %v504
    %v1045 = vunpack.c.3.s8 %v501
    %v1046 = vunpack.c.3.s8 %v502
    %v1047 = vunpack.c.3.s8 %v503
    %v1048 = vunpack.c.3.s8 %v504
    %v1049 = vunpack.c.0.s8 %v505
    %v1050 = vunpack.c.0.s8 %v506
    %v1051 = vunpack.c.0.s8 %v507
    %v1052 = vunpack.c.0.s8 %v508
    %v1053 = vunpack.c.1.s8 %v505
    %v1054 = vunpack.c.1.s8 %v506
    %v1055 = vunpack.c.1.s8 %v507
    %v1056 = vunpack.c.1.s8 %v508
    %v1057 = vunpack.c.2.s8 %v505
    %v1058 = vunpack.c.2.s8 %v506
    %v1059 = vunpack.c.2.s8 %v507
    %v1060 = vunpack.c.2.s8 %v508
    %v1061 = vunpack.c.3.s8 %v505
    %v1062 = vunpack.c.3.s8 %v506
    %v1063 = vunpack.c.3.s8 %v507
    %v1064 = vunpack.c.3.s8 %v508
    %v1065 = vunpack.c.0.s8 %v509
    %v1066 = vunpack.c.0.s8 %v510
    %v1067 = vunpack.c.0.s8 %v511
    %v1068 = vunpack.c.0.s8 %v512
    %v1069 = vunpack.c.1.s8 %v509
    %v1070 = vunpack.c.1.s8 %v510
    %v1071 = vunpack.c.1.s8 %v511
    %v1072 = vunpack.c.1.s8 %v512
    %v1073 = vunpack.c.2.s8 %v509
    %v1074 = vunpack.c.2.s8 %v510
    %v1075 = vunpack.c.2.s8 %v511
    %v1076 = vunpack.c.2.s8 %v512
    %v1077 = vunpack.c.3.s8 %v509
    %v1078 = vunpack.c.3.s8 %v510
    %v1079 = vunpack.c.3.s8 %v511
    %v1080 = vunpack.c.3.s8 %v512
    %v1081 = vunpack.c.0.s8 %v513
    %v1082 = vunpack.c.0.s8 %v514
    %v1083 = vunpack.c.0.s8 %v515
    %v1084 = vunpack.c.0.s8 %v516
    %v1085 = vunpack.c.1.s8 %v513
    %v1086 = vunpack.c.1.s8 %v514
    %v1087 = vunpack.c.1.s8 %v515
    %v1088 = vunpack.c.1.s8 %v516
    %v1089 = vunpack.c.2.s8 %v513
    %v1090 = vunpack.c.2.s8 %v514
    %v1091 = vunpack.c.2.s8 %v515
    %v1092 = vunpack.c.2.s8 %v516
    %v1093 = vunpack.c.3.s8 %v513
    %v1094 = vunpack.c.3.s8 %v514
    %v1095 = vunpack.c.3.s8 %v515
    %v1096 = vunpack.c.3.s8 %v516
    %v1097 = vunpack.c.0.s8 %v517
    %v1098 = vunpack.c.0.s8 %v518
    %v1099 = vunpack.c.0.s8 %v519
    %v1100 = vunpack.c.0.s8 %v520
    %v1101 = vunpack.c.1.s8 %v517
    %v1102 = vunpack.c.1.s8 %v518
    %v1103 = vunpack.c.1.s8 %v519
    %v1104 = vunpack.c.1.s8 %v520
    %v1105 = vunpack.c.2.s8 %v517
    %v1106 = vunpack.c.2.s8 %v518
    %v1107 = vunpack.c.2.s8 %v519
    %v1108 = vunpack.c.2.s8 %v520
    %v1109 = vunpack.c.3.s8 %v517
    %v1110 = vunpack.c.3.s8 %v518
    %v1111 = vunpack.c.3.s8 %v519
    %v1112 = vunpack.c.3.s8 %v520
    %v1113 = vunpack.c.0.s8 %v521
    %v1114 = vunpack.c.0.s8 %v522
    %v1115 = vunpack.c.0.s8 %v523
    %v1116 = vunpack.c.0.s8 %v524
    %v1117 = vunpack.c.1.s8 %v521
    %v1118 = vunpack.c.1.s8 %v522
    %v1119 = vunpack.c.1.s8 %v523
    %v1120 = vunpack.c.1.s8 %v524
    %v1121 = vunpack.c.2.s8 %v521
    %v1122 = vunpack.c.2.s8 %v522
    %v1123 = vunpack.c.2.s8 %v523
    %v1124 = vunpack.c.2.s8 %v524
    %v1125 = vunpack.c.3.s8 %v521
    %v1126 = vunpack.c.3.s8 %v522
    %v1127 = vunpack.c.3.s8 %v523
    %v1128 = vunpack.c.3.s8 %v524
    %v1129 = vunpack.c.0.s8 %v525
    %v1130 = vunpack.c.0.s8 %v526
    %v1131 = vunpack.c.0.s8 %v527
    %v1132 = vunpack.c.0.s8 %v528
    %v1133 = vunpack.c.1.s8 %v525
    %v1134 = vunpack.c.1.s8 %v526
    %v1135 = vunpack.c.1.s8 %v527
    %v1136 = vunpack.c.1.s8 %v528
    %v1137 = vunpack.c.2.s8 %v525
    %v1138 = vunpack.c.2.s8 %v526
    %v1139 = vunpack.c.2.s8 %v527
    %v1140 = vunpack.c.2.s8 %v528
    %v1141 = vunpack.c.3.s8 %v525
    %v1142 = vunpack.c.3.s8 %v526
    %v1143 = vunpack.c.3.s8 %v527
    %v1144 = vunpack.c.3.s8 %v528
    %v1145 = vunpack.c.0.s8 %v529
    %v1146 = vunpack.c.0.s8 %v530
    %v1147 = vunpack.c.0.s8 %v531
    %v1148 = vunpack.c.0.s8 %v532
    %v1149 = vunpack.c.1.s8 %v529
    %v1150 = vunpack.c.1.s8 %v530
    %v1151 = vunpack.c.1.s8 %v531
    %v1152 = vunpack.c.1.s8 %v532
    %v1153 = vunpack.c.2.s8 %v529
    %v1154 = vunpack.c.2.s8 %v530
    %v1155 = vunpack.c.2.s8 %v531
    %v1156 = vunpack.c.2.s8 %v532
    %v1157 = vunpack.c.3.s8 %v529
    %v1158 = vunpack.c.3.s8 %v530
    %v1159 = vunpack.c.3.s8 %v531
    %v1160 = vunpack.c.3.s8 %v532
    %v1161 = vunpack.c.0.s8 %v533
    %v1162 = vunpack.c.0.s8 %v534
    %v1163 = vunpack.c.0.s8 %v535
    %v1164 = vunpack.c.0.s8 %v536
    %v1165 = vunpack.c.1.s8 %v533
    %v1166 = vunpack.c.1.s8 %v534
    %v1167 = vunpack.c.1.s8 %v535
    %v1168 = vunpack.c.1.s8 %v536
    %v1169 = vunpack.c.2.s8 %v533
    %v1170 = vunpack.c.2.s8 %v534
    %v1171 = vunpack.c.2.s8 %v535
    %v1172 = vunpack.c.2.s8 %v536
    %v1173 = vunpack.c.3.s8 %v533
    %v1174 = vunpack.c.3.s8 %v534
    %v1175 = vunpack.c.3.s8 %v535
    %v1176 = vunpack.c.3.s8 %v536
    %v1177 = vunpack.c.0.s8 %v537
    %v1178 = vunpack.c.0.s8 %v538
    %v1179 = vunpack.c.0.s8 %v539
    %v1180 = vunpack.c.0.s8 %v540
    %v1181 = vunpack.c.1.s8 %v537
    %v1182 = vunpack.c.1.s8 %v538
    %v1183 = vunpack.c.1.s8 %v539
    %v1184 = vunpack.c.1.s8 %v540
    %v1185 = vunpack.c.2.s8 %v537
    %v1186 = vunpack.c.2.s8 %v538
    %v1187 = vunpack.c.2.s8 %v539
    %v1188 = vunpack.c.2.s8 %v540
    %v1189 = vunpack.c.3.s8 %v537
    %v1190 = vunpack.c.3.s8 %v538
    %v1191 = vunpack.c.3.s8 %v539
    %v1192 = vunpack.c.3.s8 %v540
    %v1193 = vunpack.c.0.s8 %v541
    %v1194 = vunpack.c.0.s8 %v542
    %v1195 = vunpack.c.0.s8 %v543
    %v1196 = vunpack.c.0.s8 %v544
    %v1197 = vunpack.c.1.s8 %v541
    %v1198 = vunpack.c.1.s8 %v542
    %v1199 = vunpack.c.1.s8 %v543
    %v1200 = vunpack.c.1.s8 %v544
    %v1201 = vunpack.c.2.s8 %v541
    %v1202 = vunpack.c.2.s8 %v542
    %v1203 = vunpack.c.2.s8 %v543
    %v1204 = vunpack.c.2.s8 %v544
    %v1205 = vunpack.c.3.s8 %v541
    %v1206 = vunpack.c.3.s8 %v542
    %v1207 = vunpack.c.3.s8 %v543
    %v1208 = vunpack.c.3.s8 %v544
    %v1209 = vunpack.c.0.s8 %v545
    %v1210 = vunpack.c.0.s8 %v546
    %v1211 = vunpack.c.0.s8 %v547
    %v1212 = vunpack.c.0.s8 %v548
    %v1213 = vunpack.c.1.s8 %v545
    %v1214 = vunpack.c.1.s8 %v546
    %v1215 = vunpack.c.1.s8 %v547
    %v1216 = vunpack.c.1.s8 %v548
    %v1217 = vunpack.c.2.s8 %v545
    %v1218 = vunpack.c.2.s8 %v546
    %v1219 = vunpack.c.2.s8 %v547
    %v1220 = vunpack.c.2.s8 %v548
    %v1221 = vunpack.c.3.s8 %v545
    %v1222 = vunpack.c.3.s8 %v546
    %v1223 = vunpack.c.3.s8 %v547
    %v1224 = vunpack.c.3.s8 %v548
    %v1225 = vunpack.c.0.s8 %v549
    %v1226 = vunpack.c.0.s8 %v550
    %v1227 = vunpack.c.0.s8 %v551
    %v1228 = vunpack.c.0.s8 %v552
    %v1229 = vunpack.c.1.s8 %v549
    %v1230 = vunpack.c.1.s8 %v550
    %v1231 = vunpack.c.1.s8 %v551
    %v1232 = vunpack.c.1.s8 %v552
    %v1233 = vunpack.c.2.s8 %v549
    %v1234 = vunpack.c.2.s8 %v550
    %v1235 = vunpack.c.2.s8 %v551
    %v1236 = vunpack.c.2.s8 %v552
    %v1237 = vunpack.c.3.s8 %v549
    %v1238 = vunpack.c.3.s8 %v550
    %v1239 = vunpack.c.3.s8 %v551
    %v1240 = vunpack.c.3.s8 %v552
    %v1241 = vunpack.c.0.s8 %v553
    %v1242 = vunpack.c.0.s8 %v554
    %v1243 = vunpack.c.0.s8 %v555
    %v1244 = vunpack.c.0.s8 %v556
    %v1245 = vunpack.c.1.s8 %v553
    %v1246 = vunpack.c.1.s8 %v554
    %v1247 = vunpack.c.1.s8 %v555
    %v1248 = vunpack.c.1.s8 %v556
    %v1249 = vunpack.c.2.s8 %v553
    %v1250 = vunpack.c.2.s8 %v554
    %v1251 = vunpack.c.2.s8 %v555
    %v1252 = vunpack.c.2.s8 %v556
    %v1253 = vunpack.c.3.s8 %v553
    %v1254 = vunpack.c.3.s8 %v554
    %v1255 = vunpack.c.3.s8 %v555
    %v1256 = vunpack.c.3.s8 %v556
    %v1257 = vunpack.c.0.s8 %v557
    %v1258 = vunpack.c.0.s8 %v558
    %v1259 = vunpack.c.0.s8 %v559
    %v1260 = vunpack.c.0.s8 %v560
    %v1261 = vunpack.c.1.s8 %v557
    %v1262 = vunpack.c.1.s8 %v558
    %v1263 = vunpack.c.1.s8 %v559
    %v1264 = vunpack.c.1.s8 %v560
    %v1265 = vunpack.c.2.s8 %v557
    %v1266 = vunpack.c.2.s8 %v558
    %v1267 = vunpack.c.2.s8 %v559
    %v1268 = vunpack.c.2.s8 %v560
    %v1269 = vunpack.c.3.s8 %v557
    %v1270 = vunpack.c.3.s8 %v558
    %v1271 = vunpack.c.3.s8 %v559
    %v1272 = vunpack.c.3.s8 %v560
    %v1273 = vunpack.c.0.s8 %v561
    %v1274 = vunpack.c.0.s8 %v562
    %v1275 = vunpack.c.0.s8 %v563
    %v1276 = vunpack.c.0.s8 %v564
    %v1277 = vunpack.c.1.s8 %v561
    %v1278 = vunpack.c.1.s8 %v562
    %v1279 = vunpack.c.1.s8 %v563
    %v1280 = vunpack.c.1.s8 %v564
    %v1281 = vunpack.c.2.s8 %v561
    %v1282 = vunpack.c.2.s8 %v562
    %v1283 = vunpack.c.2.s8 %v563
    %v1284 = vunpack.c.2.s8 %v564
    %v1285 = vunpack.c.3.s8 %v561
    %v1286 = vunpack.c.3.s8 %v562
    %v1287 = vunpack.c.3.s8 %v563
    %v1288 = vunpack.c.3.s8 %v564
    %v1289 = vunpack.c.0.s8 %v565
    %v1290 = vunpack.c.0.s8 %v566
    %v1291 = vunpack.c.0.s8 %v567
    %v1292 = vunpack.c.0.s8 %v568
    %v1293 = vunpack.c.1.s8 %v565
    %v1294 = vunpack.c.1.s8 %v566
    %v1295 = vunpack.c.1.s8 %v567
    %v1296 = vunpack.c.1.s8 %v568
    %v1297 = vunpack.c.2.s8 %v565
    %v1298 = vunpack.c.2.s8 %v566
    %v1299 = vunpack.c.2.s8 %v567
    %v1300 = vunpack.c.2.s8 %v568
    %v1301 = vunpack.c.3.s8 %v565
    %v1302 = vunpack.c.3.s8 %v566
    %v1303 = vunpack.c.3.s8 %v567
    %v1304 = vunpack.c.3.s8 %v568
    %v1305 = vunpack.c.0.s8 %v569
    %v1306 = vunpack.c.0.s8 %v570
    %v1307 = vunpack.c.0.s8 %v571
    %v1308 = vunpack.c.0.s8 %v572
    %v1309 = vunpack.c.1.s8 %v569
    %v1310 = vunpack.c.1.s8 %v570
    %v1311 = vunpack.c.1.s8 %v571
    %v1312 = vunpack.c.1.s8 %v572
    %v1313 = vunpack.c.2.s8 %v569
    %v1314 = vunpack.c.2.s8 %v570
    %v1315 = vunpack.c.2.s8 %v571
    %v1316 = vunpack.c.2.s8 %v572
    %v1317 = vunpack.c.3.s8 %v569
    %v1318 = vunpack.c.3.s8 %v570
    %v1319 = vunpack.c.3.s8 %v571
    %v1320 = vunpack.c.3.s8 %v572
    %v1321 = vunpack.c.0.s8 %v573
    %v1322 = vunpack.c.0.s8 %v574
    %v1323 = vunpack.c.0.s8 %v575
    %v1324 = vunpack.c.0.s8 %v576
    %v1325 = vunpack.c.1.s8 %v573
    %v1326 = vunpack.c.1.s8 %v574
    %v1327 = vunpack.c.1.s8 %v575
    %v1328 = vunpack.c.1.s8 %v576
    %v1329 = vunpack.c.2.s8 %v573
    %v1330 = vunpack.c.2.s8 %v574
    %v1331 = vunpack.c.2.s8 %v575
    %v1332 = vunpack.c.2.s8 %v576
    %v1333 = vunpack.c.3.s8 %v573
    %v1334 = vunpack.c.3.s8 %v574
    %v1335 = vunpack.c.3.s8 %v575
    %v1336 = vunpack.c.3.s8 %v576
    %v1337 = vunpack.c.0.s8 %v577
    %v1338 = vunpack.c.0.s8 %v578
    %v1339 = vunpack.c.0.s8 %v579
    %v1340 = vunpack.c.0.s8 %v580
    %v1341 = vunpack.c.1.s8 %v577
    %v1342 = vunpack.c.1.s8 %v578
    %v1343 = vunpack.c.1.s8 %v579
    %v1344 = vunpack.c.1.s8 %v580
    %v1345 = vunpack.c.2.s8 %v577
    %v1346 = vunpack.c.2.s8 %v578
    %v1347 = vunpack.c.2.s8 %v579
    %v1348 = vunpack.c.2.s8 %v580
    %v1349 = vunpack.c.3.s8 %v577
    %v1350 = vunpack.c.3.s8 %v578
    %v1351 = vunpack.c.3.s8 %v579
    %v1352 = vunpack.c.3.s8 %v580
    %v1353 = vunpack.c.0.s8 %v581
    %v1354 = vunpack.c.0.s8 %v582
    %v1355 = vunpack.c.0.s8 %v583
    %v1356 = vunpack.c.0.s8 %v584
    %v1357 = vunpack.c.1.s8 %v581
    %v1358 = vunpack.c.1.s8 %v582
    %v1359 = vunpack.c.1.s8 %v583
    %v1360 = vunpack.c.1.s8 %v584
    %v1361 = vunpack.c.2.s8 %v581
    %v1362 = vunpack.c.2.s8 %v582
    %v1363 = vunpack.c.2.s8 %v583
    %v1364 = vunpack.c.2.s8 %v584
    %v1365 = vunpack.c.3.s8 %v581
    %v1366 = vunpack.c.3.s8 %v582
    %v1367 = vunpack.c.3.s8 %v583
    %v1368 = vunpack.c.3.s8 %v584
    %v1369 = vunpack.c.0.s8 %v585
    %v1370 = vunpack.c.0.s8 %v586
    %v1371 = vunpack.c.0.s8 %v587
    %v1372 = vunpack.c.0.s8 %v588
    %v1373 = vunpack.c.1.s8 %v585
    %v1374 = vunpack.c.1.s8 %v586
    %v1375 = vunpack.c.1.s8 %v587
    %v1376 = vunpack.c.1.s8 %v588
    %v1377 = vunpack.c.2.s8 %v585
    %v1378 = vunpack.c.2.s8 %v586
    %v1379 = vunpack.c.2.s8 %v587
    %v1380 = vunpack.c.2.s8 %v588
    %v1381 = vunpack.c.3.s8 %v585
    %v1382 = vunpack.c.3.s8 %v586
    %v1383 = vunpack.c.3.s8 %v587
    %v1384 = vunpack.c.3.s8 %v588
    %v1385 = vunpack.c.0.s8 %v589
    %v1386 = vunpack.c.0.s8 %v590
    %v1387 = vunpack.c.0.s8 %v591
    %v1388 = vunpack.c.0.s8 %v592
    %v1389 = vunpack.c.1.s8 %v589
    %v1390 = vunpack.c.1.s8 %v590
    %v1391 = vunpack.c.1.s8 %v591
    %v1392 = vunpack.c.1.s8 %v592
    %v1393 = vunpack.c.2.s8 %v589
    %v1394 = vunpack.c.2.s8 %v590
    %v1395 = vunpack.c.2.s8 %v591
    %v1396 = vunpack.c.2.s8 %v592
    %v1397 = vunpack.c.3.s8 %v589
    %v1398 = vunpack.c.3.s8 %v590
    %v1399 = vunpack.c.3.s8 %v591
    %v1400 = vunpack.c.3.s8 %v592
    %v1401 = vunpack.c.0.s8 %v593
    %v1402 = vunpack.c.0.s8 %v594
    %v1403 = vunpack.c.0.s8 %v595
    %v1404 = vunpack.c.0.s8 %v596
    %v1405 = vunpack.c.1.s8 %v593
    %v1406 = vunpack.c.1.s8 %v594
    %v1407 = vunpack.c.1.s8 %v595
    %v1408 = vunpack.c.1.s8 %v596
    %v1409 = vunpack.c.2.s8 %v593
    %v1410 = vunpack.c.2.s8 %v594
    %v1411 = vunpack.c.2.s8 %v595
    %v1412 = vunpack.c.2.s8 %v596
    %v1413 = vunpack.c.3.s8 %v593
    %v1414 = vunpack.c.3.s8 %v594
    %v1415 = vunpack.c.3.s8 %v595
    %v1416 = vunpack.c.3.s8 %v596
    %v1417 = vunpack.c.0.s8 %v597
    %v1418 = vunpack.c.0.s8 %v598
    %v1419 = vunpack.c.0.s8 %v599
    %v1420 = vunpack.c.0.s8 %v600
    %v1421 = vunpack.c.1.s8 %v597
    %v1422 = vunpack.c.1.s8 %v598
    %v1423 = vunpack.c.1.s8 %v599
    %v1424 = vunpack.c.1.s8 %v600
    %v1425 = vunpack.c.2.s8 %v597
    %v1426 = vunpack.c.2.s8 %v598
    %v1427 = vunpack.c.2.s8 %v599
    %v1428 = vunpack.c.2.s8 %v600
    %v1429 = vunpack.c.3.s8 %v597
    %v1430 = vunpack.c.3.s8 %v598
    %v1431 = vunpack.c.3.s8 %v599
    %v1432 = vunpack.c.3.s8 %v600
    %v1433 = vunpack.c.0.s8 %v601
    %v1434 = vunpack.c.0.s8 %v602
    %v1435 = vunpack.c.0.s8 %v603
    %v1436 = vunpack.c.0.s8 %v604
    %v1437 = vunpack.c.1.s8 %v601
    %v1438 = vunpack.c.1.s8 %v602
    %v1439 = vunpack.c.1.s8 %v603
    %v1440 = vunpack.c.1.s8 %v604
    %v1441 = vunpack.c.2.s8 %v601
    %v1442 = vunpack.c.2.s8 %v602
    %v1443 = vunpack.c.2.s8 %v603
    %v1444 = vunpack.c.2.s8 %v604
    %v1445 = vunpack.c.3.s8 %v601
    %v1446 = vunpack.c.3.s8 %v602
    %v1447 = vunpack.c.3.s8 %v603
    %v1448 = vunpack.c.3.s8 %v604
    %v1449 = vunpack.c.0.s8 %v605
    %v1450 = vunpack.c.0.s8 %v606
    %v1451 = vunpack.c.0.s8 %v607
    %v1452 = vunpack.c.0.s8 %v608
    %v1453 = vunpack.c.1.s8 %v605
    %v1454 = vunpack.c.1.s8 %v606
    %v1455 = vunpack.c.1.s8 %v607
    %v1456 = vunpack.c.1.s8 %v608
    %v1457 = vunpack.c.2.s8 %v605
    %v1458 = vunpack.c.2.s8 %v606
    %v1459 = vunpack.c.2.s8 %v607
    %v1460 = vunpack.c.2.s8 %v608
    %v1461 = vunpack.c.3.s8 %v605
    %v1462 = vunpack.c.3.s8 %v606
    %v1463 = vunpack.c.3.s8 %v607
    %v1464 = vunpack.c.3.s8 %v608
    %v1465 = vunpack.c.0.s8 %v609
    %v1466 = vunpack.c.0.s8 %v610
    %v1467 = vunpack.c.0.s8 %v611
    %v1468 = vunpack.c.0.s8 %v612
    %v1469 = vunpack.c.1.s8 %v609
    %v1470 = vunpack.c.1.s8 %v610
    %v1471 = vunpack.c.1.s8 %v611
    %v1472 = vunpack.c.1.s8 %v612
    %v1473 = vunpack.c.2.s8 %v609
    %v1474 = vunpack.c.2.s8 %v610
    %v1475 = vunpack.c.2.s8 %v611
    %v1476 = vunpack.c.2.s8 %v612
    %v1477 = vunpack.c.3.s8 %v609
    %v1478 = vunpack.c.3.s8 %v610
    %v1479 = vunpack.c.3.s8 %v611
    %v1480 = vunpack.c.3.s8 %v612
    %v1481 = vunpack.c.0.s8 %v613
    %v1482 = vunpack.c.0.s8 %v614
    %v1483 = vunpack.c.0.s8 %v615
    %v1484 = vunpack.c.0.s8 %v616
    %v1485 = vunpack.c.1.s8 %v613
    %v1486 = vunpack.c.1.s8 %v614
    %v1487 = vunpack.c.1.s8 %v615
    %v1488 = vunpack.c.1.s8 %v616
    %v1489 = vunpack.c.2.s8 %v613
    %v1490 = vunpack.c.2.s8 %v614
    %v1491 = vunpack.c.2.s8 %v615
    %v1492 = vunpack.c.2.s8 %v616
    %v1493 = vunpack.c.3.s8 %v613
    %v1494 = vunpack.c.3.s8 %v614
    %v1495 = vunpack.c.3.s8 %v615
    %v1496 = vunpack.c.3.s8 %v616
    %v1497 = vunpack.c.0.s8 %v617
    %v1498 = vunpack.c.0.s8 %v618
    %v1499 = vunpack.c.0.s8 %v619
    %v1500 = vunpack.c.0.s8 %v620
    %v1501 = vunpack.c.1.s8 %v617
    %v1502 = vunpack.c.1.s8 %v618
    %v1503 = vunpack.c.1.s8 %v619
    %v1504 = vunpack.c.1.s8 %v620
    %v1505 = vunpack.c.2.s8 %v617
    %v1506 = vunpack.c.2.s8 %v618
    %v1507 = vunpack.c.2.s8 %v619
    %v1508 = vunpack.c.2.s8 %v620
    %v1509 = vunpack.c.3.s8 %v617
    %v1510 = vunpack.c.3.s8 %v618
    %v1511 = vunpack.c.3.s8 %v619
    %v1512 = vunpack.c.3.s8 %v620
    %v1513 = vunpack.c.0.s8 %v621
    %v1514 = vunpack.c.0.s8 %v622
    %v1515 = vunpack.c.0.s8 %v623
    %v1516 = vunpack.c.0.s8 %v624
    %v1517 = vunpack.c.1.s8 %v621
    %v1518 = vunpack.c.1.s8 %v622
    %v1519 = vunpack.c.1.s8 %v623
    %v1520 = vunpack.c.1.s8 %v624
    %v1521 = vunpack.c.2.s8 %v621
    %v1522 = vunpack.c.2.s8 %v622
    %v1523 = vunpack.c.2.s8 %v623
    %v1524 = vunpack.c.2.s8 %v624
    %v1525 = vunpack.c.3.s8 %v621
    %v1526 = vunpack.c.3.s8 %v622
    %v1527 = vunpack.c.3.s8 %v623
    %v1528 = vunpack.c.3.s8 %v624
    %v1529 = vunpack.c.0.s8 %v625
    %v1530 = vunpack.c.0.s8 %v626
    %v1531 = vunpack.c.0.s8 %v627
    %v1532 = vunpack.c.0.s8 %v628
    %v1533 = vunpack.c.1.s8 %v625
    %v1534 = vunpack.c.1.s8 %v626
    %v1535 = vunpack.c.1.s8 %v627
    %v1536 = vunpack.c.1.s8 %v628
    %v1537 = vunpack.c.2.s8 %v625
    %v1538 = vunpack.c.2.s8 %v626
    %v1539 = vunpack.c.2.s8 %v627
    %v1540 = vunpack.c.2.s8 %v628
    %v1541 = vunpack.c.3.s8 %v625
    %v1542 = vunpack.c.3.s8 %v626
    %v1543 = vunpack.c.3.s8 %v627
    %v1544 = vunpack.c.3.s8 %v628
    %v1545 = vunpack.c.0.s8 %v629
    %v1546 = vunpack.c.0.s8 %v630
    %v1547 = vunpack.c.0.s8 %v631
    %v1548 = vunpack.c.0.s8 %v632
    %v1549 = vunpack.c.1.s8 %v629
    %v1550 = vunpack.c.1.s8 %v630
    %v1551 = vunpack.c.1.s8 %v631
    %v1552 = vunpack.c.1.s8 %v632
    %v1553 = vunpack.c.2.s8 %v629
    %v1554 = vunpack.c.2.s8 %v630
    %v1555 = vunpack.c.2.s8 %v631
    %v1556 = vunpack.c.2.s8 %v632
    %v1557 = vunpack.c.3.s8 %v629
    %v1558 = vunpack.c.3.s8 %v630
    %v1559 = vunpack.c.3.s8 %v631
    %v1560 = vunpack.c.3.s8 %v632
    %v1561 = vunpack.c.0.s8 %v633
    %v1562 = vunpack.c.0.s8 %v634
    %v1563 = vunpack.c.0.s8 %v635
    %v1564 = vunpack.c.0.s8 %v636
    %v1565 = vunpack.c.1.s8 %v633
    %v1566 = vunpack.c.1.s8 %v634
    %v1567 = vunpack.c.1.s8 %v635
    %v1568 = vunpack.c.1.s8 %v636
    %v1569 = vunpack.c.2.s8 %v633
    %v1570 = vunpack.c.2.s8 %v634
    %v1571 = vunpack.c.2.s8 %v635
    %v1572 = vunpack.c.2.s8 %v636
    %v1573 = vunpack.c.3.s8 %v633
    %v1574 = vunpack.c.3.s8 %v634
    %v1575 = vunpack.c.3.s8 %v635
    %v1576 = vunpack.c.3.s8 %v636
    %v1577 = vunpack.c.0.s8 %v637
    %v1578 = vunpack.c.0.s8 %v638
    %v1579 = vunpack.c.0.s8 %v639
    %v1580 = vunpack.c.0.s8 %v640
    %v1581 = vunpack.c.1.s8 %v637
    %v1582 = vunpack.c.1.s8 %v638
    %v1583 = vunpack.c.1.s8 %v639
    %v1584 = vunpack.c.1.s8 %v640
    %v1585 = vunpack.c.2.s8 %v637
    %v1586 = vunpack.c.2.s8 %v638
    %v1587 = vunpack.c.2.s8 %v639
    %v1588 = vunpack.c.2.s8 %v640
    %v1589 = vunpack.c.3.s8 %v637
    %v1590 = vunpack.c.3.s8 %v638
    %v1591 = vunpack.c.3.s8 %v639
    %v1592 = vunpack.c.3.s8 %v640
    %v1593 = vunpack.c.0.s8 %v641
    %v1594 = vunpack.c.0.s8 %v642
    %v1595 = vunpack.c.0.s8 %v643
    %v1596 = vunpack.c.0.s8 %v644
    %v1597 = vunpack.c.1.s8 %v641
    %v1598 = vunpack.c.1.s8 %v642
    %v1599 = vunpack.c.1.s8 %v643
    %v1600 = vunpack.c.1.s8 %v644
    %v1601 = vunpack.c.2.s8 %v641
    %v1602 = vunpack.c.2.s8 %v642
    %v1603 = vunpack.c.2.s8 %v643
    %v1604 = vunpack.c.2.s8 %v644
    %v1605 = vunpack.c.3.s8 %v641
    %v1606 = vunpack.c.3.s8 %v642
    %v1607 = vunpack.c.3.s8 %v643
    %v1608 = vunpack.c.3.s8 %v644
    %v1609 = vunpack.c.0.s8 %v645
    %v1610 = vunpack.c.0.s8 %v646
    %v1611 = vunpack.c.0.s8 %v647
    %v1612 = vunpack.c.0.s8 %v648
    %v1613 = vunpack.c.1.s8 %v645
    %v1614 = vunpack.c.1.s8 %v646
    %v1615 = vunpack.c.1.s8 %v647
    %v1616 = vunpack.c.1.s8 %v648
    %v1617 = vunpack.c.2.s8 %v645
    %v1618 = vunpack.c.2.s8 %v646
    %v1619 = vunpack.c.2.s8 %v647
    %v1620 = vunpack.c.2.s8 %v648
    %v1621 = vunpack.c.3.s8 %v645
    %v1622 = vunpack.c.3.s8 %v646
    %v1623 = vunpack.c.3.s8 %v647
    %v1624 = vunpack.c.3.s8 %v648
    %v1625 = vunpack.c.0.s8 %v649
    %v1626 = vunpack.c.0.s8 %v650
    %v1627 = vunpack.c.0.s8 %v651
    %v1628 = vunpack.c.0.s8 %v652
    %v1629 = vunpack.c.1.s8 %v649
    %v1630 = vunpack.c.1.s8 %v650
    %v1631 = vunpack.c.1.s8 %v651
    %v1632 = vunpack.c.1.s8 %v652
    %v1633 = vunpack.c.2.s8 %v649
    %v1634 = vunpack.c.2.s8 %v650
    %v1635 = vunpack.c.2.s8 %v651
    %v1636 = vunpack.c.2.s8 %v652
    %v1637 = vunpack.c.3.s8 %v649
    %v1638 = vunpack.c.3.s8 %v650
    %v1639 = vunpack.c.3.s8 %v651
    %v1640 = vunpack.c.3.s8 %v652
    %v1641 = vunpack.c.0.s8 %v653
    %v1642 = vunpack.c.0.s8 %v654
    %v1643 = vunpack.c.0.s8 %v655
    %v1644 = vunpack.c.0.s8 %v656
    %v1645 = vunpack.c.1.s8 %v653
    %v1646 = vunpack.c.1.s8 %v654
    %v1647 = vunpack.c.1.s8 %v655
    %v1648 = vunpack.c.1.s8 %v656
    %v1649 = vunpack.c.2.s8 %v653
    %v1650 = vunpack.c.2.s8 %v654
    %v1651 = vunpack.c.2.s8 %v655
    %v1652 = vunpack.c.2.s8 %v656
    %v1653 = vunpack.c.3.s8 %v653
    %v1654 = vunpack.c.3.s8 %v654
    %v1655 = vunpack.c.3.s8 %v655
    %v1656 = vunpack.c.3.s8 %v656
    %v1657 = vunpack.c.0.s8 %v657
    %v1658 = vunpack.c.0.s8 %v658
    %v1659 = vunpack.c.0.s8 %v659
    %v1660 = vunpack.c.0.s8 %v660
    %v1661 = vunpack.c.1.s8 %v657
    %v1662 = vunpack.c.1.s8 %v658
    %v1663 = vunpack.c.1.s8 %v659
    %v1664 = vunpack.c.1.s8 %v660
    %v1665 = vunpack.c.2.s8 %v657
    %v1666 = vunpack.c.2.s8 %v658
    %v1667 = vunpack.c.2.s8 %v659
    %v1668 = vunpack.c.2.s8 %v660
    %v1669 = vunpack.c.3.s8 %v657
    %v1670 = vunpack.c.3.s8 %v658
    %v1671 = vunpack.c.3.s8 %v659
    %v1672 = vunpack.c.3.s8 %v660
    %v1673 = vunpack.c.0.s8 %v661
    %v1674 = vunpack.c.0.s8 %v662
    %v1675 = vunpack.c.0.s8 %v663
    %v1676 = vunpack.c.0.s8 %v664
    %v1677 = vunpack.c.1.s8 %v661
    %v1678 = vunpack.c.1.s8 %v662
    %v1679 = vunpack.c.1.s8 %v663
    %v1680 = vunpack.c.1.s8 %v664
    %v1681 = vunpack.c.2.s8 %v661
    %v1682 = vunpack.c.2.s8 %v662
    %v1683 = vunpack.c.2.s8 %v663
    %v1684 = vunpack.c.2.s8 %v664
    %v1685 = vunpack.c.3.s8 %v661
    %v1686 = vunpack.c.3.s8 %v662
    %v1687 = vunpack.c.3.s8 %v663
    %v1688 = vunpack.c.3.s8 %v664
    %v1689 = vcvt.s32.f32 %v665
    %v1690 = vcvt.s32.f32 %v666
    %v1691 = vcvt.s32.f32 %v667
    %v1692 = vcvt.s32.f32 %v668
    %v1693 = vcvt.s32.f32 %v669
    %v1694 = vcvt.s32.f32 %v670
    %v1695 = vcvt.s32.f32 %v671
    %v1696 = vcvt.s32.f32 %v672
    %v1697 = vcvt.s32.f32 %v673
    %v1698 = vcvt.s32.f32 %v674
    %v1699 = vcvt.s32.f32 %v675
    %v1700 = vcvt.s32.f32 %v676
    %v1701 = vcvt.s32.f32 %v677
    %v1702 = vcvt.s32.f32 %v678
    %v1703 = vcvt.s32.f32 %v679
    %v1704 = vcvt.s32.f32 %v680
    %v1705 = vcvt.s32.f32 %v681
    %v1706 = vcvt.s32.f32 %v682
    %v1707 = vcvt.s32.f32 %v683
    %v1708 = vcvt.s32.f32 %v684
    %v1709 = vcvt.s32.f32 %v685
    %v1710 = vcvt.s32.f32 %v686
    %v1711 = vcvt.s32.f32 %v687
    %v1712 = vcvt.s32.f32 %v688
    %v1713 = vcvt.s32.f32 %v689
    %v1714 = vcvt.s32.f32 %v690
    %v1715 = vcvt.s32.f32 %v691
    %v1716 = vcvt.s32.f32 %v692
    %v1717 = vcvt.s32.f32 %v693
    %v1718 = vcvt.s32.f32 %v694
    %v1719 = vcvt.s32.f32 %v695
    %v1720 = vcvt.s32.f32 %v696
    %v1721 = vcvt.s32.f32 %v697
    %v1722 = vcvt.s32.f32 %v698
    %v1723 = vcvt.s32.f32 %v699
    %v1724 = vcvt.s32.f32 %v700
    %v1725 = vcvt.s32.f32 %v701
    %v1726 = vcvt.s32.f32 %v702
    %v1727 = vcvt.s32.f32 %v703
    %v1728 = vcvt.s32.f32 %v704
    %v1729 = vcvt.s32.f32 %v705
    %v1730 = vcvt.s32.f32 %v706
    %v1731 = vcvt.s32.f32 %v707
    %v1732 = vcvt.s32.f32 %v708
    %v1733 = vcvt.s32.f32 %v709
    %v1734 = vcvt.s32.f32 %v710
    %v1735 = vcvt.s32.f32 %v711
    %v1736 = vcvt.s32.f32 %v712
    %v1737 = vcvt.s32.f32 %v713
    %v1738 = vcvt.s32.f32 %v714
    %v1739 = vcvt.s32.f32 %v715
    %v1740 = vcvt.s32.f32 %v716
    %v1741 = vcvt.s32.f32 %v717
    %v1742 = vcvt.s32.f32 %v718
    %v1743 = vcvt.s32.f32 %v719
    %v1744 = vcvt.s32.f32 %v720
    %v1745 = vcvt.s32.f32 %v721
    %v1746 = vcvt.s32.f32 %v722
    %v1747 = vcvt.s32.f32 %v723
    %v1748 = vcvt.s32.f32 %v724
    %v1749 = vcvt.s32.f32 %v725
    %v1750 = vcvt.s32.f32 %v726
    %v1751 = vcvt.s32.f32 %v727
    %v1752 = vcvt.s32.f32 %v728
    %v1753 = vcvt.s32.f32 %v729
    %v1754 = vcvt.s32.f32 %v730
    %v1755 = vcvt.s32.f32 %v731
    %v1756 = vcvt.s32.f32 %v732
    %v1757 = vcvt.s32.f32 %v733
    %v1758 = vcvt.s32.f32 %v734
    %v1759 = vcvt.s32.f32 %v735
    %v1760 = vcvt.s32.f32 %v736
    %v1761 = vcvt.s32.f32 %v737
    %v1762 = vcvt.s32.f32 %v738
    %v1763 = vcvt.s32.f32 %v739
    %v1764 = vcvt.s32.f32 %v740
    %v1765 = vcvt.s32.f32 %v741
    %v1766 = vcvt.s32.f32 %v742
    %v1767 = vcvt.s32.f32 %v743
    %v1768 = vcvt.s32.f32 %v744
    %v1769 = vcvt.s32.f32 %v745
    %v1770 = vcvt.s32.f32 %v746
    %v1771 = vcvt.s32.f32 %v747
    %v1772 = vcvt.s32.f32 %v748
    %v1773 = vcvt.s32.f32 %v749
    %v1774 = vcvt.s32.f32 %v750
    %v1775 = vcvt.s32.f32 %v751
    %v1776 = vcvt.s32.f32 %v752
    %v1777 = vcvt.s32.f32 %v753
    %v1778 = vcvt.s32.f32 %v754
    %v1779 = vcvt.s32.f32 %v755
    %v1780 = vcvt.s32.f32 %v756
    %v1781 = vcvt.s32.f32 %v757
    %v1782 = vcvt.s32.f32 %v758
    %v1783 = vcvt.s32.f32 %v759
    %v1784 = vcvt.s32.f32 %v760
    %v1785 = vcvt.s32.f32 %v761
    %v1786 = vcvt.s32.f32 %v762
    %v1787 = vcvt.s32.f32 %v763
    %v1788 = vcvt.s32.f32 %v764
    %v1789 = vcvt.s32.f32 %v765
    %v1790 = vcvt.s32.f32 %v766
    %v1791 = vcvt.s32.f32 %v767
    %v1792 = vcvt.s32.f32 %v768
    %v1793 = vcvt.s32.f32 %v769
    %v1794 = vcvt.s32.f32 %v770
    %v1795 = vcvt.s32.f32 %v771
    %v1796 = vcvt.s32.f32 %v772
    %v1797 = vcvt.s32.f32 %v773
    %v1798 = vcvt.s32.f32 %v774
    %v1799 = vcvt.s32.f32 %v775
    %v1800 = vcvt.s32.f32 %v776
    %v1801 = vcvt.s32.f32 %v777
    %v1802 = vcvt.s32.f32 %v778
    %v1803 = vcvt.s32.f32 %v779
    %v1804 = vcvt.s32.f32 %v780
    %v1805 = vcvt.s32.f32 %v781
    %v1806 = vcvt.s32.f32 %v782
    %v1807 = vcvt.s32.f32 %v783
    %v1808 = vcvt.s32.f32 %v784
    %v1809 = vcvt.s32.f32 %v785
    %v1810 = vcvt.s32.f32 %v786
    %v1811 = vcvt.s32.f32 %v787
    %v1812 = vcvt.s32.f32 %v788
    %v1813 = vcvt.s32.f32 %v789
    %v1814 = vcvt.s32.f32 %v790
    %v1815 = vcvt.s32.f32 %v791
    %v1816 = vcvt.s32.f32 %v792
    %v1817 = vcvt.s32.f32 %v793
    %v1818 = vcvt.s32.f32 %v794
    %v1819 = vcvt.s32.f32 %v795
    %v1820 = vcvt.s32.f32 %v796
    %v1821 = vcvt.s32.f32 %v797
    %v1822 = vcvt.s32.f32 %v798
    %v1823 = vcvt.s32.f32 %v799
    %v1824 = vcvt.s32.f32 %v800
    %v1825 = vcvt.s32.f32 %v801
    %v1826 = vcvt.s32.f32 %v802
    %v1827 = vcvt.s32.f32 %v803
    %v1828 = vcvt.s32.f32 %v804
    %v1829 = vcvt.s32.f32 %v805
    %v1830 = vcvt.s32.f32 %v806
    %v1831 = vcvt.s32.f32 %v807
    %v1832 = vcvt.s32.f32 %v808
    %v1833 = vcvt.s32.f32 %v809
    %v1834 = vcvt.s32.f32 %v810
    %v1835 = vcvt.s32.f32 %v811
    %v1836 = vcvt.s32.f32 %v812
    %v1837 = vcvt.s32.f32 %v813
    %v1838 = vcvt.s32.f32 %v814
    %v1839 = vcvt.s32.f32 %v815
    %v1840 = vcvt.s32.f32 %v816
    %v1841 = vcvt.s32.f32 %v817
    %v1842 = vcvt.s32.f32 %v818
    %v1843 = vcvt.s32.f32 %v819
    %v1844 = vcvt.s32.f32 %v820
    %v1845 = vcvt.s32.f32 %v821
    %v1846 = vcvt.s32.f32 %v822
    %v1847 = vcvt.s32.f32 %v823
    %v1848 = vcvt.s32.f32 %v824
    %v1849 = vcvt.s32.f32 %v825
    %v1850 = vcvt.s32.f32 %v826
    %v1851 = vcvt.s32.f32 %v827
    %v1852 = vcvt.s32.f32 %v828
    %v1853 = vcvt.s32.f32 %v829
    %v1854 = vcvt.s32.f32 %v830
    %v1855 = vcvt.s32.f32 %v831
    %v1856 = vcvt.s32.f32 %v832
    %v1857 = vcvt.s32.f32 %v833
    %v1858 = vcvt.s32.f32 %v834
    %v1859 = vcvt.s32.f32 %v835
    %v1860 = vcvt.s32.f32 %v836
    %v1861 = vcvt.s32.f32 %v837
    %v1862 = vcvt.s32.f32 %v838
    %v1863 = vcvt.s32.f32 %v839
    %v1864 = vcvt.s32.f32 %v840
    %v1865 = vcvt.s32.f32 %v841
    %v1866 = vcvt.s32.f32 %v842
    %v1867 = vcvt.s32.f32 %v843
    %v1868 = vcvt.s32.f32 %v844
    %v1869 = vcvt.s32.f32 %v845
    %v1870 = vcvt.s32.f32 %v846
    %v1871 = vcvt.s32.f32 %v847
    %v1872 = vcvt.s32.f32 %v848
    %v1873 = vcvt.s32.f32 %v849
    %v1874 = vcvt.s32.f32 %v850
    %v1875 = vcvt.s32.f32 %v851
    %v1876 = vcvt.s32.f32 %v852
    %v1877 = vcvt.s32.f32 %v853
    %v1878 = vcvt.s32.f32 %v854
    %v1879 = vcvt.s32.f32 %v855
    %v1880 = vcvt.s32.f32 %v856
    %v1881 = vcvt.s32.f32 %v857
    %v1882 = vcvt.s32.f32 %v858
    %v1883 = vcvt.s32.f32 %v859
    %v1884 = vcvt.s32.f32 %v860
    %v1885 = vcvt.s32.f32 %v861
    %v1886 = vcvt.s32.f32 %v862
    %v1887 = vcvt.s32.f32 %v863
    %v1888 = vcvt.s32.f32 %v864
    %v1889 = vcvt.s32.f32 %v865
    %v1890 = vcvt.s32.f32 %v866
    %v1891 = vcvt.s32.f32 %v867
    %v1892 = vcvt.s32.f32 %v868
    %v1893 = vcvt.s32.f32 %v869
    %v1894 = vcvt.s32.f32 %v870
    %v1895 = vcvt.s32.f32 %v871
    %v1896 = vcvt.s32.f32 %v872
    %v1897 = vcvt.s32.f32 %v873
    %v1898 = vcvt.s32.f32 %v874
    %v1899 = vcvt.s32.f32 %v875
    %v1900 = vcvt.s32.f32 %v876
    %v1901 = vcvt.s32.f32 %v877
    %v1902 = vcvt.s32.f32 %v878
    %v1903 = vcvt.s32.f32 %v879
    %v1904 = vcvt.s32.f32 %v880
    %v1905 = vcvt.s32.f32 %v881
    %v1906 = vcvt.s32.f32 %v882
    %v1907 = vcvt.s32.f32 %v883
    %v1908 = vcvt.s32.f32 %v884
    %v1909 = vcvt.s32.f32 %v885
    %v1910 = vcvt.s32.f32 %v886
    %v1911 = vcvt.s32.f32 %v887
    %v1912 = vcvt.s32.f32 %v888
    %v1913 = vcvt.s32.f32 %v889
    %v1914 = vcvt.s32.f32 %v890
    %v1915 = vcvt.s32.f32 %v891
    %v1916 = vcvt.s32.f32 %v892
    %v1917 = vcvt.s32.f32 %v893
    %v1918 = vcvt.s32.f32 %v894
    %v1919 = vcvt.s32.f32 %v895
    %v1920 = vcvt.s32.f32 %v896
    %v1921 = vcvt.s32.f32 %v897
    %v1922 = vcvt.s32.f32 %v898
    %v1923 = vcvt.s32.f32 %v899
    %v1924 = vcvt.s32.f32 %v900
    %v1925 = vcvt.s32.f32 %v901
    %v1926 = vcvt.s32.f32 %v902
    %v1927 = vcvt.s32.f32 %v903
    %v1928 = vcvt.s32.f32 %v904
    %v1929 = vcvt.s32.f32 %v905
    %v1930 = vcvt.s32.f32 %v906
    %v1931 = vcvt.s32.f32 %v907
    %v1932 = vcvt.s32.f32 %v908
    %v1933 = vcvt.s32.f32 %v909
    %v1934 = vcvt.s32.f32 %v910
    %v1935 = vcvt.s32.f32 %v911
    %v1936 = vcvt.s32.f32 %v912
    %v1937 = vcvt.s32.f32 %v913
    %v1938 = vcvt.s32.f32 %v914
    %v1939 = vcvt.s32.f32 %v915
    %v1940 = vcvt.s32.f32 %v916
    %v1941 = vcvt.s32.f32 %v917
    %v1942 = vcvt.s32.f32 %v918
    %v1943 = vcvt.s32.f32 %v919
    %v1944 = vcvt.s32.f32 %v920
    %v1945 = vcvt.s32.f32 %v921
    %v1946 = vcvt.s32.f32 %v922
    %v1947 = vcvt.s32.f32 %v923
    %v1948 = vcvt.s32.f32 %v924
    %v1949 = vcvt.s32.f32 %v925
    %v1950 = vcvt.s32.f32 %v926
    %v1951 = vcvt.s32.f32 %v927
    %v1952 = vcvt.s32.f32 %v928
    %v1953 = vcvt.s32.f32 %v929
    %v1954 = vcvt.s32.f32 %v930
    %v1955 = vcvt.s32.f32 %v931
    %v1956 = vcvt.s32.f32 %v932
    %v1957 = vcvt.s32.f32 %v933
    %v1958 = vcvt.s32.f32 %v934
    %v1959 = vcvt.s32.f32 %v935
    %v1960 = vcvt.s32.f32 %v936
    %v1961 = vcvt.s32.f32 %v937
    %v1962 = vcvt.s32.f32 %v938
    %v1963 = vcvt.s32.f32 %v939
    %v1964 = vcvt.s32.f32 %v940
    %v1965 = vcvt.s32.f32 %v941
    %v1966 = vcvt.s32.f32 %v942
    %v1967 = vcvt.s32.f32 %v943
    %v1968 = vcvt.s32.f32 %v944
    %v1969 = vcvt.s32.f32 %v945
    %v1970 = vcvt.s32.f32 %v946
    %v1971 = vcvt.s32.f32 %v947
    %v1972 = vcvt.s32.f32 %v948
    %v1973 = vcvt.s32.f32 %v949
    %v1974 = vcvt.s32.f32 %v950
    %v1975 = vcvt.s32.f32 %v951
    %v1976 = vcvt.s32.f32 %v952
    %v1977 = vcvt.s32.f32 %v953
    %v1978 = vcvt.s32.f32 %v954
    %v1979 = vcvt.s32.f32 %v955
    %v1980 = vcvt.s32.f32 %v956
    %v1981 = vcvt.s32.f32 %v957
    %v1982 = vcvt.s32.f32 %v958
    %v1983 = vcvt.s32.f32 %v959
    %v1984 = vcvt.s32.f32 %v960
    %v1985 = vcvt.s32.f32 %v961
    %v1986 = vcvt.s32.f32 %v962
    %v1987 = vcvt.s32.f32 %v963
    %v1988 = vcvt.s32.f32 %v964
    %v1989 = vcvt.s32.f32 %v965
    %v1990 = vcvt.s32.f32 %v966
    %v1991 = vcvt.s32.f32 %v967
    %v1992 = vcvt.s32.f32 %v968
    %v1993 = vcvt.s32.f32 %v969
    %v1994 = vcvt.s32.f32 %v970
    %v1995 = vcvt.s32.f32 %v971
    %v1996 = vcvt.s32.f32 %v972
    %v1997 = vcvt.s32.f32 %v973
    %v1998 = vcvt.s32.f32 %v974
    %v1999 = vcvt.s32.f32 %v975
    %v2000 = vcvt.s32.f32 %v976
    %v2001 = vcvt.s32.f32 %v977
    %v2002 = vcvt.s32.f32 %v978
    %v2003 = vcvt.s32.f32 %v979
    %v2004 = vcvt.s32.f32 %v980
    %v2005 = vcvt.s32.f32 %v981
    %v2006 = vcvt.s32.f32 %v982
    %v2007 = vcvt.s32.f32 %v983
    %v2008 = vcvt.s32.f32 %v984
    %v2009 = vcvt.s32.f32 %v985
    %v2010 = vcvt.s32.f32 %v986
    %v2011 = vcvt.s32.f32 %v987
    %v2012 = vcvt.s32.f32 %v988
    %v2013 = vcvt.s32.f32 %v989
    %v2014 = vcvt.s32.f32 %v990
    %v2015 = vcvt.s32.f32 %v991
    %v2016 = vcvt.s32.f32 %v992
    %v2017 = vcvt.s32.f32 %v993
    %v2018 = vcvt.s32.f32 %v994
    %v2019 = vcvt.s32.f32 %v995
    %v2020 = vcvt.s32.f32 %v996
    %v2021 = vcvt.s32.f32 %v997
    %v2022 = vcvt.s32.f32 %v998
    %v2023 = vcvt.s32.f32 %v999
    %v2024 = vcvt.s32.f32 %v1000
    %v2025 = vcvt.s32.f32 %v1001
    %v2026 = vcvt.s32.f32 %v1002
    %v2027 = vcvt.s32.f32 %v1003
    %v2028 = vcvt.s32.f32 %v1004
    %v2029 = vcvt.s32.f32 %v1005
    %v2030 = vcvt.s32.f32 %v1006
    %v2031 = vcvt.s32.f32 %v1007
    %v2032 = vcvt.s32.f32 %v1008
    %v2033 = vcvt.s32.f32 %v1009
    %v2034 = vcvt.s32.f32 %v1010
    %v2035 = vcvt.s32.f32 %v1011
    %v2036 = vcvt.s32.f32 %v1012
    %v2037 = vcvt.s32.f32 %v1013
    %v2038 = vcvt.s32.f32 %v1014
    %v2039 = vcvt.s32.f32 %v1015
    %v2040 = vcvt.s32.f32 %v1016
    %v2041 = vcvt.s32.f32 %v1017
    %v2042 = vcvt.s32.f32 %v1018
    %v2043 = vcvt.s32.f32 %v1019
    %v2044 = vcvt.s32.f32 %v1020
    %v2045 = vcvt.s32.f32 %v1021
    %v2046 = vcvt.s32.f32 %v1022
    %v2047 = vcvt.s32.f32 %v1023
    %v2048 = vcvt.s32.f32 %v1024
    %v2049 = vcvt.s32.f32 %v1025
    %v2050 = vcvt.s32.f32 %v1026
    %v2051 = vcvt.s32.f32 %v1027
    %v2052 = vcvt.s32.f32 %v1028
    %v2053 = vcvt.s32.f32 %v1029
    %v2054 = vcvt.s32.f32 %v1030
    %v2055 = vcvt.s32.f32 %v1031
    %v2056 = vcvt.s32.f32 %v1032
    %v2057 = vcvt.s32.f32 %v1033
    %v2058 = vcvt.s32.f32 %v1034
    %v2059 = vcvt.s32.f32 %v1035
    %v2060 = vcvt.s32.f32 %v1036
    %v2061 = vcvt.s32.f32 %v1037
    %v2062 = vcvt.s32.f32 %v1038
    %v2063 = vcvt.s32.f32 %v1039
    %v2064 = vcvt.s32.f32 %v1040
    %v2065 = vcvt.s32.f32 %v1041
    %v2066 = vcvt.s32.f32 %v1042
    %v2067 = vcvt.s32.f32 %v1043
    %v2068 = vcvt.s32.f32 %v1044
    %v2069 = vcvt.s32.f32 %v1045
    %v2070 = vcvt.s32.f32 %v1046
    %v2071 = vcvt.s32.f32 %v1047
    %v2072 = vcvt.s32.f32 %v1048
    %v2073 = vcvt.s32.f32 %v1049
    %v2074 = vcvt.s32.f32 %v1050
    %v2075 = vcvt.s32.f32 %v1051
    %v2076 = vcvt.s32.f32 %v1052
    %v2077 = vcvt.s32.f32 %v1053
    %v2078 = vcvt.s32.f32 %v1054
    %v2079 = vcvt.s32.f32 %v1055
    %v2080 = vcvt.s32.f32 %v1056
    %v2081 = vcvt.s32.f32 %v1057
    %v2082 = vcvt.s32.f32 %v1058
    %v2083 = vcvt.s32.f32 %v1059
    %v2084 = vcvt.s32.f32 %v1060
    %v2085 = vcvt.s32.f32 %v1061
    %v2086 = vcvt.s32.f32 %v1062
    %v2087 = vcvt.s32.f32 %v1063
    %v2088 = vcvt.s32.f32 %v1064
    %v2089 = vcvt.s32.f32 %v1065
    %v2090 = vcvt.s32.f32 %v1066
    %v2091 = vcvt.s32.f32 %v1067
    %v2092 = vcvt.s32.f32 %v1068
    %v2093 = vcvt.s32.f32 %v1069
    %v2094 = vcvt.s32.f32 %v1070
    %v2095 = vcvt.s32.f32 %v1071
    %v2096 = vcvt.s32.f32 %v1072
    %v2097 = vcvt.s32.f32 %v1073
    %v2098 = vcvt.s32.f32 %v1074
    %v2099 = vcvt.s32.f32 %v1075
    %v2100 = vcvt.s32.f32 %v1076
    %v2101 = vcvt.s32.f32 %v1077
    %v2102 = vcvt.s32.f32 %v1078
    %v2103 = vcvt.s32.f32 %v1079
    %v2104 = vcvt.s32.f32 %v1080
    %v2105 = vcvt.s32.f32 %v1081
    %v2106 = vcvt.s32.f32 %v1082
    %v2107 = vcvt.s32.f32 %v1083
    %v2108 = vcvt.s32.f32 %v1084
    %v2109 = vcvt.s32.f32 %v1085
    %v2110 = vcvt.s32.f32 %v1086
    %v2111 = vcvt.s32.f32 %v1087
    %v2112 = vcvt.s32.f32 %v1088
    %v2113 = vcvt.s32.f32 %v1089
    %v2114 = vcvt.s32.f32 %v1090
    %v2115 = vcvt.s32.f32 %v1091
    %v2116 = vcvt.s32.f32 %v1092
    %v2117 = vcvt.s32.f32 %v1093
    %v2118 = vcvt.s32.f32 %v1094
    %v2119 = vcvt.s32.f32 %v1095
    %v2120 = vcvt.s32.f32 %v1096
    %v2121 = vcvt.s32.f32 %v1097
    %v2122 = vcvt.s32.f32 %v1098
    %v2123 = vcvt.s32.f32 %v1099
    %v2124 = vcvt.s32.f32 %v1100
    %v2125 = vcvt.s32.f32 %v1101
    %v2126 = vcvt.s32.f32 %v1102
    %v2127 = vcvt.s32.f32 %v1103
    %v2128 = vcvt.s32.f32 %v1104
    %v2129 = vcvt.s32.f32 %v1105
    %v2130 = vcvt.s32.f32 %v1106
    %v2131 = vcvt.s32.f32 %v1107
    %v2132 = vcvt.s32.f32 %v1108
    %v2133 = vcvt.s32.f32 %v1109
    %v2134 = vcvt.s32.f32 %v1110
    %v2135 = vcvt.s32.f32 %v1111
    %v2136 = vcvt.s32.f32 %v1112
    %v2137 = vcvt.s32.f32 %v1113
    %v2138 = vcvt.s32.f32 %v1114
    %v2139 = vcvt.s32.f32 %v1115
    %v2140 = vcvt.s32.f32 %v1116
    %v2141 = vcvt.s32.f32 %v1117
    %v2142 = vcvt.s32.f32 %v1118
    %v2143 = vcvt.s32.f32 %v1119
    %v2144 = vcvt.s32.f32 %v1120
    %v2145 = vcvt.s32.f32 %v1121
    %v2146 = vcvt.s32.f32 %v1122
    %v2147 = vcvt.s32.f32 %v1123
    %v2148 = vcvt.s32.f32 %v1124
    %v2149 = vcvt.s32.f32 %v1125
    %v2150 = vcvt.s32.f32 %v1126
    %v2151 = vcvt.s32.f32 %v1127
    %v2152 = vcvt.s32.f32 %v1128
    %v2153 = vcvt.s32.f32 %v1129
    %v2154 = vcvt.s32.f32 %v1130
    %v2155 = vcvt.s32.f32 %v1131
    %v2156 = vcvt.s32.f32 %v1132
    %v2157 = vcvt.s32.f32 %v1133
    %v2158 = vcvt.s32.f32 %v1134
    %v2159 = vcvt.s32.f32 %v1135
    %v2160 = vcvt.s32.f32 %v1136
    %v2161 = vcvt.s32.f32 %v1137
    %v2162 = vcvt.s32.f32 %v1138
    %v2163 = vcvt.s32.f32 %v1139
    %v2164 = vcvt.s32.f32 %v1140
    %v2165 = vcvt.s32.f32 %v1141
    %v2166 = vcvt.s32.f32 %v1142
    %v2167 = vcvt.s32.f32 %v1143
    %v2168 = vcvt.s32.f32 %v1144
    %v2169 = vcvt.s32.f32 %v1145
    %v2170 = vcvt.s32.f32 %v1146
    %v2171 = vcvt.s32.f32 %v1147
    %v2172 = vcvt.s32.f32 %v1148
    %v2173 = vcvt.s32.f32 %v1149
    %v2174 = vcvt.s32.f32 %v1150
    %v2175 = vcvt.s32.f32 %v1151
    %v2176 = vcvt.s32.f32 %v1152
    %v2177 = vcvt.s32.f32 %v1153
    %v2178 = vcvt.s32.f32 %v1154
    %v2179 = vcvt.s32.f32 %v1155
    %v2180 = vcvt.s32.f32 %v1156
    %v2181 = vcvt.s32.f32 %v1157
    %v2182 = vcvt.s32.f32 %v1158
    %v2183 = vcvt.s32.f32 %v1159
    %v2184 = vcvt.s32.f32 %v1160
    %v2185 = vcvt.s32.f32 %v1161
    %v2186 = vcvt.s32.f32 %v1162
    %v2187 = vcvt.s32.f32 %v1163
    %v2188 = vcvt.s32.f32 %v1164
    %v2189 = vcvt.s32.f32 %v1165
    %v2190 = vcvt.s32.f32 %v1166
    %v2191 = vcvt.s32.f32 %v1167
    %v2192 = vcvt.s32.f32 %v1168
    %v2193 = vcvt.s32.f32 %v1169
    %v2194 = vcvt.s32.f32 %v1170
    %v2195 = vcvt.s32.f32 %v1171
    %v2196 = vcvt.s32.f32 %v1172
    %v2197 = vcvt.s32.f32 %v1173
    %v2198 = vcvt.s32.f32 %v1174
    %v2199 = vcvt.s32.f32 %v1175
    %v2200 = vcvt.s32.f32 %v1176
    %v2201 = vcvt.s32.f32 %v1177
    %v2202 = vcvt.s32.f32 %v1178
    %v2203 = vcvt.s32.f32 %v1179
    %v2204 = vcvt.s32.f32 %v1180
    %v2205 = vcvt.s32.f32 %v1181
    %v2206 = vcvt.s32.f32 %v1182
    %v2207 = vcvt.s32.f32 %v1183
    %v2208 = vcvt.s32.f32 %v1184
    %v2209 = vcvt.s32.f32 %v1185
    %v2210 = vcvt.s32.f32 %v1186
    %v2211 = vcvt.s32.f32 %v1187
    %v2212 = vcvt.s32.f32 %v1188
    %v2213 = vcvt.s32.f32 %v1189
    %v2214 = vcvt.s32.f32 %v1190
    %v2215 = vcvt.s32.f32 %v1191
    %v2216 = vcvt.s32.f32 %v1192
    %v2217 = vcvt.s32.f32 %v1193
    %v2218 = vcvt.s32.f32 %v1194
    %v2219 = vcvt.s32.f32 %v1195
    %v2220 = vcvt.s32.f32 %v1196
    %v2221 = vcvt.s32.f32 %v1197
    %v2222 = vcvt.s32.f32 %v1198
    %v2223 = vcvt.s32.f32 %v1199
    %v2224 = vcvt.s32.f32 %v1200
    %v2225 = vcvt.s32.f32 %v1201
    %v2226 = vcvt.s32.f32 %v1202
    %v2227 = vcvt.s32.f32 %v1203
    %v2228 = vcvt.s32.f32 %v1204
    %v2229 = vcvt.s32.f32 %v1205
    %v2230 = vcvt.s32.f32 %v1206
    %v2231 = vcvt.s32.f32 %v1207
    %v2232 = vcvt.s32.f32 %v1208
    %v2233 = vcvt.s32.f32 %v1209
    %v2234 = vcvt.s32.f32 %v1210
    %v2235 = vcvt.s32.f32 %v1211
    %v2236 = vcvt.s32.f32 %v1212
    %v2237 = vcvt.s32.f32 %v1213
    %v2238 = vcvt.s32.f32 %v1214
    %v2239 = vcvt.s32.f32 %v1215
    %v2240 = vcvt.s32.f32 %v1216
    %v2241 = vcvt.s32.f32 %v1217
    %v2242 = vcvt.s32.f32 %v1218
    %v2243 = vcvt.s32.f32 %v1219
    %v2244 = vcvt.s32.f32 %v1220
    %v2245 = vcvt.s32.f32 %v1221
    %v2246 = vcvt.s32.f32 %v1222
    %v2247 = vcvt.s32.f32 %v1223
    %v2248 = vcvt.s32.f32 %v1224
    %v2249 = vcvt.s32.f32 %v1225
    %v2250 = vcvt.s32.f32 %v1226
    %v2251 = vcvt.s32.f32 %v1227
    %v2252 = vcvt.s32.f32 %v1228
    %v2253 = vcvt.s32.f32 %v1229
    %v2254 = vcvt.s32.f32 %v1230
    %v2255 = vcvt.s32.f32 %v1231
    %v2256 = vcvt.s32.f32 %v1232
    %v2257 = vcvt.s32.f32 %v1233
    %v2258 = vcvt.s32.f32 %v1234
    %v2259 = vcvt.s32.f32 %v1235
    %v2260 = vcvt.s32.f32 %v1236
    %v2261 = vcvt.s32.f32 %v1237
    %v2262 = vcvt.s32.f32 %v1238
    %v2263 = vcvt.s32.f32 %v1239
    %v2264 = vcvt.s32.f32 %v1240
    %v2265 = vcvt.s32.f32 %v1241
    %v2266 = vcvt.s32.f32 %v1242
    %v2267 = vcvt.s32.f32 %v1243
    %v2268 = vcvt.s32.f32 %v1244
    %v2269 = vcvt.s32.f32 %v1245
    %v2270 = vcvt.s32.f32 %v1246
    %v2271 = vcvt.s32.f32 %v1247
    %v2272 = vcvt.s32.f32 %v1248
    %v2273 = vcvt.s32.f32 %v1249
    %v2274 = vcvt.s32.f32 %v1250
    %v2275 = vcvt.s32.f32 %v1251
    %v2276 = vcvt.s32.f32 %v1252
    %v2277 = vcvt.s32.f32 %v1253
    %v2278 = vcvt.s32.f32 %v1254
    %v2279 = vcvt.s32.f32 %v1255
    %v2280 = vcvt.s32.f32 %v1256
    %v2281 = vcvt.s32.f32 %v1257
    %v2282 = vcvt.s32.f32 %v1258
    %v2283 = vcvt.s32.f32 %v1259
    %v2284 = vcvt.s32.f32 %v1260
    %v2285 = vcvt.s32.f32 %v1261
    %v2286 = vcvt.s32.f32 %v1262
    %v2287 = vcvt.s32.f32 %v1263
    %v2288 = vcvt.s32.f32 %v1264
    %v2289 = vcvt.s32.f32 %v1265
    %v2290 = vcvt.s32.f32 %v1266
    %v2291 = vcvt.s32.f32 %v1267
    %v2292 = vcvt.s32.f32 %v1268
    %v2293 = vcvt.s32.f32 %v1269
    %v2294 = vcvt.s32.f32 %v1270
    %v2295 = vcvt.s32.f32 %v1271
    %v2296 = vcvt.s32.f32 %v1272
    %v2297 = vcvt.s32.f32 %v1273
    %v2298 = vcvt.s32.f32 %v1274
    %v2299 = vcvt.s32.f32 %v1275
    %v2300 = vcvt.s32.f32 %v1276
    %v2301 = vcvt.s32.f32 %v1277
    %v2302 = vcvt.s32.f32 %v1278
    %v2303 = vcvt.s32.f32 %v1279
    %v2304 = vcvt.s32.f32 %v1280
    %v2305 = vcvt.s32.f32 %v1281
    %v2306 = vcvt.s32.f32 %v1282
    %v2307 = vcvt.s32.f32 %v1283
    %v2308 = vcvt.s32.f32 %v1284
    %v2309 = vcvt.s32.f32 %v1285
    %v2310 = vcvt.s32.f32 %v1286
    %v2311 = vcvt.s32.f32 %v1287
    %v2312 = vcvt.s32.f32 %v1288
    %v2313 = vcvt.s32.f32 %v1289
    %v2314 = vcvt.s32.f32 %v1290
    %v2315 = vcvt.s32.f32 %v1291
    %v2316 = vcvt.s32.f32 %v1292
    %v2317 = vcvt.s32.f32 %v1293
    %v2318 = vcvt.s32.f32 %v1294
    %v2319 = vcvt.s32.f32 %v1295
    %v2320 = vcvt.s32.f32 %v1296
    %v2321 = vcvt.s32.f32 %v1297
    %v2322 = vcvt.s32.f32 %v1298
    %v2323 = vcvt.s32.f32 %v1299
    %v2324 = vcvt.s32.f32 %v1300
    %v2325 = vcvt.s32.f32 %v1301
    %v2326 = vcvt.s32.f32 %v1302
    %v2327 = vcvt.s32.f32 %v1303
    %v2328 = vcvt.s32.f32 %v1304
    %v2329 = vcvt.s32.f32 %v1305
    %v2330 = vcvt.s32.f32 %v1306
    %v2331 = vcvt.s32.f32 %v1307
    %v2332 = vcvt.s32.f32 %v1308
    %v2333 = vcvt.s32.f32 %v1309
    %v2334 = vcvt.s32.f32 %v1310
    %v2335 = vcvt.s32.f32 %v1311
    %v2336 = vcvt.s32.f32 %v1312
    %v2337 = vcvt.s32.f32 %v1313
    %v2338 = vcvt.s32.f32 %v1314
    %v2339 = vcvt.s32.f32 %v1315
    %v2340 = vcvt.s32.f32 %v1316
    %v2341 = vcvt.s32.f32 %v1317
    %v2342 = vcvt.s32.f32 %v1318
    %v2343 = vcvt.s32.f32 %v1319
    %v2344 = vcvt.s32.f32 %v1320
    %v2345 = vcvt.s32.f32 %v1321
    %v2346 = vcvt.s32.f32 %v1322
    %v2347 = vcvt.s32.f32 %v1323
    %v2348 = vcvt.s32.f32 %v1324
    %v2349 = vcvt.s32.f32 %v1325
    %v2350 = vcvt.s32.f32 %v1326
    %v2351 = vcvt.s32.f32 %v1327
    %v2352 = vcvt.s32.f32 %v1328
    %v2353 = vcvt.s32.f32 %v1329
    %v2354 = vcvt.s32.f32 %v1330
    %v2355 = vcvt.s32.f32 %v1331
    %v2356 = vcvt.s32.f32 %v1332
    %v2357 = vcvt.s32.f32 %v1333
    %v2358 = vcvt.s32.f32 %v1334
    %v2359 = vcvt.s32.f32 %v1335
    %v2360 = vcvt.s32.f32 %v1336
    %v2361 = vcvt.s32.f32 %v1337
    %v2362 = vcvt.s32.f32 %v1338
    %v2363 = vcvt.s32.f32 %v1339
    %v2364 = vcvt.s32.f32 %v1340
    %v2365 = vcvt.s32.f32 %v1341
    %v2366 = vcvt.s32.f32 %v1342
    %v2367 = vcvt.s32.f32 %v1343
    %v2368 = vcvt.s32.f32 %v1344
    %v2369 = vcvt.s32.f32 %v1345
    %v2370 = vcvt.s32.f32 %v1346
    %v2371 = vcvt.s32.f32 %v1347
    %v2372 = vcvt.s32.f32 %v1348
    %v2373 = vcvt.s32.f32 %v1349
    %v2374 = vcvt.s32.f32 %v1350
    %v2375 = vcvt.s32.f32 %v1351
    %v2376 = vcvt.s32.f32 %v1352
    %v2377 = vcvt.s32.f32 %v1353
    %v2378 = vcvt.s32.f32 %v1354
    %v2379 = vcvt.s32.f32 %v1355
    %v2380 = vcvt.s32.f32 %v1356
    %v2381 = vcvt.s32.f32 %v1357
    %v2382 = vcvt.s32.f32 %v1358
    %v2383 = vcvt.s32.f32 %v1359
    %v2384 = vcvt.s32.f32 %v1360
    %v2385 = vcvt.s32.f32 %v1361
    %v2386 = vcvt.s32.f32 %v1362
    %v2387 = vcvt.s32.f32 %v1363
    %v2388 = vcvt.s32.f32 %v1364
    %v2389 = vcvt.s32.f32 %v1365
    %v2390 = vcvt.s32.f32 %v1366
    %v2391 = vcvt.s32.f32 %v1367
    %v2392 = vcvt.s32.f32 %v1368
    %v2393 = vcvt.s32.f32 %v1369
    %v2394 = vcvt.s32.f32 %v1370
    %v2395 = vcvt.s32.f32 %v1371
    %v2396 = vcvt.s32.f32 %v1372
    %v2397 = vcvt.s32.f32 %v1373
    %v2398 = vcvt.s32.f32 %v1374
    %v2399 = vcvt.s32.f32 %v1375
    %v2400 = vcvt.s32.f32 %v1376
    %v2401 = vcvt.s32.f32 %v1377
    %v2402 = vcvt.s32.f32 %v1378
    %v2403 = vcvt.s32.f32 %v1379
    %v2404 = vcvt.s32.f32 %v1380
    %v2405 = vcvt.s32.f32 %v1381
    %v2406 = vcvt.s32.f32 %v1382
    %v2407 = vcvt.s32.f32 %v1383
    %v2408 = vcvt.s32.f32 %v1384
    %v2409 = vcvt.s32.f32 %v1385
    %v2410 = vcvt.s32.f32 %v1386
    %v2411 = vcvt.s32.f32 %v1387
    %v2412 = vcvt.s32.f32 %v1388
    %v2413 = vcvt.s32.f32 %v1389
    %v2414 = vcvt.s32.f32 %v1390
    %v2415 = vcvt.s32.f32 %v1391
    %v2416 = vcvt.s32.f32 %v1392
    %v2417 = vcvt.s32.f32 %v1393
    %v2418 = vcvt.s32.f32 %v1394
    %v2419 = vcvt.s32.f32 %v1395
    %v2420 = vcvt.s32.f32 %v1396
    %v2421 = vcvt.s32.f32 %v1397
    %v2422 = vcvt.s32.f32 %v1398
    %v2423 = vcvt.s32.f32 %v1399
    %v2424 = vcvt.s32.f32 %v1400
    %v2425 = vcvt.s32.f32 %v1401
    %v2426 = vcvt.s32.f32 %v1402
    %v2427 = vcvt.s32.f32 %v1403
    %v2428 = vcvt.s32.f32 %v1404
    %v2429 = vcvt.s32.f32 %v1405
    %v2430 = vcvt.s32.f32 %v1406
    %v2431 = vcvt.s32.f32 %v1407
    %v2432 = vcvt.s32.f32 %v1408
    %v2433 = vcvt.s32.f32 %v1409
    %v2434 = vcvt.s32.f32 %v1410
    %v2435 = vcvt.s32.f32 %v1411
    %v2436 = vcvt.s32.f32 %v1412
    %v2437 = vcvt.s32.f32 %v1413
    %v2438 = vcvt.s32.f32 %v1414
    %v2439 = vcvt.s32.f32 %v1415
    %v2440 = vcvt.s32.f32 %v1416
    %v2441 = vcvt.s32.f32 %v1417
    %v2442 = vcvt.s32.f32 %v1418
    %v2443 = vcvt.s32.f32 %v1419
    %v2444 = vcvt.s32.f32 %v1420
    %v2445 = vcvt.s32.f32 %v1421
    %v2446 = vcvt.s32.f32 %v1422
    %v2447 = vcvt.s32.f32 %v1423
    %v2448 = vcvt.s32.f32 %v1424
    %v2449 = vcvt.s32.f32 %v1425
    %v2450 = vcvt.s32.f32 %v1426
    %v2451 = vcvt.s32.f32 %v1427
    %v2452 = vcvt.s32.f32 %v1428
    %v2453 = vcvt.s32.f32 %v1429
    %v2454 = vcvt.s32.f32 %v1430
    %v2455 = vcvt.s32.f32 %v1431
    %v2456 = vcvt.s32.f32 %v1432
    %v2457 = vcvt.s32.f32 %v1433
    %v2458 = vcvt.s32.f32 %v1434
    %v2459 = vcvt.s32.f32 %v1435
    %v2460 = vcvt.s32.f32 %v1436
    %v2461 = vcvt.s32.f32 %v1437
    %v2462 = vcvt.s32.f32 %v1438
    %v2463 = vcvt.s32.f32 %v1439
    %v2464 = vcvt.s32.f32 %v1440
    %v2465 = vcvt.s32.f32 %v1441
    %v2466 = vcvt.s32.f32 %v1442
    %v2467 = vcvt.s32.f32 %v1443
    %v2468 = vcvt.s32.f32 %v1444
    %v2469 = vcvt.s32.f32 %v1445
    %v2470 = vcvt.s32.f32 %v1446
    %v2471 = vcvt.s32.f32 %v1447
    %v2472 = vcvt.s32.f32 %v1448
    %v2473 = vcvt.s32.f32 %v1449
    %v2474 = vcvt.s32.f32 %v1450
    %v2475 = vcvt.s32.f32 %v1451
    %v2476 = vcvt.s32.f32 %v1452
    %v2477 = vcvt.s32.f32 %v1453
    %v2478 = vcvt.s32.f32 %v1454
    %v2479 = vcvt.s32.f32 %v1455
    %v2480 = vcvt.s32.f32 %v1456
    %v2481 = vcvt.s32.f32 %v1457
    %v2482 = vcvt.s32.f32 %v1458
    %v2483 = vcvt.s32.f32 %v1459
    %v2484 = vcvt.s32.f32 %v1460
    %v2485 = vcvt.s32.f32 %v1461
    %v2486 = vcvt.s32.f32 %v1462
    %v2487 = vcvt.s32.f32 %v1463
    %v2488 = vcvt.s32.f32 %v1464
    %v2489 = vcvt.s32.f32 %v1465
    %v2490 = vcvt.s32.f32 %v1466
    %v2491 = vcvt.s32.f32 %v1467
    %v2492 = vcvt.s32.f32 %v1468
    %v2493 = vcvt.s32.f32 %v1469
    %v2494 = vcvt.s32.f32 %v1470
    %v2495 = vcvt.s32.f32 %v1471
    %v2496 = vcvt.s32.f32 %v1472
    %v2497 = vcvt.s32.f32 %v1473
    %v2498 = vcvt.s32.f32 %v1474
    %v2499 = vcvt.s32.f32 %v1475
    %v2500 = vcvt.s32.f32 %v1476
    %v2501 = vcvt.s32.f32 %v1477
    %v2502 = vcvt.s32.f32 %v1478
    %v2503 = vcvt.s32.f32 %v1479
    %v2504 = vcvt.s32.f32 %v1480
    %v2505 = vcvt.s32.f32 %v1481
    %v2506 = vcvt.s32.f32 %v1482
    %v2507 = vcvt.s32.f32 %v1483
    %v2508 = vcvt.s32.f32 %v1484
    %v2509 = vcvt.s32.f32 %v1485
    %v2510 = vcvt.s32.f32 %v1486
    %v2511 = vcvt.s32.f32 %v1487
    %v2512 = vcvt.s32.f32 %v1488
    %v2513 = vcvt.s32.f32 %v1489
    %v2514 = vcvt.s32.f32 %v1490
    %v2515 = vcvt.s32.f32 %v1491
    %v2516 = vcvt.s32.f32 %v1492
    %v2517 = vcvt.s32.f32 %v1493
    %v2518 = vcvt.s32.f32 %v1494
    %v2519 = vcvt.s32.f32 %v1495
    %v2520 = vcvt.s32.f32 %v1496
    %v2521 = vcvt.s32.f32 %v1497
    %v2522 = vcvt.s32.f32 %v1498
    %v2523 = vcvt.s32.f32 %v1499
    %v2524 = vcvt.s32.f32 %v1500
    %v2525 = vcvt.s32.f32 %v1501
    %v2526 = vcvt.s32.f32 %v1502
    %v2527 = vcvt.s32.f32 %v1503
    %v2528 = vcvt.s32.f32 %v1504
    %v2529 = vcvt.s32.f32 %v1505
    %v2530 = vcvt.s32.f32 %v1506
    %v2531 = vcvt.s32.f32 %v1507
    %v2532 = vcvt.s32.f32 %v1508
    %v2533 = vcvt.s32.f32 %v1509
    %v2534 = vcvt.s32.f32 %v1510
    %v2535 = vcvt.s32.f32 %v1511
    %v2536 = vcvt.s32.f32 %v1512
    %v2537 = vcvt.s32.f32 %v1513
    %v2538 = vcvt.s32.f32 %v1514
    %v2539 = vcvt.s32.f32 %v1515
    %v2540 = vcvt.s32.f32 %v1516
    %v2541 = vcvt.s32.f32 %v1517
    %v2542 = vcvt.s32.f32 %v1518
    %v2543 = vcvt.s32.f32 %v1519
    %v2544 = vcvt.s32.f32 %v1520
    %v2545 = vcvt.s32.f32 %v1521
    %v2546 = vcvt.s32.f32 %v1522
    %v2547 = vcvt.s32.f32 %v1523
    %v2548 = vcvt.s32.f32 %v1524
    %v2549 = vcvt.s32.f32 %v1525
    %v2550 = vcvt.s32.f32 %v1526
    %v2551 = vcvt.s32.f32 %v1527
    %v2552 = vcvt.s32.f32 %v1528
    %v2553 = vcvt.s32.f32 %v1529
    %v2554 = vcvt.s32.f32 %v1530
    %v2555 = vcvt.s32.f32 %v1531
    %v2556 = vcvt.s32.f32 %v1532
    %v2557 = vcvt.s32.f32 %v1533
    %v2558 = vcvt.s32.f32 %v1534
    %v2559 = vcvt.s32.f32 %v1535
    %v2560 = vcvt.s32.f32 %v1536
    %v2561 = vcvt.s32.f32 %v1537
    %v2562 = vcvt.s32.f32 %v1538
    %v2563 = vcvt.s32.f32 %v1539
    %v2564 = vcvt.s32.f32 %v1540
    %v2565 = vcvt.s32.f32 %v1541
    %v2566 = vcvt.s32.f32 %v1542
    %v2567 = vcvt.s32.f32 %v1543
    %v2568 = vcvt.s32.f32 %v1544
    %v2569 = vcvt.s32.f32 %v1545
    %v2570 = vcvt.s32.f32 %v1546
    %v2571 = vcvt.s32.f32 %v1547
    %v2572 = vcvt.s32.f32 %v1548
    %v2573 = vcvt.s32.f32 %v1549
    %v2574 = vcvt.s32.f32 %v1550
    %v2575 = vcvt.s32.f32 %v1551
    %v2576 = vcvt.s32.f32 %v1552
    %v2577 = vcvt.s32.f32 %v1553
    %v2578 = vcvt.s32.f32 %v1554
    %v2579 = vcvt.s32.f32 %v1555
    %v2580 = vcvt.s32.f32 %v1556
    %v2581 = vcvt.s32.f32 %v1557
    %v2582 = vcvt.s32.f32 %v1558
    %v2583 = vcvt.s32.f32 %v1559
    %v2584 = vcvt.s32.f32 %v1560
    %v2585 = vcvt.s32.f32 %v1561
    %v2586 = vcvt.s32.f32 %v1562
    %v2587 = vcvt.s32.f32 %v1563
    %v2588 = vcvt.s32.f32 %v1564
    %v2589 = vcvt.s32.f32 %v1565
    %v2590 = vcvt.s32.f32 %v1566
    %v2591 = vcvt.s32.f32 %v1567
    %v2592 = vcvt.s32.f32 %v1568
    %v2593 = vcvt.s32.f32 %v1569
    %v2594 = vcvt.s32.f32 %v1570
    %v2595 = vcvt.s32.f32 %v1571
    %v2596 = vcvt.s32.f32 %v1572
    %v2597 = vcvt.s32.f32 %v1573
    %v2598 = vcvt.s32.f32 %v1574
    %v2599 = vcvt.s32.f32 %v1575
    %v2600 = vcvt.s32.f32 %v1576
    %v2601 = vcvt.s32.f32 %v1577
    %v2602 = vcvt.s32.f32 %v1578
    %v2603 = vcvt.s32.f32 %v1579
    %v2604 = vcvt.s32.f32 %v1580
    %v2605 = vcvt.s32.f32 %v1581
    %v2606 = vcvt.s32.f32 %v1582
    %v2607 = vcvt.s32.f32 %v1583
    %v2608 = vcvt.s32.f32 %v1584
    %v2609 = vcvt.s32.f32 %v1585
    %v2610 = vcvt.s32.f32 %v1586
    %v2611 = vcvt.s32.f32 %v1587
    %v2612 = vcvt.s32.f32 %v1588
    %v2613 = vcvt.s32.f32 %v1589
    %v2614 = vcvt.s32.f32 %v1590
    %v2615 = vcvt.s32.f32 %v1591
    %v2616 = vcvt.s32.f32 %v1592
    %v2617 = vcvt.s32.f32 %v1593
    %v2618 = vcvt.s32.f32 %v1594
    %v2619 = vcvt.s32.f32 %v1595
    %v2620 = vcvt.s32.f32 %v1596
    %v2621 = vcvt.s32.f32 %v1597
    %v2622 = vcvt.s32.f32 %v1598
    %v2623 = vcvt.s32.f32 %v1599
    %v2624 = vcvt.s32.f32 %v1600
    %v2625 = vcvt.s32.f32 %v1601
    %v2626 = vcvt.s32.f32 %v1602
    %v2627 = vcvt.s32.f32 %v1603
    %v2628 = vcvt.s32.f32 %v1604
    %v2629 = vcvt.s32.f32 %v1605
    %v2630 = vcvt.s32.f32 %v1606
    %v2631 = vcvt.s32.f32 %v1607
    %v2632 = vcvt.s32.f32 %v1608
    %v2633 = vcvt.s32.f32 %v1609
    %v2634 = vcvt.s32.f32 %v1610
    %v2635 = vcvt.s32.f32 %v1611
    %v2636 = vcvt.s32.f32 %v1612
    %v2637 = vcvt.s32.f32 %v1613
    %v2638 = vcvt.s32.f32 %v1614
    %v2639 = vcvt.s32.f32 %v1615
    %v2640 = vcvt.s32.f32 %v1616
    %v2641 = vcvt.s32.f32 %v1617
    %v2642 = vcvt.s32.f32 %v1618
    %v2643 = vcvt.s32.f32 %v1619
    %v2644 = vcvt.s32.f32 %v1620
    %v2645 = vcvt.s32.f32 %v1621
    %v2646 = vcvt.s32.f32 %v1622
    %v2647 = vcvt.s32.f32 %v1623
    %v2648 = vcvt.s32.f32 %v1624
    %v2649 = vcvt.s32.f32 %v1625
    %v2650 = vcvt.s32.f32 %v1626
    %v2651 = vcvt.s32.f32 %v1627
    %v2652 = vcvt.s32.f32 %v1628
    %v2653 = vcvt.s32.f32 %v1629
    %v2654 = vcvt.s32.f32 %v1630
    %v2655 = vcvt.s32.f32 %v1631
    %v2656 = vcvt.s32.f32 %v1632
    %v2657 = vcvt.s32.f32 %v1633
    %v2658 = vcvt.s32.f32 %v1634
    %v2659 = vcvt.s32.f32 %v1635
    %v2660 = vcvt.s32.f32 %v1636
    %v2661 = vcvt.s32.f32 %v1637
    %v2662 = vcvt.s32.f32 %v1638
    %v2663 = vcvt.s32.f32 %v1639
    %v2664 = vcvt.s32.f32 %v1640
    %v2665 = vcvt.s32.f32 %v1641
    %v2666 = vcvt.s32.f32 %v1642
    %v2667 = vcvt.s32.f32 %v1643
    %v2668 = vcvt.s32.f32 %v1644
    %v2669 = vcvt.s32.f32 %v1645
    %v2670 = vcvt.s32.f32 %v1646
    %v2671 = vcvt.s32.f32 %v1647
    %v2672 = vcvt.s32.f32 %v1648
    %v2673 = vcvt.s32.f32 %v1649
    %v2674 = vcvt.s32.f32 %v1650
    %v2675 = vcvt.s32.f32 %v1651
    %v2676 = vcvt.s32.f32 %v1652
    %v2677 = vcvt.s32.f32 %v1653
    %v2678 = vcvt.s32.f32 %v1654
    %v2679 = vcvt.s32.f32 %v1655
    %v2680 = vcvt.s32.f32 %v1656
    %v2681 = vcvt.s32.f32 %v1657
    %v2682 = vcvt.s32.f32 %v1658
    %v2683 = vcvt.s32.f32 %v1659
    %v2684 = vcvt.s32.f32 %v1660
    %v2685 = vcvt.s32.f32 %v1661
    %v2686 = vcvt.s32.f32 %v1662
    %v2687 = vcvt.s32.f32 %v1663
    %v2688 = vcvt.s32.f32 %v1664
    %v2689 = vcvt.s32.f32 %v1665
    %v2690 = vcvt.s32.f32 %v1666
    %v2691 = vcvt.s32.f32 %v1667
    %v2692 = vcvt.s32.f32 %v1668
    %v2693 = vcvt.s32.f32 %v1669
    %v2694 = vcvt.s32.f32 %v1670
    %v2695 = vcvt.s32.f32 %v1671
    %v2696 = vcvt.s32.f32 %v1672
    %v2697 = vcvt.s32.f32 %v1673
    %v2698 = vcvt.s32.f32 %v1674
    %v2699 = vcvt.s32.f32 %v1675
    %v2700 = vcvt.s32.f32 %v1676
    %v2701 = vcvt.s32.f32 %v1677
    %v2702 = vcvt.s32.f32 %v1678
    %v2703 = vcvt.s32.f32 %v1679
    %v2704 = vcvt.s32.f32 %v1680
    %v2705 = vcvt.s32.f32 %v1681
    %v2706 = vcvt.s32.f32 %v1682
    %v2707 = vcvt.s32.f32 %v1683
    %v2708 = vcvt.s32.f32 %v1684
    %v2709 = vcvt.s32.f32 %v1685
    %v2710 = vcvt.s32.f32 %v1686
    %v2711 = vcvt.s32.f32 %v1687
    %v2712 = vcvt.s32.f32 %v1688
    %v2713 = vpack.c.bf16 %v1693, %v1689
    %v2714 = vpack.c.bf16 %v1694, %v1690
    %v2715 = vpack.c.bf16 %v1695, %v1691
    %v2716 = vpack.c.bf16 %v1696, %v1692
    %v2717 = vpack.c.bf16 %v1701, %v1697
    %v2718 = vpack.c.bf16 %v1702, %v1698
    %v2719 = vpack.c.bf16 %v1703, %v1699
    %v2720 = vpack.c.bf16 %v1704, %v1700
    %v2721 = vpack.c.bf16 %v1709, %v1705
    %v2722 = vpack.c.bf16 %v1710, %v1706
    %v2723 = vpack.c.bf16 %v1711, %v1707
    %v2724 = vpack.c.bf16 %v1712, %v1708
    %v2725 = vpack.c.bf16 %v1717, %v1713
    %v2726 = vpack.c.bf16 %v1718, %v1714
    %v2727 = vpack.c.bf16 %v1719, %v1715
    %v2728 = vpack.c.bf16 %v1720, %v1716
    %v2729 = vpack.c.bf16 %v1725, %v1721
    %v2730 = vpack.c.bf16 %v1726, %v1722
    %v2731 = vpack.c.bf16 %v1727, %v1723
    %v2732 = vpack.c.bf16 %v1728, %v1724
    %v2733 = vpack.c.bf16 %v1733, %v1729
    %v2734 = vpack.c.bf16 %v1734, %v1730
    %v2735 = vpack.c.bf16 %v1735, %v1731
    %v2736 = vpack.c.bf16 %v1736, %v1732
    %v2737 = vpack.c.bf16 %v1741, %v1737
    %v2738 = vpack.c.bf16 %v1742, %v1738
    %v2739 = vpack.c.bf16 %v1743, %v1739
    %v2740 = vpack.c.bf16 %v1744, %v1740
    %v2741 = vpack.c.bf16 %v1749, %v1745
    %v2742 = vpack.c.bf16 %v1750, %v1746
    %v2743 = vpack.c.bf16 %v1751, %v1747
    %v2744 = vpack.c.bf16 %v1752, %v1748
    %v2745 = vpack.c.bf16 %v1757, %v1753
    %v2746 = vpack.c.bf16 %v1758, %v1754
    %v2747 = vpack.c.bf16 %v1759, %v1755
    %v2748 = vpack.c.bf16 %v1760, %v1756
    %v2749 = vpack.c.bf16 %v1765, %v1761
    %v2750 = vpack.c.bf16 %v1766, %v1762
    %v2751 = vpack.c.bf16 %v1767, %v1763
    %v2752 = vpack.c.bf16 %v1768, %v1764
    %v2753 = vpack.c.bf16 %v1773, %v1769
    %v2754 = vpack.c.bf16 %v1774, %v1770
    %v2755 = vpack.c.bf16 %v1775, %v1771
    %v2756 = vpack.c.bf16 %v1776, %v1772
    %v2757 = vpack.c.bf16 %v1781, %v1777
    %v2758 = vpack.c.bf16 %v1782, %v1778
    %v2759 = vpack.c.bf16 %v1783, %v1779
    %v2760 = vpack.c.bf16 %v1784, %v1780
    %v2761 = vpack.c.bf16 %v1789, %v1785
    %v2762 = vpack.c.bf16 %v1790, %v1786
    %v2763 = vpack.c.bf16 %v1791, %v1787
    %v2764 = vpack.c.bf16 %v1792, %v1788
    %v2765 = vpack.c.bf16 %v1797, %v1793
    %v2766 = vpack.c.bf16 %v1798, %v1794
    %v2767 = vpack.c.bf16 %v1799, %v1795
    %v2768 = vpack.c.bf16 %v1800, %v1796
    %v2769 = vpack.c.bf16 %v1805, %v1801
    %v2770 = vpack.c.bf16 %v1806, %v1802
    %v2771 = vpack.c.bf16 %v1807, %v1803
    %v2772 = vpack.c.bf16 %v1808, %v1804
    %v2773 = vpack.c.bf16 %v1813, %v1809
    %v2774 = vpack.c.bf16 %v1814, %v1810
    %v2775 = vpack.c.bf16 %v1815, %v1811
    %v2776 = vpack.c.bf16 %v1816, %v1812
    %v2777 = vpack.c.bf16 %v1821, %v1817
    %v2778 = vpack.c.bf16 %v1822, %v1818
    %v2779 = vpack.c.bf16 %v1823, %v1819
    %v2780 = vpack.c.bf16 %v1824, %v1820
    %v2781 = vpack.c.bf16 %v1829, %v1825
    %v2782 = vpack.c.bf16 %v1830, %v1826
    %v2783 = vpack.c.bf16 %v1831, %v1827
    %v2784 = vpack.c.bf16 %v1832, %v1828
    %v2785 = vpack.c.bf16 %v1837, %v1833
    %v2786 = vpack.c.bf16 %v1838, %v1834
    %v2787 = vpack.c.bf16 %v1839, %v1835
    %v2788 = vpack.c.bf16 %v1840, %v1836
    %v2789 = vpack.c.bf16 %v1845, %v1841
    %v2790 = vpack.c.bf16 %v1846, %v1842
    %v2791 = vpack.c.bf16 %v1847, %v1843
    %v2792 = vpack.c.bf16 %v1848, %v1844
    %v2793 = vpack.c.bf16 %v1853, %v1849
    %v2794 = vpack.c.bf16 %v1854, %v1850
    %v2795 = vpack.c.bf16 %v1855, %v1851
    %v2796 = vpack.c.bf16 %v1856, %v1852
    %v2797 = vpack.c.bf16 %v1861, %v1857
    %v2798 = vpack.c.bf16 %v1862, %v1858
    %v2799 = vpack.c.bf16 %v1863, %v1859
    %v2800 = vpack.c.bf16 %v1864, %v1860
    %v2801 = vpack.c.bf16 %v1869, %v1865
    %v2802 = vpack.c.bf16 %v1870, %v1866
    %v2803 = vpack.c.bf16 %v1871, %v1867
    %v2804 = vpack.c.bf16 %v1872, %v1868
    %v2805 = vpack.c.bf16 %v1877, %v1873
    %v2806 = vpack.c.bf16 %v1878, %v1874
    %v2807 = vpack.c.bf16 %v1879, %v1875
    %v2808 = vpack.c.bf16 %v1880, %v1876
    %v2809 = vpack.c.bf16 %v1885, %v1881
    %v2810 = vpack.c.bf16 %v1886, %v1882
    %v2811 = vpack.c.bf16 %v1887, %v1883
    %v2812 = vpack.c.bf16 %v1888, %v1884
    %v2813 = vpack.c.bf16 %v1893, %v1889
    %v2814 = vpack.c.bf16 %v1894, %v1890
    %v2815 = vpack.c.bf16 %v1895, %v1891
    %v2816 = vpack.c.bf16 %v1896, %v1892
    %v2817 = vpack.c.bf16 %v1901, %v1897
    %v2818 = vpack.c.bf16 %v1902, %v1898
    %v2819 = vpack.c.bf16 %v1903, %v1899
    %v2820 = vpack.c.bf16 %v1904, %v1900
    %v2821 = vpack.c.bf16 %v1909, %v1905
    %v2822 = vpack.c.bf16 %v1910, %v1906
    %v2823 = vpack.c.bf16 %v1911, %v1907
    %v2824 = vpack.c.bf16 %v1912, %v1908
    %v2825 = vpack.c.bf16 %v1917, %v1913
    %v2826 = vpack.c.bf16 %v1918, %v1914
    %v2827 = vpack.c.bf16 %v1919, %v1915
    %v2828 = vpack.c.bf16 %v1920, %v1916
    %v2829 = vpack.c.bf16 %v1925, %v1921
    %v2830 = vpack.c.bf16 %v1926, %v1922
    %v2831 = vpack.c.bf16 %v1927, %v1923
    %v2832 = vpack.c.bf16 %v1928, %v1924
    %v2833 = vpack.c.bf16 %v1933, %v1929
    %v2834 = vpack.c.bf16 %v1934, %v1930
    %v2835 = vpack.c.bf16 %v1935, %v1931
    %v2836 = vpack.c.bf16 %v1936, %v1932
    %v2837 = vpack.c.bf16 %v1941, %v1937
    %v2838 = vpack.c.bf16 %v1942, %v1938
    %v2839 = vpack.c.bf16 %v1943, %v1939
    %v2840 = vpack.c.bf16 %v1944, %v1940
    %v2841 = vpack.c.bf16 %v1949, %v1945
    %v2842 = vpack.c.bf16 %v1950, %v1946
    %v2843 = vpack.c.bf16 %v1951, %v1947
    %v2844 = vpack.c.bf16 %v1952, %v1948
    %v2845 = vpack.c.bf16 %v1957, %v1953
    %v2846 = vpack.c.bf16 %v1958, %v1954
    %v2847 = vpack.c.bf16 %v1959, %v1955
    %v2848 = vpack.c.bf16 %v1960, %v1956
    %v2849 = vpack.c.bf16 %v1965, %v1961
    %v2850 = vpack.c.bf16 %v1966, %v1962
    %v2851 = vpack.c.bf16 %v1967, %v1963
    %v2852 = vpack.c.bf16 %v1968, %v1964
    %v2853 = vpack.c.bf16 %v1973, %v1969
    %v2854 = vpack.c.bf16 %v1974, %v1970
    %v2855 = vpack.c.bf16 %v1975, %v1971
    %v2856 = vpack.c.bf16 %v1976, %v1972
    %v2857 = vpack.c.bf16 %v1981, %v1977
    %v2858 = vpack.c.bf16 %v1982, %v1978
    %v2859 = vpack.c.bf16 %v1983, %v1979
    %v2860 = vpack.c.bf16 %v1984, %v1980
    %v2861 = vpack.c.bf16 %v1989, %v1985
    %v2862 = vpack.c.bf16 %v1990, %v1986
    %v2863 = vpack.c.bf16 %v1991, %v1987
    %v2864 = vpack.c.bf16 %v1992, %v1988
    %v2865 = vpack.c.bf16 %v1997, %v1993
    %v2866 = vpack.c.bf16 %v1998, %v1994
    %v2867 = vpack.c.bf16 %v1999, %v1995
    %v2868 = vpack.c.bf16 %v2000, %v1996
    %v2869 = vpack.c.bf16 %v2005, %v2001
    %v2870 = vpack.c.bf16 %v2006, %v2002
    %v2871 = vpack.c.bf16 %v2007, %v2003
    %v2872 = vpack.c.bf16 %v2008, %v2004
    %v2873 = vpack.c.bf16 %v2013, %v2009
    %v2874 = vpack.c.bf16 %v2014, %v2010
    %v2875 = vpack.c.bf16 %v2015, %v2011
    %v2876 = vpack.c.bf16 %v2016, %v2012
    %v2877 = vpack.c.bf16 %v2021, %v2017
    %v2878 = vpack.c.bf16 %v2022, %v2018
    %v2879 = vpack.c.bf16 %v2023, %v2019
    %v2880 = vpack.c.bf16 %v2024, %v2020
    %v2881 = vpack.c.bf16 %v2029, %v2025
    %v2882 = vpack.c.bf16 %v2030, %v2026
    %v2883 = vpack.c.bf16 %v2031, %v2027
    %v2884 = vpack.c.bf16 %v2032, %v2028
    %v2885 = vpack.c.bf16 %v2037, %v2033
    %v2886 = vpack.c.bf16 %v2038, %v2034
    %v2887 = vpack.c.bf16 %v2039, %v2035
    %v2888 = vpack.c.bf16 %v2040, %v2036
    %v2889 = vpack.c.bf16 %v2045, %v2041
    %v2890 = vpack.c.bf16 %v2046, %v2042
    %v2891 = vpack.c.bf16 %v2047, %v2043
    %v2892 = vpack.c.bf16 %v2048, %v2044
    %v2893 = vpack.c.bf16 %v2053, %v2049
    %v2894 = vpack.c.bf16 %v2054, %v2050
    %v2895 = vpack.c.bf16 %v2055, %v2051
    %v2896 = vpack.c.bf16 %v2056, %v2052
    %v2897 = vpack.c.bf16 %v2061, %v2057
    %v2898 = vpack.c.bf16 %v2062, %v2058
    %v2899 = vpack.c.bf16 %v2063, %v2059
    %v2900 = vpack.c.bf16 %v2064, %v2060
    %v2901 = vpack.c.bf16 %v2069, %v2065
    %v2902 = vpack.c.bf16 %v2070, %v2066
    %v2903 = vpack.c.bf16 %v2071, %v2067
    %v2904 = vpack.c.bf16 %v2072, %v2068
    %v2905 = vpack.c.bf16 %v2077, %v2073
    %v2906 = vpack.c.bf16 %v2078, %v2074
    %v2907 = vpack.c.bf16 %v2079, %v2075
    %v2908 = vpack.c.bf16 %v2080, %v2076
    %v2909 = vpack.c.bf16 %v2085, %v2081
    %v2910 = vpack.c.bf16 %v2086, %v2082
    %v2911 = vpack.c.bf16 %v2087, %v2083
    %v2912 = vpack.c.bf16 %v2088, %v2084
    %v2913 = vpack.c.bf16 %v2093, %v2089
    %v2914 = vpack.c.bf16 %v2094, %v2090
    %v2915 = vpack.c.bf16 %v2095, %v2091
    %v2916 = vpack.c.bf16 %v2096, %v2092
    %v2917 = vpack.c.bf16 %v2101, %v2097
    %v2918 = vpack.c.bf16 %v2102, %v2098
    %v2919 = vpack.c.bf16 %v2103, %v2099
    %v2920 = vpack.c.bf16 %v2104, %v2100
    %v2921 = vpack.c.bf16 %v2109, %v2105
    %v2922 = vpack.c.bf16 %v2110, %v2106
    %v2923 = vpack.c.bf16 %v2111, %v2107
    %v2924 = vpack.c.bf16 %v2112, %v2108
    %v2925 = vpack.c.bf16 %v2117, %v2113
    %v2926 = vpack.c.bf16 %v2118, %v2114
    %v2927 = vpack.c.bf16 %v2119, %v2115
    %v2928 = vpack.c.bf16 %v2120, %v2116
    %v2929 = vpack.c.bf16 %v2125, %v2121
    %v2930 = vpack.c.bf16 %v2126, %v2122
    %v2931 = vpack.c.bf16 %v2127, %v2123
    %v2932 = vpack.c.bf16 %v2128, %v2124
    %v2933 = vpack.c.bf16 %v2133, %v2129
    %v2934 = vpack.c.bf16 %v2134, %v2130
    %v2935 = vpack.c.bf16 %v2135, %v2131
    %v2936 = vpack.c.bf16 %v2136, %v2132
    %v2937 = vpack.c.bf16 %v2141, %v2137
    %v2938 = vpack.c.bf16 %v2142, %v2138
    %v2939 = vpack.c.bf16 %v2143, %v2139
    %v2940 = vpack.c.bf16 %v2144, %v2140
    %v2941 = vpack.c.bf16 %v2149, %v2145
    %v2942 = vpack.c.bf16 %v2150, %v2146
    %v2943 = vpack.c.bf16 %v2151, %v2147
    %v2944 = vpack.c.bf16 %v2152, %v2148
    %v2945 = vpack.c.bf16 %v2157, %v2153
    %v2946 = vpack.c.bf16 %v2158, %v2154
    %v2947 = vpack.c.bf16 %v2159, %v2155
    %v2948 = vpack.c.bf16 %v2160, %v2156
    %v2949 = vpack.c.bf16 %v2165, %v2161
    %v2950 = vpack.c.bf16 %v2166, %v2162
    %v2951 = vpack.c.bf16 %v2167, %v2163
    %v2952 = vpack.c.bf16 %v2168, %v2164
    %v2953 = vpack.c.bf16 %v2173, %v2169
    %v2954 = vpack.c.bf16 %v2174, %v2170
    %v2955 = vpack.c.bf16 %v2175, %v2171
    %v2956 = vpack.c.bf16 %v2176, %v2172
    %v2957 = vpack.c.bf16 %v2181, %v2177
    %v2958 = vpack.c.bf16 %v2182, %v2178
    %v2959 = vpack.c.bf16 %v2183, %v2179
    %v2960 = vpack.c.bf16 %v2184, %v2180
    %v2961 = vpack.c.bf16 %v2189, %v2185
    %v2962 = vpack.c.bf16 %v2190, %v2186
    %v2963 = vpack.c.bf16 %v2191, %v2187
    %v2964 = vpack.c.bf16 %v2192, %v2188
    %v2965 = vpack.c.bf16 %v2197, %v2193
    %v2966 = vpack.c.bf16 %v2198, %v2194
    %v2967 = vpack.c.bf16 %v2199, %v2195
    %v2968 = vpack.c.bf16 %v2200, %v2196
    %v2969 = vpack.c.bf16 %v2205, %v2201
    %v2970 = vpack.c.bf16 %v2206, %v2202
    %v2971 = vpack.c.bf16 %v2207, %v2203
    %v2972 = vpack.c.bf16 %v2208, %v2204
    %v2973 = vpack.c.bf16 %v2213, %v2209
    %v2974 = vpack.c.bf16 %v2214, %v2210
    %v2975 = vpack.c.bf16 %v2215, %v2211
    %v2976 = vpack.c.bf16 %v2216, %v2212
    %v2977 = vpack.c.bf16 %v2221, %v2217
    %v2978 = vpack.c.bf16 %v2222, %v2218
    %v2979 = vpack.c.bf16 %v2223, %v2219
    %v2980 = vpack.c.bf16 %v2224, %v2220
    %v2981 = vpack.c.bf16 %v2229, %v2225
    %v2982 = vpack.c.bf16 %v2230, %v2226
    %v2983 = vpack.c.bf16 %v2231, %v2227
    %v2984 = vpack.c.bf16 %v2232, %v2228
    %v2985 = vpack.c.bf16 %v2237, %v2233
    %v2986 = vpack.c.bf16 %v2238, %v2234
    %v2987 = vpack.c.bf16 %v2239, %v2235
    %v2988 = vpack.c.bf16 %v2240, %v2236
    %v2989 = vpack.c.bf16 %v2245, %v2241
    %v2990 = vpack.c.bf16 %v2246, %v2242
    %v2991 = vpack.c.bf16 %v2247, %v2243
    %v2992 = vpack.c.bf16 %v2248, %v2244
    %v2993 = vpack.c.bf16 %v2253, %v2249
    %v2994 = vpack.c.bf16 %v2254, %v2250
    %v2995 = vpack.c.bf16 %v2255, %v2251
    %v2996 = vpack.c.bf16 %v2256, %v2252
    %v2997 = vpack.c.bf16 %v2261, %v2257
    %v2998 = vpack.c.bf16 %v2262, %v2258
    %v2999 = vpack.c.bf16 %v2263, %v2259
    %v3000 = vpack.c.bf16 %v2264, %v2260
    %v3001 = vpack.c.bf16 %v2269, %v2265
    %v3002 = vpack.c.bf16 %v2270, %v2266
    %v3003 = vpack.c.bf16 %v2271, %v2267
    %v3004 = vpack.c.bf16 %v2272, %v2268
    %v3005 = vpack.c.bf16 %v2277, %v2273
    %v3006 = vpack.c.bf16 %v2278, %v2274
    %v3007 = vpack.c.bf16 %v2279, %v2275
    %v3008 = vpack.c.bf16 %v2280, %v2276
    %v3009 = vpack.c.bf16 %v2285, %v2281
    %v3010 = vpack.c.bf16 %v2286, %v2282
    %v3011 = vpack.c.bf16 %v2287, %v2283
    %v3012 = vpack.c.bf16 %v2288, %v2284
    %v3013 = vpack.c.bf16 %v2293, %v2289
    %v3014 = vpack.c.bf16 %v2294, %v2290
    %v3015 = vpack.c.bf16 %v2295, %v2291
    %v3016 = vpack.c.bf16 %v2296, %v2292
    %v3017 = vpack.c.bf16 %v2301, %v2297
    %v3018 = vpack.c.bf16 %v2302, %v2298
    %v3019 = vpack.c.bf16 %v2303, %v2299
    %v3020 = vpack.c.bf16 %v2304, %v2300
    %v3021 = vpack.c.bf16 %v2309, %v2305
    %v3022 = vpack.c.bf16 %v2310, %v2306
    %v3023 = vpack.c.bf16 %v2311, %v2307
    %v3024 = vpack.c.bf16 %v2312, %v2308
    %v3025 = vpack.c.bf16 %v2317, %v2313
    %v3026 = vpack.c.bf16 %v2318, %v2314
    %v3027 = vpack.c.bf16 %v2319, %v2315
    %v3028 = vpack.c.bf16 %v2320, %v2316
    %v3029 = vpack.c.bf16 %v2325, %v2321
    %v3030 = vpack.c.bf16 %v2326, %v2322
    %v3031 = vpack.c.bf16 %v2327, %v2323
    %v3032 = vpack.c.bf16 %v2328, %v2324
    %v3033 = vpack.c.bf16 %v2333, %v2329
    %v3034 = vpack.c.bf16 %v2334, %v2330
    %v3035 = vpack.c.bf16 %v2335, %v2331
    %v3036 = vpack.c.bf16 %v2336, %v2332
    %v3037 = vpack.c.bf16 %v2341, %v2337
    %v3038 = vpack.c.bf16 %v2342, %v2338
    %v3039 = vpack.c.bf16 %v2343, %v2339
    %v3040 = vpack.c.bf16 %v2344, %v2340
    %v3041 = vpack.c.bf16 %v2349, %v2345
    %v3042 = vpack.c.bf16 %v2350, %v2346
    %v3043 = vpack.c.bf16 %v2351, %v2347
    %v3044 = vpack.c.bf16 %v2352, %v2348
    %v3045 = vpack.c.bf16 %v2357, %v2353
    %v3046 = vpack.c.bf16 %v2358, %v2354
    %v3047 = vpack.c.bf16 %v2359, %v2355
    %v3048 = vpack.c.bf16 %v2360, %v2356
    %v3049 = vpack.c.bf16 %v2365, %v2361
    %v3050 = vpack.c.bf16 %v2366, %v2362
    %v3051 = vpack.c.bf16 %v2367, %v2363
    %v3052 = vpack.c.bf16 %v2368, %v2364
    %v3053 = vpack.c.bf16 %v2373, %v2369
    %v3054 = vpack.c.bf16 %v2374, %v2370
    %v3055 = vpack.c.bf16 %v2375, %v2371
    %v3056 = vpack.c.bf16 %v2376, %v2372
    %v3057 = vpack.c.bf16 %v2381, %v2377
    %v3058 = vpack.c.bf16 %v2382, %v2378
    %v3059 = vpack.c.bf16 %v2383, %v2379
    %v3060 = vpack.c.bf16 %v2384, %v2380
    %v3061 = vpack.c.bf16 %v2389, %v2385
    %v3062 = vpack.c.bf16 %v2390, %v2386
    %v3063 = vpack.c.bf16 %v2391, %v2387
    %v3064 = vpack.c.bf16 %v2392, %v2388
    %v3065 = vpack.c.bf16 %v2397, %v2393
    %v3066 = vpack.c.bf16 %v2398, %v2394
    %v3067 = vpack.c.bf16 %v2399, %v2395
    %v3068 = vpack.c.bf16 %v2400, %v2396
    %v3069 = vpack.c.bf16 %v2405, %v2401
    %v3070 = vpack.c.bf16 %v2406, %v2402
    %v3071 = vpack.c.bf16 %v2407, %v2403
    %v3072 = vpack.c.bf16 %v2408, %v2404
    %v3073 = vpack.c.bf16 %v2413, %v2409
    %v3074 = vpack.c.bf16 %v2414, %v2410
    %v3075 = vpack.c.bf16 %v2415, %v2411
    %v3076 = vpack.c.bf16 %v2416, %v2412
    %v3077 = vpack.c.bf16 %v2421, %v2417
    %v3078 = vpack.c.bf16 %v2422, %v2418
    %v3079 = vpack.c.bf16 %v2423, %v2419
    %v3080 = vpack.c.bf16 %v2424, %v2420
    %v3081 = vpack.c.bf16 %v2429, %v2425
    %v3082 = vpack.c.bf16 %v2430, %v2426
    %v3083 = vpack.c.bf16 %v2431, %v2427
    %v3084 = vpack.c.bf16 %v2432, %v2428
    %v3085 = vpack.c.bf16 %v2437, %v2433
    %v3086 = vpack.c.bf16 %v2438, %v2434
    %v3087 = vpack.c.bf16 %v2439, %v2435
    %v3088 = vpack.c.bf16 %v2440, %v2436
    %v3089 = vpack.c.bf16 %v2445, %v2441
    %v3090 = vpack.c.bf16 %v2446, %v2442
    %v3091 = vpack.c.bf16 %v2447, %v2443
    %v3092 = vpack.c.bf16 %v2448, %v2444
    %v3093 = vpack.c.bf16 %v2453, %v2449
    %v3094 = vpack.c.bf16 %v2454, %v2450
    %v3095 = vpack.c.bf16 %v2455, %v2451
    %v3096 = vpack.c.bf16 %v2456, %v2452
    %v3097 = vpack.c.bf16 %v2461, %v2457
    %v3098 = vpack.c.bf16 %v2462, %v2458
    %v3099 = vpack.c.bf16 %v2463, %v2459
    %v3100 = vpack.c.bf16 %v2464, %v2460
    %v3101 = vpack.c.bf16 %v2469, %v2465
    %v3102 = vpack.c.bf16 %v2470, %v2466
    %v3103 = vpack.c.bf16 %v2471, %v2467
    %v3104 = vpack.c.bf16 %v2472, %v2468
    %v3105 = vpack.c.bf16 %v2477, %v2473
    %v3106 = vpack.c.bf16 %v2478, %v2474
    %v3107 = vpack.c.bf16 %v2479, %v2475
    %v3108 = vpack.c.bf16 %v2480, %v2476
    %v3109 = vpack.c.bf16 %v2485, %v2481
    %v3110 = vpack.c.bf16 %v2486, %v2482
    %v3111 = vpack.c.bf16 %v2487, %v2483
    %v3112 = vpack.c.bf16 %v2488, %v2484
    %v3113 = vpack.c.bf16 %v2493, %v2489
    %v3114 = vpack.c.bf16 %v2494, %v2490
    %v3115 = vpack.c.bf16 %v2495, %v2491
    %v3116 = vpack.c.bf16 %v2496, %v2492
    %v3117 = vpack.c.bf16 %v2501, %v2497
    %v3118 = vpack.c.bf16 %v2502, %v2498
    %v3119 = vpack.c.bf16 %v2503, %v2499
    %v3120 = vpack.c.bf16 %v2504, %v2500
    %v3121 = vpack.c.bf16 %v2509, %v2505
    %v3122 = vpack.c.bf16 %v2510, %v2506
    %v3123 = vpack.c.bf16 %v2511, %v2507
    %v3124 = vpack.c.bf16 %v2512, %v2508
    %v3125 = vpack.c.bf16 %v2517, %v2513
    %v3126 = vpack.c.bf16 %v2518, %v2514
    %v3127 = vpack.c.bf16 %v2519, %v2515
    %v3128 = vpack.c.bf16 %v2520, %v2516
    %v3129 = vpack.c.bf16 %v2525, %v2521
    %v3130 = vpack.c.bf16 %v2526, %v2522
    %v3131 = vpack.c.bf16 %v2527, %v2523
    %v3132 = vpack.c.bf16 %v2528, %v2524
    %v3133 = vpack.c.bf16 %v2533, %v2529
    %v3134 = vpack.c.bf16 %v2534, %v2530
    %v3135 = vpack.c.bf16 %v2535, %v2531
    %v3136 = vpack.c.bf16 %v2536, %v2532
    %v3137 = vpack.c.bf16 %v2541, %v2537
    %v3138 = vpack.c.bf16 %v2542, %v2538
    %v3139 = vpack.c.bf16 %v2543, %v2539
    %v3140 = vpack.c.bf16 %v2544, %v2540
    %v3141 = vpack.c.bf16 %v2549, %v2545
    %v3142 = vpack.c.bf16 %v2550, %v2546
    %v3143 = vpack.c.bf16 %v2551, %v2547
    %v3144 = vpack.c.bf16 %v2552, %v2548
    %v3145 = vpack.c.bf16 %v2557, %v2553
    %v3146 = vpack.c.bf16 %v2558, %v2554
    %v3147 = vpack.c.bf16 %v2559, %v2555
    %v3148 = vpack.c.bf16 %v2560, %v2556
    %v3149 = vpack.c.bf16 %v2565, %v2561
    %v3150 = vpack.c.bf16 %v2566, %v2562
    %v3151 = vpack.c.bf16 %v2567, %v2563
    %v3152 = vpack.c.bf16 %v2568, %v2564
    %v3153 = vpack.c.bf16 %v2573, %v2569
    %v3154 = vpack.c.bf16 %v2574, %v2570
    %v3155 = vpack.c.bf16 %v2575, %v2571
    %v3156 = vpack.c.bf16 %v2576, %v2572
    %v3157 = vpack.c.bf16 %v2581, %v2577
    %v3158 = vpack.c.bf16 %v2582, %v2578
    %v3159 = vpack.c.bf16 %v2583, %v2579
    %v3160 = vpack.c.bf16 %v2584, %v2580
    %v3161 = vpack.c.bf16 %v2589, %v2585
    %v3162 = vpack.c.bf16 %v2590, %v2586
    %v3163 = vpack.c.bf16 %v2591, %v2587
    %v3164 = vpack.c.bf16 %v2592, %v2588
    %v3165 = vpack.c.bf16 %v2597, %v2593
    %v3166 = vpack.c.bf16 %v2598, %v2594
    %v3167 = vpack.c.bf16 %v2599, %v2595
    %v3168 = vpack.c.bf16 %v2600, %v2596
    %v3169 = vpack.c.bf16 %v2605, %v2601
    %v3170 = vpack.c.bf16 %v2606, %v2602
    %v3171 = vpack.c.bf16 %v2607, %v2603
    %v3172 = vpack.c.bf16 %v2608, %v2604
    %v3173 = vpack.c.bf16 %v2613, %v2609
    %v3174 = vpack.c.bf16 %v2614, %v2610
    %v3175 = vpack.c.bf16 %v2615, %v2611
    %v3176 = vpack.c.bf16 %v2616, %v2612
    %v3177 = vpack.c.bf16 %v2621, %v2617
    %v3178 = vpack.c.bf16 %v2622, %v2618
    %v3179 = vpack.c.bf16 %v2623, %v2619
    %v3180 = vpack.c.bf16 %v2624, %v2620
    %v3181 = vpack.c.bf16 %v2629, %v2625
    %v3182 = vpack.c.bf16 %v2630, %v2626
    %v3183 = vpack.c.bf16 %v2631, %v2627
    %v3184 = vpack.c.bf16 %v2632, %v2628
    %v3185 = vpack.c.bf16 %v2637, %v2633
    %v3186 = vpack.c.bf16 %v2638, %v2634
    %v3187 = vpack.c.bf16 %v2639, %v2635
    %v3188 = vpack.c.bf16 %v2640, %v2636
    %v3189 = vpack.c.bf16 %v2645, %v2641
    %v3190 = vpack.c.bf16 %v2646, %v2642
    %v3191 = vpack.c.bf16 %v2647, %v2643
    %v3192 = vpack.c.bf16 %v2648, %v2644
    %v3193 = vpack.c.bf16 %v2653, %v2649
    %v3194 = vpack.c.bf16 %v2654, %v2650
    %v3195 = vpack.c.bf16 %v2655, %v2651
    %v3196 = vpack.c.bf16 %v2656, %v2652
    %v3197 = vpack.c.bf16 %v2661, %v2657
    %v3198 = vpack.c.bf16 %v2662, %v2658
    %v3199 = vpack.c.bf16 %v2663, %v2659
    %v3200 = vpack.c.bf16 %v2664, %v2660
    %v3201 = vpack.c.bf16 %v2669, %v2665
    %v3202 = vpack.c.bf16 %v2670, %v2666
    %v3203 = vpack.c.bf16 %v2671, %v2667
    %v3204 = vpack.c.bf16 %v2672, %v2668
    %v3205 = vpack.c.bf16 %v2677, %v2673
    %v3206 = vpack.c.bf16 %v2678, %v2674
    %v3207 = vpack.c.bf16 %v2679, %v2675
    %v3208 = vpack.c.bf16 %v2680, %v2676
    %v3209 = vpack.c.bf16 %v2685, %v2681
    %v3210 = vpack.c.bf16 %v2686, %v2682
    %v3211 = vpack.c.bf16 %v2687, %v2683
    %v3212 = vpack.c.bf16 %v2688, %v2684
    %v3213 = vpack.c.bf16 %v2693, %v2689
    %v3214 = vpack.c.bf16 %v2694, %v2690
    %v3215 = vpack.c.bf16 %v2695, %v2691
    %v3216 = vpack.c.bf16 %v2696, %v2692
    %v3217 = vpack.c.bf16 %v2701, %v2697
    %v3218 = vpack.c.bf16 %v2702, %v2698
    %v3219 = vpack.c.bf16 %v2703, %v2699
    %v3220 = vpack.c.bf16 %v2704, %v2700
    %v3221 = vpack.c.bf16 %v2709, %v2705
    %v3222 = vpack.c.bf16 %v2710, %v2706
    %v3223 = vpack.c.bf16 %v2711, %v2707
    %v3224 = vpack.c.bf16 %v2712, %v2708
    %v3225 = vpack.c.bf16 %v393, %v393
    %v3226 = vpack.c.bf16 %v394, %v394
    %v3227 = vpack.c.bf16 %v395, %v395
    %v3228 = vpack.c.bf16 %v396, %v396
    %v3229 = vpack.c.bf16 %v397, %v397
    %v3230 = vpack.c.bf16 %v398, %v398
    %v3231 = vpack.c.bf16 %v399, %v399
    %v3232 = vpack.c.bf16 %v400, %v400
    %v3233 = vpack.c.bf16 %v401, %v401
    %v3234 = vpack.c.bf16 %v402, %v402
    %v3235 = vpack.c.bf16 %v403, %v403
    %v3236 = vpack.c.bf16 %v404, %v404
    %v3237 = vpack.c.bf16 %v405, %v405
    %v3238 = vpack.c.bf16 %v406, %v406
    %v3239 = vpack.c.bf16 %v407, %v407
    %v3240 = vpack.c.bf16 %v408, %v408
    %3241 = vmatpush.bf16.msra.mxu0 %v2741
    %3242 = vmatpush.bf16.msra.mxu0 %v2737
    %3243 = vmatpush.bf16.msra.mxu0 %v2733
    %3244 = vmatpush.bf16.msra.mxu0 %v2729
    %3245 = vmatpush.bf16.msra.mxu0 %v2725
    %3246 = vmatpush.bf16.msra.mxu0 %v2721
    %3247 = vmatpush.bf16.msra.mxu0 %v2717
    %3248 = vmatpush.bf16.msra.mxu0 %v2713
    %3249 = vmatmul.bf16.gmra.mxu0 %v3225
    %v3250 = vpop.f32.mrf.mxu0
    %v3251 = vadd.f32 0.0, %v3250
    %v3252 = vpop.f32.mrf.mxu0
    %3253 = vdwg.mxu0
    %3254 = vmatpush.bf16.msra.mxu0 %v2773
    %3255 = vmatpush.bf16.msra.mxu0 %v2769
    %3256 = vmatpush.bf16.msra.mxu0 %v2765
    %3257 = vmatpush.bf16.msra.mxu0 %v2761
    %3258 = vmatpush.bf16.msra.mxu0 %v2757
    %3259 = vmatpush.bf16.msra.mxu0 %v2753
    %3260 = vmatpush.bf16.msra.mxu0 %v2749
    %3261 = vmatpush.bf16.msra.mxu0 %v2745
    %3262 = vmatmul.bf16.gmra.mxu0 %v3226
    %v3263 = vpop.f32.mrf.mxu0
    %v3264 = vadd.f32 %v3251, %v3263
    %v3265 = vpop.f32.mrf.mxu0
    %3266 = vdwg.mxu0
    %3267 = vmatpush.bf16.msra.mxu0 %v2805
    %3268 = vmatpush.bf16.msra.mxu0 %v2801
    %3269 = vmatpush.bf16.msra.mxu0 %v2797
    %3270 = vmatpush.bf16.msra.mxu0 %v2793
    %3271 = vmatpush.bf16.msra.mxu0 %v2789
    %3272 = vmatpush.bf16.msra.mxu0 %v2785
    %3273 = vmatpush.bf16.msra.mxu0 %v2781
    %3274 = vmatpush.bf16.msra.mxu0 %v2777
    %3275 = vmatmul.bf16.gmra.mxu0 %v3227
    %v3276 = vpop.f32.mrf.mxu0
    %v3277 = vadd.f32 %v3264, %v3276
    %v3278 = vpop.f32.mrf.mxu0
    %3279 = vdwg.mxu0
    %3280 = vmatpush.bf16.msra.mxu0 %v2837
    %3281 = vmatpush.bf16.msra.mxu0 %v2833
    %3282 = vmatpush.bf16.msra.mxu0 %v2829
    %3283 = vmatpush.bf16.msra.mxu0 %v2825
    %3284 = vmatpush.bf16.msra.mxu0 %v2821
    %3285 = vmatpush.bf16.msra.mxu0 %v2817
    %3286 = vmatpush.bf16.msra.mxu0 %v2813
    %3287 = vmatpush.bf16.msra.mxu0 %v2809
    %3288 = vmatmul.bf16.gmra.mxu0 %v3228
    %v3289 = vpop.f32.mrf.mxu0
    %v3290 = vadd.f32 %v3277, %v3289
    %v3291 = vpop.f32.mrf.mxu0
    %3292 = vdwg.mxu0
    %3293 = vmatpush.bf16.msra.mxu0 %v2869
    %3294 = vmatpush.bf16.msra.mxu0 %v2865
    %3295 = vmatpush.bf16.msra.mxu0 %v2861
    %3296 = vmatpush.bf16.msra.mxu0 %v2857
    %3297 = vmatpush.bf16.msra.mxu0 %v2853
    %3298 = vmatpush.bf16.msra.mxu0 %v2849
    %3299 = vmatpush.bf16.msra.mxu0 %v2845
    %3300 = vmatpush.bf16.msra.mxu0 %v2841
    %3301 = vmatmul.bf16.gmra.mxu0 %v3229
    %v3302 = vpop.f32.mrf.mxu0
    %v3303 = vadd.f32 %v3290, %v3302
    %v3304 = vpop.f32.mrf.mxu0
    %3305 = vdwg.mxu0
    %3306 = vmatpush.bf16.msra.mxu0 %v2901
    %3307 = vmatpush.bf16.msra.mxu0 %v2897
    %3308 = vmatpush.bf16.msra.mxu0 %v2893
    %3309 = vmatpush.bf16.msra.mxu0 %v2889
    %3310 = vmatpush.bf16.msra.mxu0 %v2885
    %3311 = vmatpush.bf16.msra.mxu0 %v2881
    %3312 = vmatpush.bf16.msra.mxu0 %v2877
    %3313 = vmatpush.bf16.msra.mxu0 %v2873
    %3314 = vmatmul.bf16.gmra.mxu0 %v3230
    %v3315 = vpop.f32.mrf.mxu0
    %v3316 = vadd.f32 %v3303, %v3315
    %v3317 = vpop.f32.mrf.mxu0
    %3318 = vdwg.mxu0
    %3319 = vmatpush.bf16.msra.mxu0 %v2933
    %3320 = vmatpush.bf16.msra.mxu0 %v2929
    %3321 = vmatpush.bf16.msra.mxu0 %v2925
    %3322 = vmatpush.bf16.msra.mxu0 %v2921
    %3323 = vmatpush.bf16.msra.mxu0 %v2917
    %3324 = vmatpush.bf16.msra.mxu0 %v2913
    %3325 = vmatpush.bf16.msra.mxu0 %v2909
    %3326 = vmatpush.bf16.msra.mxu0 %v2905
    %3327 = vmatmul.bf16.gmra.mxu0 %v3231
    %v3328 = vpop.f32.mrf.mxu0
    %v3329 = vadd.f32 %v3316, %v3328
    %v3330 = vpop.f32.mrf.mxu0
    %3331 = vdwg.mxu0
    %3332 = vmatpush.bf16.msra.mxu0 %v2965
    %3333 = vmatpush.bf16.msra.mxu0 %v2961
    %3334 = vmatpush.bf16.msra.mxu0 %v2957
    %3335 = vmatpush.bf16.msra.mxu0 %v2953
    %3336 = vmatpush.bf16.msra.mxu0 %v2949
    %3337 = vmatpush.bf16.msra.mxu0 %v2945
    %3338 = vmatpush.bf16.msra.mxu0 %v2941
    %3339 = vmatpush.bf16.msra.mxu0 %v2937
    %3340 = vmatmul.bf16.gmra.mxu0 %v3232
    %v3341 = vpop.f32.mrf.mxu0
    %v3342 = vadd.f32 %v3329, %v3341
    %v3343 = vpop.f32.mrf.mxu0
    %3344 = vdwg.mxu0
    %3345 = vmatpush.bf16.msra.mxu0 %v2997
    %3346 = vmatpush.bf16.msra.mxu0 %v2993
    %3347 = vmatpush.bf16.msra.mxu0 %v2989
    %3348 = vmatpush.bf16.msra.mxu0 %v2985
    %3349 = vmatpush.bf16.msra.mxu0 %v2981
    %3350 = vmatpush.bf16.msra.mxu0 %v2977
    %3351 = vmatpush.bf16.msra.mxu0 %v2973
    %3352 = vmatpush.bf16.msra.mxu0 %v2969
    %3353 = vmatmul.bf16.gmra.mxu0 %v3233
    %v3354 = vpop.f32.mrf.mxu0
    %v3355 = vadd.f32 %v3342, %v3354
    %v3356 = vpop.f32.mrf.mxu0
    %3357 = vdwg.mxu0
    %3358 = vmatpush.bf16.msra.mxu0 %v3029
    %3359 = vmatpush.bf16.msra.mxu0 %v3025
    %3360 = vmatpush.bf16.msra.mxu0 %v3021
    %3361 = vmatpush.bf16.msra.mxu0 %v3017
    %3362 = vmatpush.bf16.msra.mxu0 %v3013
    %3363 = vmatpush.bf16.msra.mxu0 %v3009
    %3364 = vmatpush.bf16.msra.mxu0 %v3005
    %3365 = vmatpush.bf16.msra.mxu0 %v3001
    %3366 = vmatmul.bf16.gmra.mxu0 %v3234
    %v3367 = vpop.f32.mrf.mxu0
    %v3368 = vadd.f32 %v3355, %v3367
    %v3369 = vpop.f32.mrf.mxu0
    %3370 = vdwg.mxu0
    %3371 = vmatpush.bf16.msra.mxu0 %v3061
    %3372 = vmatpush.bf16.msra.mxu0 %v3057
    %3373 = vmatpush.bf16.msra.mxu0 %v3053
    %3374 = vmatpush.bf16.msra.mxu0 %v3049
    %3375 = vmatpush.bf16.msra.mxu0 %v3045
    %3376 = vmatpush.bf16.msra.mxu0 %v3041
    %3377 = vmatpush.bf16.msra.mxu0 %v3037
    %3378 = vmatpush.bf16.msra.mxu0 %v3033
    %3379 = vmatmul.bf16.gmra.mxu0 %v3235
    %v3380 = vpop.f32.mrf.mxu0
    %v3381 = vadd.f32 %v3368, %v3380
    %v3382 = vpop.f32.mrf.mxu0
    %3383 = vdwg.mxu0
    %3384 = vmatpush.bf16.msra.mxu0 %v3093
    %3385 = vmatpush.bf16.msra.mxu0 %v3089
    %3386 = vmatpush.bf16.msra.mxu0 %v3085
    %3387 = vmatpush.bf16.msra.mxu0 %v3081
    %3388 = vmatpush.bf16.msra.mxu0 %v3077
    %3389 = vmatpush.bf16.msra.mxu0 %v3073
    %3390 = vmatpush.bf16.msra.mxu0 %v3069
    %3391 = vmatpush.bf16.msra.mxu0 %v3065
    %3392 = vmatmul.bf16.gmra.mxu0 %v3236
    %v3393 = vpop.f32.mrf.mxu0
    %v3394 = vadd.f32 %v3381, %v3393
    %v3395 = vpop.f32.mrf.mxu0
    %3396 = vdwg.mxu0
    %3397 = vmatpush.bf16.msra.mxu0 %v3125
    %3398 = vmatpush.bf16.msra.mxu0 %v3121
    %3399 = vmatpush.bf16.msra.mxu0 %v3117
    %3400 = vmatpush.bf16.msra.mxu0 %v3113
    %3401 = vmatpush.bf16.msra.mxu0 %v3109
    %3402 = vmatpush.bf16.msra.mxu0 %v3105
    %3403 = vmatpush.bf16.msra.mxu0 %v3101
    %3404 = vmatpush.bf16.msra.mxu0 %v3097
    %3405 = vmatmul.bf16.gmra.mxu0 %v3237
    %v3406 = vpop.f32.mrf.mxu0
    %v3407 = vadd.f32 %v3394, %v3406
    %v3408 = vpop.f32.mrf.mxu0
    %3409 = vdwg.mxu0
    %3410 = vmatpush.bf16.msra.mxu0 %v3157
    %3411 = vmatpush.bf16.msra.mxu0 %v3153
    %3412 = vmatpush.bf16.msra.mxu0 %v3149
    %3413 = vmatpush.bf16.msra.mxu0 %v3145
    %3414 = vmatpush.bf16.msra.mxu0 %v3141
    %3415 = vmatpush.bf16.msra.mxu0 %v3137
    %3416 = vmatpush.bf16.msra.mxu0 %v3133
    %3417 = vmatpush.bf16.msra.mxu0 %v3129
    %3418 = vmatmul.bf16.gmra.mxu0 %v3238
    %v3419 = vpop.f32.mrf.mxu0
    %v3420 = vadd.f32 %v3407, %v3419
    %v3421 = vpop.f32.mrf.mxu0
    %3422 = vdwg.mxu0
    %3423 = vmatpush.bf16.msra.mxu0 %v3189
    %3424 = vmatpush.bf16.msra.mxu0 %v3185
    %3425 = vmatpush.bf16.msra.mxu0 %v3181
    %3426 = vmatpush.bf16.msra.mxu0 %v3177
    %3427 = vmatpush.bf16.msra.mxu0 %v3173
    %3428 = vmatpush.bf16.msra.mxu0 %v3169
    %3429 = vmatpush.bf16.msra.mxu0 %v3165
    %3430 = vmatpush.bf16.msra.mxu0 %v3161
    %3431 = vmatmul.bf16.gmra.mxu0 %v3239
    %v3432 = vpop.f32.mrf.mxu0
    %v3433 = vadd.f32 %v3420, %v3432
    %v3434 = vpop.f32.mrf.mxu0
    %3435 = vdwg.mxu0
    %3436 = vmatpush.bf16.msra.mxu0 %v3221
    %3437 = vmatpush.bf16.msra.mxu0 %v3217
    %3438 = vmatpush.bf16.msra.mxu0 %v3213
    %3439 = vmatpush.bf16.msra.mxu0 %v3209
    %3440 = vmatpush.bf16.msra.mxu0 %v3205
    %3441 = vmatpush.bf16.msra.mxu0 %v3201
    %3442 = vmatpush.bf16.msra.mxu0 %v3197
    %3443 = vmatpush.bf16.msra.mxu0 %v3193
    %3444 = vmatmul.bf16.gmra.mxu0 %v3240
    %v3445 = vpop.f32.mrf.mxu0
    %v3446 = vadd.f32 %v3433, %v3445
    %v3447 = vpop.f32.mrf.mxu0
    %3448 = vdwg.mxu0
    %3449 = vmatpush.bf16.msra.mxu0 %v2742
    %3450 = vmatpush.bf16.msra.mxu0 %v2738
    %3451 = vmatpush.bf16.msra.mxu0 %v2734
    %3452 = vmatpush.bf16.msra.mxu0 %v2730
    %3453 = vmatpush.bf16.msra.mxu0 %v2726
    %3454 = vmatpush.bf16.msra.mxu0 %v2722
    %3455 = vmatpush.bf16.msra.mxu0 %v2718
    %3456 = vmatpush.bf16.msra.mxu0 %v2714
    %3457 = vmatmul.bf16.gmra.mxu0 %v3225
    %v3458 = vpop.f32.mrf.mxu0
    %v3459 = vadd.f32 0.0, %v3458
    %v3460 = vpop.f32.mrf.mxu0
    %3461 = vdwg.mxu0
    %3462 = vmatpush.bf16.msra.mxu0 %v2774
    %3463 = vmatpush.bf16.msra.mxu0 %v2770
    %3464 = vmatpush.bf16.msra.mxu0 %v2766
    %3465 = vmatpush.bf16.msra.mxu0 %v2762
    %3466 = vmatpush.bf16.msra.mxu0 %v2758
    %3467 = vmatpush.bf16.msra.mxu0 %v2754
    %3468 = vmatpush.bf16.msra.mxu0 %v2750
    %3469 = vmatpush.bf16.msra.mxu0 %v2746
    %3470 = vmatmul.bf16.gmra.mxu0 %v3226
    %v3471 = vpop.f32.mrf.mxu0
    %v3472 = vadd.f32 %v3459, %v3471
    %v3473 = vpop.f32.mrf.mxu0
    %3474 = vdwg.mxu0
    %3475 = vmatpush.bf16.msra.mxu0 %v2806
    %3476 = vmatpush.bf16.msra.mxu0 %v2802
    %3477 = vmatpush.bf16.msra.mxu0 %v2798
    %3478 = vmatpush.bf16.msra.mxu0 %v2794
    %3479 = vmatpush.bf16.msra.mxu0 %v2790
    %3480 = vmatpush.bf16.msra.mxu0 %v2786
    %3481 = vmatpush.bf16.msra.mxu0 %v2782
    %3482 = vmatpush.bf16.msra.mxu0 %v2778
    %3483 = vmatmul.bf16.gmra.mxu0 %v3227
    %v3484 = vpop.f32.mrf.mxu0
    %v3485 = vadd.f32 %v3472, %v3484
    %v3486 = vpop.f32.mrf.mxu0
    %3487 = vdwg.mxu0
    %3488 = vmatpush.bf16.msra.mxu0 %v2838
    %3489 = vmatpush.bf16.msra.mxu0 %v2834
    %3490 = vmatpush.bf16.msra.mxu0 %v2830
    %3491 = vmatpush.bf16.msra.mxu0 %v2826
    %3492 = vmatpush.bf16.msra.mxu0 %v2822
    %3493 = vmatpush.bf16.msra.mxu0 %v2818
    %3494 = vmatpush.bf16.msra.mxu0 %v2814
    %3495 = vmatpush.bf16.msra.mxu0 %v2810
    %3496 = vmatmul.bf16.gmra.mxu0 %v3228
    %v3497 = vpop.f32.mrf.mxu0
    %v3498 = vadd.f32 %v3485, %v3497
    %v3499 = vpop.f32.mrf.mxu0
    %3500 = vdwg.mxu0
    %3501 = vmatpush.bf16.msra.mxu0 %v2870
    %3502 = vmatpush.bf16.msra.mxu0 %v2866
    %3503 = vmatpush.bf16.msra.mxu0 %v2862
    %3504 = vmatpush.bf16.msra.mxu0 %v2858
    %3505 = vmatpush.bf16.msra.mxu0 %v2854
    %3506 = vmatpush.bf16.msra.mxu0 %v2850
    %3507 = vmatpush.bf16.msra.mxu0 %v2846
    %3508 = vmatpush.bf16.msra.mxu0 %v2842
    %3509 = vmatmul.bf16.gmra.mxu0 %v3229
    %v3510 = vpop.f32.mrf.mxu0
    %v3511 = vadd.f32 %v3498, %v3510
    %v3512 = vpop.f32.mrf.mxu0
    %3513 = vdwg.mxu0
    %3514 = vmatpush.bf16.msra.mxu0 %v2902
    %3515 = vmatpush.bf16.msra.mxu0 %v2898
    %3516 = vmatpush.bf16.msra.mxu0 %v2894
    %3517 = vmatpush.bf16.msra.mxu0 %v2890
    %3518 = vmatpush.bf16.msra.mxu0 %v2886
    %3519 = vmatpush.bf16.msra.mxu0 %v2882
    %3520 = vmatpush.bf16.msra.mxu0 %v2878
    %3521 = vmatpush.bf16.msra.mxu0 %v2874
    %3522 = vmatmul.bf16.gmra.mxu0 %v3230
    %v3523 = vpop.f32.mrf.mxu0
    %v3524 = vadd.f32 %v3511, %v3523
    %v3525 = vpop.f32.mrf.mxu0
    %3526 = vdwg.mxu0
    %3527 = vmatpush.bf16.msra.mxu0 %v2934
    %3528 = vmatpush.bf16.msra.mxu0 %v2930
    %3529 = vmatpush.bf16.msra.mxu0 %v2926
    %3530 = vmatpush.bf16.msra.mxu0 %v2922
    %3531 = vmatpush.bf16.msra.mxu0 %v2918
    %3532 = vmatpush.bf16.msra.mxu0 %v2914
    %3533 = vmatpush.bf16.msra.mxu0 %v2910
    %3534 = vmatpush.bf16.msra.mxu0 %v2906
    %3535 = vmatmul.bf16.gmra.mxu0 %v3231
    %v3536 = vpop.f32.mrf.mxu0
    %v3537 = vadd.f32 %v3524, %v3536
    %v3538 = vpop.f32.mrf.mxu0
    %3539 = vdwg.mxu0
    %3540 = vmatpush.bf16.msra.mxu0 %v2966
    %3541 = vmatpush.bf16.msra.mxu0 %v2962
    %3542 = vmatpush.bf16.msra.mxu0 %v2958
    %3543 = vmatpush.bf16.msra.mxu0 %v2954
    %3544 = vmatpush.bf16.msra.mxu0 %v2950
    %3545 = vmatpush.bf16.msra.mxu0 %v2946
    %3546 = vmatpush.bf16.msra.mxu0 %v2942
    %3547 = vmatpush.bf16.msra.mxu0 %v2938
    %3548 = vmatmul.bf16.gmra.mxu0 %v3232
    %v3549 = vpop.f32.mrf.mxu0
    %v3550 = vadd.f32 %v3537, %v3549
    %v3551 = vpop.f32.mrf.mxu0
    %3552 = vdwg.mxu0
    %3553 = vmatpush.bf16.msra.mxu0 %v2998
    %3554 = vmatpush.bf16.msra.mxu0 %v2994
    %3555 = vmatpush.bf16.msra.mxu0 %v2990
    %3556 = vmatpush.bf16.msra.mxu0 %v2986
    %3557 = vmatpush.bf16.msra.mxu0 %v2982
    %3558 = vmatpush.bf16.msra.mxu0 %v2978
    %3559 = vmatpush.bf16.msra.mxu0 %v2974
    %3560 = vmatpush.bf16.msra.mxu0 %v2970
    %3561 = vmatmul.bf16.gmra.mxu0 %v3233
    %v3562 = vpop.f32.mrf.mxu0
    %v3563 = vadd.f32 %v3550, %v3562
    %v3564 = vpop.f32.mrf.mxu0
    %3565 = vdwg.mxu0
    %3566 = vmatpush.bf16.msra.mxu0 %v3030
    %3567 = vmatpush.bf16.msra.mxu0 %v3026
    %3568 = vmatpush.bf16.msra.mxu0 %v3022
    %3569 = vmatpush.bf16.msra.mxu0 %v3018
    %3570 = vmatpush.bf16.msra.mxu0 %v3014
    %3571 = vmatpush.bf16.msra.mxu0 %v3010
    %3572 = vmatpush.bf16.msra.mxu0 %v3006
    %3573 = vmatpush.bf16.msra.mxu0 %v3002
    %3574 = vmatmul.bf16.gmra.mxu0 %v3234
    %v3575 = vpop.f32.mrf.mxu0
    %v3576 = vadd.f32 %v3563, %v3575
    %v3577 = vpop.f32.mrf.mxu0
    %3578 = vdwg.mxu0
    %3579 = vmatpush.bf16.msra.mxu0 %v3062
    %3580 = vmatpush.bf16.msra.mxu0 %v3058
    %3581 = vmatpush.bf16.msra.mxu0 %v3054
    %3582 = vmatpush.bf16.msra.mxu0 %v3050
    %3583 = vmatpush.bf16.msra.mxu0 %v3046
    %3584 = vmatpush.bf16.msra.mxu0 %v3042
    %3585 = vmatpush.bf16.msra.mxu0 %v3038
    %3586 = vmatpush.bf16.msra.mxu0 %v3034
    %3587 = vmatmul.bf16.gmra.mxu0 %v3235
    %v3588 = vpop.f32.mrf.mxu0
    %v3589 = vadd.f32 %v3576, %v3588
    %v3590 = vpop.f32.mrf.mxu0
    %3591 = vdwg.mxu0
    %3592 = vmatpush.bf16.msra.mxu0 %v3094
    %3593 = vmatpush.bf16.msra.mxu0 %v3090
    %3594 = vmatpush.bf16.msra.mxu0 %v3086
    %3595 = vmatpush.bf16.msra.mxu0 %v3082
    %3596 = vmatpush.bf16.msra.mxu0 %v3078
    %3597 = vmatpush.bf16.msra.mxu0 %v3074
    %3598 = vmatpush.bf16.msra.mxu0 %v3070
    %3599 = vmatpush.bf16.msra.mxu0 %v3066
    %3600 = vmatmul.bf16.gmra.mxu0 %v3236
    %v3601 = vpop.f32.mrf.mxu0
    %v3602 = vadd.f32 %v3589, %v3601
    %v3603 = vpop.f32.mrf.mxu0
    %3604 = vdwg.mxu0
    %3605 = vmatpush.bf16.msra.mxu0 %v3126
    %3606 = vmatpush.bf16.msra.mxu0 %v3122
    %3607 = vmatpush.bf16.msra.mxu0 %v3118
    %3608 = vmatpush.bf16.msra.mxu0 %v3114
    %3609 = vmatpush.bf16.msra.mxu0 %v3110
    %3610 = vmatpush.bf16.msra.mxu0 %v3106
    %3611 = vmatpush.bf16.msra.mxu0 %v3102
    %3612 = vmatpush.bf16.msra.mxu0 %v3098
    %3613 = vmatmul.bf16.gmra.mxu0 %v3237
    %v3614 = vpop.f32.mrf.mxu0
    %v3615 = vadd.f32 %v3602, %v3614
    %v3616 = vpop.f32.mrf.mxu0
    %3617 = vdwg.mxu0
    %3618 = vmatpush.bf16.msra.mxu0 %v3158
    %3619 = vmatpush.bf16.msra.mxu0 %v3154
    %3620 = vmatpush.bf16.msra.mxu0 %v3150
    %3621 = vmatpush.bf16.msra.mxu0 %v3146
    %3622 = vmatpush.bf16.msra.mxu0 %v3142
    %3623 = vmatpush.bf16.msra.mxu0 %v3138
    %3624 = vmatpush.bf16.msra.mxu0 %v3134
    %3625 = vmatpush.bf16.msra.mxu0 %v3130
    %3626 = vmatmul.bf16.gmra.mxu0 %v3238
    %v3627 = vpop.f32.mrf.mxu0
    %v3628 = vadd.f32 %v3615, %v3627
    %v3629 = vpop.f32.mrf.mxu0
    %3630 = vdwg.mxu0
    %3631 = vmatpush.bf16.msra.mxu0 %v3190
    %3632 = vmatpush.bf16.msra.mxu0 %v3186
    %3633 = vmatpush.bf16.msra.mxu0 %v3182
    %3634 = vmatpush.bf16.msra.mxu0 %v3178
    %3635 = vmatpush.bf16.msra.mxu0 %v3174
    %3636 = vmatpush.bf16.msra.mxu0 %v3170
    %3637 = vmatpush.bf16.msra.mxu0 %v3166
    %3638 = vmatpush.bf16.msra.mxu0 %v3162
    %3639 = vmatmul.bf16.gmra.mxu0 %v3239
    %v3640 = vpop.f32.mrf.mxu0
    %v3641 = vadd.f32 %v3628, %v3640
    %v3642 = vpop.f32.mrf.mxu0
    %3643 = vdwg.mxu0
    %3644 = vmatpush.bf16.msra.mxu0 %v3222
    %3645 = vmatpush.bf16.msra.mxu0 %v3218
    %3646 = vmatpush.bf16.msra.mxu0 %v3214
    %3647 = vmatpush.bf16.msra.mxu0 %v3210
    %3648 = vmatpush.bf16.msra.mxu0 %v3206
    %3649 = vmatpush.bf16.msra.mxu0 %v3202
    %3650 = vmatpush.bf16.msra.mxu0 %v3198
    %3651 = vmatpush.bf16.msra.mxu0 %v3194
    %3652 = vmatmul.bf16.gmra.mxu0 %v3240
    %v3653 = vpop.f32.mrf.mxu0
    %v3654 = vadd.f32 %v3641, %v3653
    %v3655 = vpop.f32.mrf.mxu0
    %3656 = vdwg.mxu0
    %3657 = vmatpush.bf16.msra.mxu0 %v2743
    %3658 = vmatpush.bf16.msra.mxu0 %v2739
    %3659 = vmatpush.bf16.msra.mxu0 %v2735
    %3660 = vmatpush.bf16.msra.mxu0 %v2731
    %3661 = vmatpush.bf16.msra.mxu0 %v2727
    %3662 = vmatpush.bf16.msra.mxu0 %v2723
    %3663 = vmatpush.bf16.msra.mxu0 %v2719
    %3664 = vmatpush.bf16.msra.mxu0 %v2715
    %3665 = vmatmul.bf16.gmra.mxu0 %v3225
    %v3666 = vpop.f32.mrf.mxu0
    %v3667 = vadd.f32 0.0, %v3666
    %v3668 = vpop.f32.mrf.mxu0
    %3669 = vdwg.mxu0
    %3670 = vmatpush.bf16.msra.mxu0 %v2775
    %3671 = vmatpush.bf16.msra.mxu0 %v2771
    %3672 = vmatpush.bf16.msra.mxu0 %v2767
    %3673 = vmatpush.bf16.msra.mxu0 %v2763
    %3674 = vmatpush.bf16.msra.mxu0 %v2759
    %3675 = vmatpush.bf16.msra.mxu0 %v2755
    %3676 = vmatpush.bf16.msra.mxu0 %v2751
    %3677 = vmatpush.bf16.msra.mxu0 %v2747
    %3678 = vmatmul.bf16.gmra.mxu0 %v3226
    %v3679 = vpop.f32.mrf.mxu0
    %v3680 = vadd.f32 %v3667, %v3679
    %v3681 = vpop.f32.mrf.mxu0
    %3682 = vdwg.mxu0
    %3683 = vmatpush.bf16.msra.mxu0 %v2807
    %3684 = vmatpush.bf16.msra.mxu0 %v2803
    %3685 = vmatpush.bf16.msra.mxu0 %v2799
    %3686 = vmatpush.bf16.msra.mxu0 %v2795
    %3687 = vmatpush.bf16.msra.mxu0 %v2791
    %3688 = vmatpush.bf16.msra.mxu0 %v2787
    %3689 = vmatpush.bf16.msra.mxu0 %v2783
    %3690 = vmatpush.bf16.msra.mxu0 %v2779
    %3691 = vmatmul.bf16.gmra.mxu0 %v3227
    %v3692 = vpop.f32.mrf.mxu0
    %v3693 = vadd.f32 %v3680, %v3692
    %v3694 = vpop.f32.mrf.mxu0
    %3695 = vdwg.mxu0
    %3696 = vmatpush.bf16.msra.mxu0 %v2839
    %3697 = vmatpush.bf16.msra.mxu0 %v2835
    %3698 = vmatpush.bf16.msra.mxu0 %v2831
    %3699 = vmatpush.bf16.msra.mxu0 %v2827
    %3700 = vmatpush.bf16.msra.mxu0 %v2823
    %3701 = vmatpush.bf16.msra.mxu0 %v2819
    %3702 = vmatpush.bf16.msra.mxu0 %v2815
    %3703 = vmatpush.bf16.msra.mxu0 %v2811
    %3704 = vmatmul.bf16.gmra.mxu0 %v3228
    %v3705 = vpop.f32.mrf.mxu0
    %v3706 = vadd.f32 %v3693, %v3705
    %v3707 = vpop.f32.mrf.mxu0
    %3708 = vdwg.mxu0
    %3709 = vmatpush.bf16.msra.mxu0 %v2871
    %3710 = vmatpush.bf16.msra.mxu0 %v2867
    %3711 = vmatpush.bf16.msra.mxu0 %v2863
    %3712 = vmatpush.bf16.msra.mxu0 %v2859
    %3713 = vmatpush.bf16.msra.mxu0 %v2855
    %3714 = vmatpush.bf16.msra.mxu0 %v2851
    %3715 = vmatpush.bf16.msra.mxu0 %v2847
    %3716 = vmatpush.bf16.msra.mxu0 %v2843
    %3717 = vmatmul.bf16.gmra.mxu0 %v3229
    %v3718 = vpop.f32.mrf.mxu0
    %v3719 = vadd.f32 %v3706, %v3718
    %v3720 = vpop.f32.mrf.mxu0
    %3721 = vdwg.mxu0
    %3722 = vmatpush.bf16.msra.mxu0 %v2903
    %3723 = vmatpush.bf16.msra.mxu0 %v2899
    %3724 = vmatpush.bf16.msra.mxu0 %v2895
    %3725 = vmatpush.bf16.msra.mxu0 %v2891
    %3726 = vmatpush.bf16.msra.mxu0 %v2887
    %3727 = vmatpush.bf16.msra.mxu0 %v2883
    %3728 = vmatpush.bf16.msra.mxu0 %v2879
    %3729 = vmatpush.bf16.msra.mxu0 %v2875
    %3730 = vmatmul.bf16.gmra.mxu0 %v3230
    %v3731 = vpop.f32.mrf.mxu0
    %v3732 = vadd.f32 %v3719, %v3731
    %v3733 = vpop.f32.mrf.mxu0
    %3734 = vdwg.mxu0
    %3735 = vmatpush.bf16.msra.mxu0 %v2935
    %3736 = vmatpush.bf16.msra.mxu0 %v2931
    %3737 = vmatpush.bf16.msra.mxu0 %v2927
    %3738 = vmatpush.bf16.msra.mxu0 %v2923
    %3739 = vmatpush.bf16.msra.mxu0 %v2919
    %3740 = vmatpush.bf16.msra.mxu0 %v2915
    %3741 = vmatpush.bf16.msra.mxu0 %v2911
    %3742 = vmatpush.bf16.msra.mxu0 %v2907
    %3743 = vmatmul.bf16.gmra.mxu0 %v3231
    %v3744 = vpop.f32.mrf.mxu0
    %v3745 = vadd.f32 %v3732, %v3744
    %v3746 = vpop.f32.mrf.mxu0
    %3747 = vdwg.mxu0
    %3748 = vmatpush.bf16.msra.mxu0 %v2967
    %3749 = vmatpush.bf16.msra.mxu0 %v2963
    %3750 = vmatpush.bf16.msra.mxu0 %v2959
    %3751 = vmatpush.bf16.msra.mxu0 %v2955
    %3752 = vmatpush.bf16.msra.mxu0 %v2951
    %3753 = vmatpush.bf16.msra.mxu0 %v2947
    %3754 = vmatpush.bf16.msra.mxu0 %v2943
    %3755 = vmatpush.bf16.msra.mxu0 %v2939
    %3756 = vmatmul.bf16.gmra.mxu0 %v3232
    %v3757 = vpop.f32.mrf.mxu0
    %v3758 = vadd.f32 %v3745, %v3757
    %v3759 = vpop.f32.mrf.mxu0
    %3760 = vdwg.mxu0
    %3761 = vmatpush.bf16.msra.mxu0 %v2999
    %3762 = vmatpush.bf16.msra.mxu0 %v2995
    %3763 = vmatpush.bf16.msra.mxu0 %v2991
    %3764 = vmatpush.bf16.msra.mxu0 %v2987
    %3765 = vmatpush.bf16.msra.mxu0 %v2983
    %3766 = vmatpush.bf16.msra.mxu0 %v2979
    %3767 = vmatpush.bf16.msra.mxu0 %v2975
    %3768 = vmatpush.bf16.msra.mxu0 %v2971
    %3769 = vmatmul.bf16.gmra.mxu0 %v3233
    %v3770 = vpop.f32.mrf.mxu0
    %v3771 = vadd.f32 %v3758, %v3770
    %v3772 = vpop.f32.mrf.mxu0
    %3773 = vdwg.mxu0
    %3774 = vmatpush.bf16.msra.mxu0 %v3031
    %3775 = vmatpush.bf16.msra.mxu0 %v3027
    %3776 = vmatpush.bf16.msra.mxu0 %v3023
    %3777 = vmatpush.bf16.msra.mxu0 %v3019
    %3778 = vmatpush.bf16.msra.mxu0 %v3015
    %3779 = vmatpush.bf16.msra.mxu0 %v3011
    %3780 = vmatpush.bf16.msra.mxu0 %v3007
    %3781 = vmatpush.bf16.msra.mxu0 %v3003
    %3782 = vmatmul.bf16.gmra.mxu0 %v3234
    %v3783 = vpop.f32.mrf.mxu0
    %v3784 = vadd.f32 %v3771, %v3783
    %v3785 = vpop.f32.mrf.mxu0
    %3786 = vdwg.mxu0
    %3787 = vmatpush.bf16.msra.mxu0 %v3063
    %3788 = vmatpush.bf16.msra.mxu0 %v3059
    %3789 = vmatpush.bf16.msra.mxu0 %v3055
    %3790 = vmatpush.bf16.msra.mxu0 %v3051
    %3791 = vmatpush.bf16.msra.mxu0 %v3047
    %3792 = vmatpush.bf16.msra.mxu0 %v3043
    %3793 = vmatpush.bf16.msra.mxu0 %v3039
    %3794 = vmatpush.bf16.msra.mxu0 %v3035
    %3795 = vmatmul.bf16.gmra.mxu0 %v3235
    %v3796 = vpop.f32.mrf.mxu0
    %v3797 = vadd.f32 %v3784, %v3796
    %v3798 = vpop.f32.mrf.mxu0
    %3799 = vdwg.mxu0
    %3800 = vmatpush.bf16.msra.mxu0 %v3095
    %3801 = vmatpush.bf16.msra.mxu0 %v3091
    %3802 = vmatpush.bf16.msra.mxu0 %v3087
    %3803 = vmatpush.bf16.msra.mxu0 %v3083
    %3804 = vmatpush.bf16.msra.mxu0 %v3079
    %3805 = vmatpush.bf16.msra.mxu0 %v3075
    %3806 = vmatpush.bf16.msra.mxu0 %v3071
    %3807 = vmatpush.bf16.msra.mxu0 %v3067
    %3808 = vmatmul.bf16.gmra.mxu0 %v3236
    %v3809 = vpop.f32.mrf.mxu0
    %v3810 = vadd.f32 %v3797, %v3809
    %v3811 = vpop.f32.mrf.mxu0
    %3812 = vdwg.mxu0
    %3813 = vmatpush.bf16.msra.mxu0 %v3127
    %3814 = vmatpush.bf16.msra.mxu0 %v3123
    %3815 = vmatpush.bf16.msra.mxu0 %v3119
    %3816 = vmatpush.bf16.msra.mxu0 %v3115
    %3817 = vmatpush.bf16.msra.mxu0 %v3111
    %3818 = vmatpush.bf16.msra.mxu0 %v3107
    %3819 = vmatpush.bf16.msra.mxu0 %v3103
    %3820 = vmatpush.bf16.msra.mxu0 %v3099
    %3821 = vmatmul.bf16.gmra.mxu0 %v3237
    %v3822 = vpop.f32.mrf.mxu0
    %v3823 = vadd.f32 %v3810, %v3822
    %v3824 = vpop.f32.mrf.mxu0
    %3825 = vdwg.mxu0
    %3826 = vmatpush.bf16.msra.mxu0 %v3159
    %3827 = vmatpush.bf16.msra.mxu0 %v3155
    %3828 = vmatpush.bf16.msra.mxu0 %v3151
    %3829 = vmatpush.bf16.msra.mxu0 %v3147
    %3830 = vmatpush.bf16.msra.mxu0 %v3143
    %3831 = vmatpush.bf16.msra.mxu0 %v3139
    %3832 = vmatpush.bf16.msra.mxu0 %v3135
    %3833 = vmatpush.bf16.msra.mxu0 %v3131
    %3834 = vmatmul.bf16.gmra.mxu0 %v3238
    %v3835 = vpop.f32.mrf.mxu0
    %v3836 = vadd.f32 %v3823, %v3835
    %v3837 = vpop.f32.mrf.mxu0
    %3838 = vdwg.mxu0
    %3839 = vmatpush.bf16.msra.mxu0 %v3191
    %3840 = vmatpush.bf16.msra.mxu0 %v3187
    %3841 = vmatpush.bf16.msra.mxu0 %v3183
    %3842 = vmatpush.bf16.msra.mxu0 %v3179
    %3843 = vmatpush.bf16.msra.mxu0 %v3175
    %3844 = vmatpush.bf16.msra.mxu0 %v3171
    %3845 = vmatpush.bf16.msra.mxu0 %v3167
    %3846 = vmatpush.bf16.msra.mxu0 %v3163
    %3847 = vmatmul.bf16.gmra.mxu0 %v3239
    %v3848 = vpop.f32.mrf.mxu0
    %v3849 = vadd.f32 %v3836, %v3848
    %v3850 = vpop.f32.mrf.mxu0
    %3851 = vdwg.mxu0
    %3852 = vmatpush.bf16.msra.mxu0 %v3223
    %3853 = vmatpush.bf16.msra.mxu0 %v3219
    %3854 = vmatpush.bf16.msra.mxu0 %v3215
    %3855 = vmatpush.bf16.msra.mxu0 %v3211
    %3856 = vmatpush.bf16.msra.mxu0 %v3207
    %3857 = vmatpush.bf16.msra.mxu0 %v3203
    %3858 = vmatpush.bf16.msra.mxu0 %v3199
    %3859 = vmatpush.bf16.msra.mxu0 %v3195
    %3860 = vmatmul.bf16.gmra.mxu0 %v3240
    %v3861 = vpop.f32.mrf.mxu0
    %v3862 = vadd.f32 %v3849, %v3861
    %v3863 = vpop.f32.mrf.mxu0
    %3864 = vdwg.mxu0
    %3865 = vmatpush.bf16.msra.mxu0 %v2744
    %3866 = vmatpush.bf16.msra.mxu0 %v2740
    %3867 = vmatpush.bf16.msra.mxu0 %v2736
    %3868 = vmatpush.bf16.msra.mxu0 %v2732
    %3869 = vmatpush.bf16.msra.mxu0 %v2728
    %3870 = vmatpush.bf16.msra.mxu0 %v2724
    %3871 = vmatpush.bf16.msra.mxu0 %v2720
    %3872 = vmatpush.bf16.msra.mxu0 %v2716
    %3873 = vmatmul.bf16.gmra.mxu0 %v3225
    %v3874 = vpop.f32.mrf.mxu0
    %v3875 = vadd.f32 0.0, %v3874
    %v3876 = vpop.f32.mrf.mxu0
    %3877 = vdwg.mxu0
    %3878 = vmatpush.bf16.msra.mxu0 %v2776
    %3879 = vmatpush.bf16.msra.mxu0 %v2772
    %3880 = vmatpush.bf16.msra.mxu0 %v2768
    %3881 = vmatpush.bf16.msra.mxu0 %v2764
    %3882 = vmatpush.bf16.msra.mxu0 %v2760
    %3883 = vmatpush.bf16.msra.mxu0 %v2756
    %3884 = vmatpush.bf16.msra.mxu0 %v2752
    %3885 = vmatpush.bf16.msra.mxu0 %v2748
    %3886 = vmatmul.bf16.gmra.mxu0 %v3226
    %v3887 = vpop.f32.mrf.mxu0
    %v3888 = vadd.f32 %v3875, %v3887
    %v3889 = vpop.f32.mrf.mxu0
    %3890 = vdwg.mxu0
    %3891 = vmatpush.bf16.msra.mxu0 %v2808
    %3892 = vmatpush.bf16.msra.mxu0 %v2804
    %3893 = vmatpush.bf16.msra.mxu0 %v2800
    %3894 = vmatpush.bf16.msra.mxu0 %v2796
    %3895 = vmatpush.bf16.msra.mxu0 %v2792
    %3896 = vmatpush.bf16.msra.mxu0 %v2788
    %3897 = vmatpush.bf16.msra.mxu0 %v2784
    %3898 = vmatpush.bf16.msra.mxu0 %v2780
    %3899 = vmatmul.bf16.gmra.mxu0 %v3227
    %v3900 = vpop.f32.mrf.mxu0
    %v3901 = vadd.f32 %v3888, %v3900
    %v3902 = vpop.f32.mrf.mxu0
    %3903 = vdwg.mxu0
    %3904 = vmatpush.bf16.msra.mxu0 %v2840
    %3905 = vmatpush.bf16.msra.mxu0 %v2836
    %3906 = vmatpush.bf16.msra.mxu0 %v2832
    %3907 = vmatpush.bf16.msra.mxu0 %v2828
    %3908 = vmatpush.bf16.msra.mxu0 %v2824
    %3909 = vmatpush.bf16.msra.mxu0 %v2820
    %3910 = vmatpush.bf16.msra.mxu0 %v2816
    %3911 = vmatpush.bf16.msra.mxu0 %v2812
    %3912 = vmatmul.bf16.gmra.mxu0 %v3228
    %v3913 = vpop.f32.mrf.mxu0
    %v3914 = vadd.f32 %v3901, %v3913
    %v3915 = vpop.f32.mrf.mxu0
    %3916 = vdwg.mxu0
    %3917 = vmatpush.bf16.msra.mxu0 %v2872
    %3918 = vmatpush.bf16.msra.mxu0 %v2868
    %3919 = vmatpush.bf16.msra.mxu0 %v2864
    %3920 = vmatpush.bf16.msra.mxu0 %v2860
    %3921 = vmatpush.bf16.msra.mxu0 %v2856
    %3922 = vmatpush.bf16.msra.mxu0 %v2852
    %3923 = vmatpush.bf16.msra.mxu0 %v2848
    %3924 = vmatpush.bf16.msra.mxu0 %v2844
    %3925 = vmatmul.bf16.gmra.mxu0 %v3229
    %v3926 = vpop.f32.mrf.mxu0
    %v3927 = vadd.f32 %v3914, %v3926
    %v3928 = vpop.f32.mrf.mxu0
    %3929 = vdwg.mxu0
    %3930 = vmatpush.bf16.msra.mxu0 %v2904
    %3931 = vmatpush.bf16.msra.mxu0 %v2900
    %3932 = vmatpush.bf16.msra.mxu0 %v2896
    %3933 = vmatpush.bf16.msra.mxu0 %v2892
    %3934 = vmatpush.bf16.msra.mxu0 %v2888
    %3935 = vmatpush.bf16.msra.mxu0 %v2884
    %3936 = vmatpush.bf16.msra.mxu0 %v2880
    %3937 = vmatpush.bf16.msra.mxu0 %v2876
    %3938 = vmatmul.bf16.gmra.mxu0 %v3230
    %v3939 = vpop.f32.mrf.mxu0
    %v3940 = vadd.f32 %v3927, %v3939
    %v3941 = vpop.f32.mrf.mxu0
    %3942 = vdwg.mxu0
    %3943 = vmatpush.bf16.msra.mxu0 %v2936
    %3944 = vmatpush.bf16.msra.mxu0 %v2932
    %3945 = vmatpush.bf16.msra.mxu0 %v2928
    %3946 = vmatpush.bf16.msra.mxu0 %v2924
    %3947 = vmatpush.bf16.msra.mxu0 %v2920
    %3948 = vmatpush.bf16.msra.mxu0 %v2916
    %3949 = vmatpush.bf16.msra.mxu0 %v2912
    %3950 = vmatpush.bf16.msra.mxu0 %v2908
    %3951 = vmatmul.bf16.gmra.mxu0 %v3231
    %v3952 = vpop.f32.mrf.mxu0
    %v3953 = vadd.f32 %v3940, %v3952
    %v3954 = vpop.f32.mrf.mxu0
    %3955 = vdwg.mxu0
    %3956 = vmatpush.bf16.msra.mxu0 %v2968
    %3957 = vmatpush.bf16.msra.mxu0 %v2964
    %3958 = vmatpush.bf16.msra.mxu0 %v2960
    %3959 = vmatpush.bf16.msra.mxu0 %v2956
    %3960 = vmatpush.bf16.msra.mxu0 %v2952
    %3961 = vmatpush.bf16.msra.mxu0 %v2948
    %3962 = vmatpush.bf16.msra.mxu0 %v2944
    %3963 = vmatpush.bf16.msra.mxu0 %v2940
    %3964 = vmatmul.bf16.gmra.mxu0 %v3232
    %v3965 = vpop.f32.mrf.mxu0
    %v3966 = vadd.f32 %v3953, %v3965
    %v3967 = vpop.f32.mrf.mxu0
    %3968 = vdwg.mxu0
    %3969 = vmatpush.bf16.msra.mxu0 %v3000
    %3970 = vmatpush.bf16.msra.mxu0 %v2996
    %3971 = vmatpush.bf16.msra.mxu0 %v2992
    %3972 = vmatpush.bf16.msra.mxu0 %v2988
    %3973 = vmatpush.bf16.msra.mxu0 %v2984
    %3974 = vmatpush.bf16.msra.mxu0 %v2980
    %3975 = vmatpush.bf16.msra.mxu0 %v2976
    %3976 = vmatpush.bf16.msra.mxu0 %v2972
    %3977 = vmatmul.bf16.gmra.mxu0 %v3233
    %v3978 = vpop.f32.mrf.mxu0
    %v3979 = vadd.f32 %v3966, %v3978
    %v3980 = vpop.f32.mrf.mxu0
    %3981 = vdwg.mxu0
    %3982 = vmatpush.bf16.msra.mxu0 %v3032
    %3983 = vmatpush.bf16.msra.mxu0 %v3028
    %3984 = vmatpush.bf16.msra.mxu0 %v3024
    %3985 = vmatpush.bf16.msra.mxu0 %v3020
    %3986 = vmatpush.bf16.msra.mxu0 %v3016
    %3987 = vmatpush.bf16.msra.mxu0 %v3012
    %3988 = vmatpush.bf16.msra.mxu0 %v3008
    %3989 = vmatpush.bf16.msra.mxu0 %v3004
    %3990 = vmatmul.bf16.gmra.mxu0 %v3234
    %v3991 = vpop.f32.mrf.mxu0
    %v3992 = vadd.f32 %v3979, %v3991
    %v3993 = vpop.f32.mrf.mxu0
    %3994 = vdwg.mxu0
    %3995 = vmatpush.bf16.msra.mxu0 %v3064
    %3996 = vmatpush.bf16.msra.mxu0 %v3060
    %3997 = vmatpush.bf16.msra.mxu0 %v3056
    %3998 = vmatpush.bf16.msra.mxu0 %v3052
    %3999 = vmatpush.bf16.msra.mxu0 %v3048
    %4000 = vmatpush.bf16.msra.mxu0 %v3044
    %4001 = vmatpush.bf16.msra.mxu0 %v3040
    %4002 = vmatpush.bf16.msra.mxu0 %v3036
    %4003 = vmatmul.bf16.gmra.mxu0 %v3235
    %v4004 = vpop.f32.mrf.mxu0
    %v4005 = vadd.f32 %v3992, %v4004
    %v4006 = vpop.f32.mrf.mxu0
    %4007 = vdwg.mxu0
    %4008 = vmatpush.bf16.msra.mxu0 %v3096
    %4009 = vmatpush.bf16.msra.mxu0 %v3092
    %4010 = vmatpush.bf16.msra.mxu0 %v3088
    %4011 = vmatpush.bf16.msra.mxu0 %v3084
    %4012 = vmatpush.bf16.msra.mxu0 %v3080
    %4013 = vmatpush.bf16.msra.mxu0 %v3076
    %4014 = vmatpush.bf16.msra.mxu0 %v3072
    %4015 = vmatpush.bf16.msra.mxu0 %v3068
    %4016 = vmatmul.bf16.gmra.mxu0 %v3236
    %v4017 = vpop.f32.mrf.mxu0
    %v4018 = vadd.f32 %v4005, %v4017
    %v4019 = vpop.f32.mrf.mxu0
    %4020 = vdwg.mxu0
    %4021 = vmatpush.bf16.msra.mxu0 %v3128
    %4022 = vmatpush.bf16.msra.mxu0 %v3124
    %4023 = vmatpush.bf16.msra.mxu0 %v3120
    %4024 = vmatpush.bf16.msra.mxu0 %v3116
    %4025 = vmatpush.bf16.msra.mxu0 %v3112
    %4026 = vmatpush.bf16.msra.mxu0 %v3108
    %4027 = vmatpush.bf16.msra.mxu0 %v3104
    %4028 = vmatpush.bf16.msra.mxu0 %v3100
    %4029 = vmatmul.bf16.gmra.mxu0 %v3237
    %v4030 = vpop.f32.mrf.mxu0
    %v4031 = vadd.f32 %v4018, %v4030
    %v4032 = vpop.f32.mrf.mxu0
    %4033 = vdwg.mxu0
    %4034 = vmatpush.bf16.msra.mxu0 %v3160
    %4035 = vmatpush.bf16.msra.mxu0 %v3156
    %4036 = vmatpush.bf16.msra.mxu0 %v3152
    %4037 = vmatpush.bf16.msra.mxu0 %v3148
    %4038 = vmatpush.bf16.msra.mxu0 %v3144
    %4039 = vmatpush.bf16.msra.mxu0 %v3140
    %4040 = vmatpush.bf16.msra.mxu0 %v3136
    %4041 = vmatpush.bf16.msra.mxu0 %v3132
    %4042 = vmatmul.bf16.gmra.mxu0 %v3238
    %v4043 = vpop.f32.mrf.mxu0
    %v4044 = vadd.f32 %v4031, %v4043
    %v4045 = vpop.f32.mrf.mxu0
    %4046 = vdwg.mxu0
    %4047 = vmatpush.bf16.msra.mxu0 %v3192
    %4048 = vmatpush.bf16.msra.mxu0 %v3188
    %4049 = vmatpush.bf16.msra.mxu0 %v3184
    %4050 = vmatpush.bf16.msra.mxu0 %v3180
    %4051 = vmatpush.bf16.msra.mxu0 %v3176
    %4052 = vmatpush.bf16.msra.mxu0 %v3172
    %4053 = vmatpush.bf16.msra.mxu0 %v3168
    %4054 = vmatpush.bf16.msra.mxu0 %v3164
    %4055 = vmatmul.bf16.gmra.mxu0 %v3239
    %v4056 = vpop.f32.mrf.mxu0
    %v4057 = vadd.f32 %v4044, %v4056
    %v4058 = vpop.f32.mrf.mxu0
    %4059 = vdwg.mxu0
    %4060 = vmatpush.bf16.msra.mxu0 %v3224
    %4061 = vmatpush.bf16.msra.mxu0 %v3220
    %4062 = vmatpush.bf16.msra.mxu0 %v3216
    %4063 = vmatpush.bf16.msra.mxu0 %v3212
    %4064 = vmatpush.bf16.msra.mxu0 %v3208
    %4065 = vmatpush.bf16.msra.mxu0 %v3204
    %4066 = vmatpush.bf16.msra.mxu0 %v3200
    %4067 = vmatpush.bf16.msra.mxu0 %v3196
    %4068 = vmatmul.bf16.gmra.mxu0 %v3240
    %v4069 = vpop.f32.mrf.mxu0
    %v4070 = vadd.f32 %v4057, %v4069
    %v4071 = vpop.f32.mrf.mxu0
    %4072 = vdwg.mxu0
    %v4073 = vld [vmem:[%s4] sm:$0xf]
    %v4075 = vperm.slane %v4073, 0
    %v4076 = vperm.slane %v4073, 1
    %v4077 = vperm.slane %v4073, 2
    %v4078 = vperm.slane %v4073, 3
    %v4083 = vmul.f32 %v3446, %v4075
    %v4084 = vmul.f32 %v3654, %v4076
    %v4085 = vmul.f32 %v3862, %v4077
    %v4086 = vmul.f32 %v4070, %v4078
    %v4087 = vld [vmem:[%s5] sm:$0xf]
    %v4089 = vperm.slane %v4087, 0
    %v4090 = vperm.slane %v4087, 1
    %v4091 = vperm.slane %v4087, 2
    %v4092 = vperm.slane %v4087, 3
    %v4097 = vadd.f32 %v4083, %v4089
    %v4098 = vadd.f32 %v4084, %v4090
    %v4099 = vadd.f32 %v4085, %v4091
    %v4100 = vadd.f32 %v4086, %v4092
    %v4101 = vmax.f32 %v4097, 0.0
    %v4102 = vmax.f32 %v4098, 0.0
    %v4103 = vmax.f32 %v4099, 0.0
    %v4104 = vmax.f32 %v4100, 0.0
    %v4105 = vpack.c.bf16 %v4101, %v4101
    %v4106 = vpack.c.bf16 %v4102, %v4102
    %v4107 = vpack.c.bf16 %v4103, %v4103
    %v4108 = vpack.c.bf16 %v4104, %v4104
    %v4109 = vld [vmem:[%s6] sm:$0xf]
    %v4110 = vld [vmem:[%s6 + $0x4] sm:$0xf]
    %v4111 = vld [vmem:[%s6 + $0x8] sm:$0xf]
    %v4112 = vld [vmem:[%s6 + $0xc] sm:$0xf]
    %v4113 = vld [vmem:[%s6 + $0x10] sm:$0xf]
    %v4114 = vld [vmem:[%s6 + $0x14] sm:$0xf]
    %v4115 = vld [vmem:[%s6 + $0x18] sm:$0xf]
    %v4116 = vld [vmem:[%s6 + $0x1c] sm:$0xf]
    %v4117 = vld [vmem:[%s6 + $0x20] sm:$0xf]
    %v4118 = vld [vmem:[%s6 + $0x24] sm:$0xf]
    %v4119 = vld [vmem:[%s6 + $0x28] sm:$0xf]
    %v4120 = vld [vmem:[%s6 + $0x2c] sm:$0xf]
    %v4121 = vld [vmem:[%s6 + $0x30] sm:$0xf]
    %v4122 = vld [vmem:[%s6 + $0x34] sm:$0xf]
    %v4123 = vld [vmem:[%s6 + $0x38] sm:$0xf]
    %v4124 = vld [vmem:[%s6 + $0x3c] sm:$0xf]
    %v4125 = vld [vmem:[%s6 + $0x40] sm:$0xf]
    %v4126 = vld [vmem:[%s6 + $0x44] sm:$0xf]
    %v4127 = vld [vmem:[%s6 + $0x48] sm:$0xf]
    %v4128 = vld [vmem:[%s6 + $0x4c] sm:$0xf]
    %v4129 = vld [vmem:[%s6 + $0x50] sm:$0xf]
    %v4130 = vld [vmem:[%s6 + $0x54] sm:$0xf]
    %v4131 = vld [vmem:[%s6 + $0x58] sm:$0xf]
    %v4132 = vld [vmem:[%s6 + $0x5c] sm:$0xf]
    %v4133 = vld [vmem:[%s6 + $0x60] sm:$0xf]
    %v4134 = vld [vmem:[%s6 + $0x64] sm:$0xf]
    %v4135 = vld [vmem:[%s6 + $0x68] sm:$0xf]
    %v4136 = vld [vmem:[%s6 + $0x6c] sm:$0xf]
    %v4137 = vld [vmem:[%s6 + $0x70] sm:$0xf]
    %v4138 = vld [vmem:[%s6 + $0x74] sm:$0xf]
    %v4139 = vld [vmem:[%s6 + $0x78] sm:$0xf]
    %v4140 = vld [vmem:[%s6 + $0x7c] sm:$0xf]
    %v4141 = vld [vmem:[%s6 + $0x80] sm:$0xf]
    %v4142 = vld [vmem:[%s6 + $0x84] sm:$0xf]
    %v4143 = vld [vmem:[%s6 + $0x88] sm:$0xf]
    %v4144 = vld [vmem:[%s6 + $0x8c] sm:$0xf]
    %v4145 = vld [vmem:[%s6 + $0x90] sm:$0xf]
    %v4146 = vld [vmem:[%s6 + $0x94] sm:$0xf]
    %v4147 = vld [vmem:[%s6 + $0x98] sm:$0xf]
    %v4148 = vld [vmem:[%s6 + $0x9c] sm:$0xf]
    %v4149 = vld [vmem:[%s6 + $0xa0] sm:$0xf]
    %v4150 = vld [vmem:[%s6 + $0xa4] sm:$0xf]
    %v4151 = vld [vmem:[%s6 + $0xa8] sm:$0xf]
    %v4152 = vld [vmem:[%s6 + $0xac] sm:$0xf]
    %v4153 = vld [vmem:[%s6 + $0xb0] sm:$0xf]
    %v4154 = vld [vmem:[%s6 + $0xb4] sm:$0xf]
    %v4155 = vld [vmem:[%s6 + $0xb8] sm:$0xf]
    %v4156 = vld [vmem:[%s6 + $0xbc] sm:$0xf]
    %v4157 = vld [vmem:[%s6 + $0xc0] sm:$0xf]
    %v4158 = vld [vmem:[%s6 + $0xc4] sm:$0xf]
    %v4159 = vld [vmem:[%s6 + $0xc8] sm:$0xf]
    %v4160 = vld [vmem:[%s6 + $0xcc] sm:$0xf]
    %v4161 = vld [vmem:[%s6 + $0xd0] sm:$0xf]
    %v4162 = vld [vmem:[%s6 + $0xd4] sm:$0xf]
    %v4163 = vld [vmem:[%s6 + $0xd8] sm:$0xf]
    %v4164 = vld [vmem:[%s6 + $0xdc] sm:$0xf]
    %v4165 = vld [vmem:[%s6 + $0xe0] sm:$0xf]
    %v4166 = vld [vmem:[%s6 + $0xe4] sm:$0xf]
    %v4167 = vld [vmem:[%s6 + $0xe8] sm:$0xf]
    %v4168 = vld [vmem:[%s6 + $0xec] sm:$0xf]
    %v4169 = vld [vmem:[%s6 + $0xf0] sm:$0xf]
    %v4170 = vld [vmem:[%s6 + $0xf4] sm:$0xf]
    %v4171 = vld [vmem:[%s6 + $0xf8] sm:$0xf]
    %v4172 = vld [vmem:[%s6 + $0xfc] sm:$0xf]
    %v4173 = vld [vmem:[%s7] sm:$0x1]
    %v4175 = vperm.slane %v4173, 0
    %v4241 = vunpack.c.l.b16 %v4109
    %v4242 = vunpack.c.l.b16 %v4110
    %v4243 = vunpack.c.l.b16 %v4111
    %v4244 = vunpack.c.l.b16 %v4112
    %v4245 = vunpack.c.l.b16 %v4113
    %v4246 = vunpack.c.l.b16 %v4114
    %v4247 = vunpack.c.l.b16 %v4115
    %v4248 = vunpack.c.l.b16 %v4116
    %v4249 = vunpack.c.l.b16 %v4117
    %v4250 = vunpack.c.l.b16 %v4118
    %v4251 = vunpack.c.l.b16 %v4119
    %v4252 = vunpack.c.l.b16 %v4120
    %v4253 = vunpack.c.l.b16 %v4121
    %v4254 = vunpack.c.l.b16 %v4122
    %v4255 = vunpack.c.l.b16 %v4123
    %v4256 = vunpack.c.l.b16 %v4124
    %v4257 = vunpack.c.l.b16 %v4125
    %v4258 = vunpack.c.l.b16 %v4126
    %v4259 = vunpack.c.l.b16 %v4127
    %v4260 = vunpack.c.l.b16 %v4128
    %v4261 = vunpack.c.l.b16 %v4129
    %v4262 = vunpack.c.l.b16 %v4130
    %v4263 = vunpack.c.l.b16 %v4131
    %v4264 = vunpack.c.l.b16 %v4132
    %v4265 = vunpack.c.l.b16 %v4133
    %v4266 = vunpack.c.l.b16 %v4134
    %v4267 = vunpack.c.l.b16 %v4135
    %v4268 = vunpack.c.l.b16 %v4136
    %v4269 = vunpack.c.l.b16 %v4137
    %v4270 = vunpack.c.l.b16 %v4138
    %v4271 = vunpack.c.l.b16 %v4139
    %v4272 = vunpack.c.l.b16 %v4140
    %v4273 = vunpack.c.l.b16 %v4141
    %v4274 = vunpack.c.l.b16 %v4142
    %v4275 = vunpack.c.l.b16 %v4143
    %v4276 = vunpack.c.l.b16 %v4144
    %v4277 = vunpack.c.l.b16 %v4145
    %v4278 = vunpack.c.l.b16 %v4146
    %v4279 = vunpack.c.l.b16 %v4147
    %v4280 = vunpack.c.l.b16 %v4148
    %v4281 = vunpack.c.l.b16 %v4149
    %v4282 = vunpack.c.l.b16 %v4150
    %v4283 = vunpack.c.l.b16 %v4151
    %v4284 = vunpack.c.l.b16 %v4152
    %v4285 = vunpack.c.l.b16 %v4153
    %v4286 = vunpack.c.l.b16 %v4154
    %v4287 = vunpack.c.l.b16 %v4155
    %v4288 = vunpack.c.l.b16 %v4156
    %v4289 = vunpack.c.l.b16 %v4157
    %v4290 = vunpack.c.l.b16 %v4158
    %v4291 = vunpack.c.l.b16 %v4159
    %v4292 = vunpack.c.l.b16 %v4160
    %v4293 = vunpack.c.l.b16 %v4161
    %v4294 = vunpack.c.l.b16 %v4162
    %v4295 = vunpack.c.l.b16 %v4163
    %v4296 = vunpack.c.l.b16 %v4164
    %v4297 = vunpack.c.l.b16 %v4165
    %v4298 = vunpack.c.l.b16 %v4166
    %v4299 = vunpack.c.l.b16 %v4167
    %v4300 = vunpack.c.l.b16 %v4168
    %v4301 = vunpack.c.l.b16 %v4169
    %v4302 = vunpack.c.l.b16 %v4170
    %v4303 = vunpack.c.l.b16 %v4171
    %v4304 = vunpack.c.l.b16 %v4172
    %v4305 = vpack.c.b16 %v4242, %v4241
    %v4306 = vpack.c.b16 %v4244, %v4243
    %v4307 = vpack.c.b16 %v4246, %v4245
    %v4308 = vpack.c.b16 %v4248, %v4247
    %v4309 = vpack.c.b16 %v4250, %v4249
    %v4310 = vpack.c.b16 %v4252, %v4251
    %v4311 = vpack.c.b16 %v4254, %v4253
    %v4312 = vpack.c.b16 %v4256, %v4255
    %v4313 = vpack.c.b16 %v4258, %v4257
    %v4314 = vpack.c.b16 %v4260, %v4259
    %v4315 = vpack.c.b16 %v4262, %v4261
    %v4316 = vpack.c.b16 %v4264, %v4263
    %v4317 = vpack.c.b16 %v4266, %v4265
    %v4318 = vpack.c.b16 %v4268, %v4267
    %v4319 = vpack.c.b16 %v4270, %v4269
    %v4320 = vpack.c.b16 %v4272, %v4271
    %v4321 = vpack.c.b16 %v4274, %v4273
    %v4322 = vpack.c.b16 %v4276, %v4275
    %v4323 = vpack.c.b16 %v4278, %v4277
    %v4324 = vpack.c.b16 %v4280, %v4279
    %v4325 = vpack.c.b16 %v4282, %v4281
    %v4326 = vpack.c.b16 %v4284, %v4283
    %v4327 = vpack.c.b16 %v4286, %v4285
    %v4328 = vpack.c.b16 %v4288, %v4287
    %v4329 = vpack.c.b16 %v4290, %v4289
    %v4330 = vpack.c.b16 %v4292, %v4291
    %v4331 = vpack.c.b16 %v4294, %v4293
    %v4332 = vpack.c.b16 %v4296, %v4295
    %v4333 = vpack.c.b16 %v4298, %v4297
    %v4334 = vpack.c.b16 %v4300, %v4299
    %v4335 = vpack.c.b16 %v4302, %v4301
    %v4336 = vpack.c.b16 %v4304, %v4303
    %4369 = vmatpush.bf16.msra.mxu0 %v4312
    %4370 = vmatpush.bf16.msra.mxu0 %v4311
    %4371 = vmatpush.bf16.msra.mxu0 %v4310
    %4372 = vmatpush.bf16.msra.mxu0 %v4309
    %4373 = vmatpush.bf16.msra.mxu0 %v4308
    %4374 = vmatpush.bf16.msra.mxu0 %v4307
    %4375 = vmatpush.bf16.msra.mxu0 %v4306
    %4376 = vmatpush.bf16.msra.mxu0 %v4305
    %4377 = vmatmul.bf16.gmra.mxu0 %v4105
    %v4378 = vpop.f32.mrf.mxu0
    %v4379 = vadd.f32 %v4175, %v4378
    %v4380 = vpop.f32.mrf.mxu0
    %4381 = vdwg.mxu0
    %4382 = vmatpush.bf16.msra.mxu0 %v4320
    %4383 = vmatpush.bf16.msra.mxu0 %v4319
    %4384 = vmatpush.bf16.msra.mxu0 %v4318
    %4385 = vmatpush.bf16.msra.mxu0 %v4317
    %4386 = vmatpush.bf16.msra.mxu0 %v4316
    %4387 = vmatpush.bf16.msra.mxu0 %v4315
    %4388 = vmatpush.bf16.msra.mxu0 %v4314
    %4389 = vmatpush.bf16.msra.mxu0 %v4313
    %4390 = vmatmul.bf16.gmra.mxu0 %v4106
    %v4391 = vpop.f32.mrf.mxu0
    %v4392 = vadd.f32 %v4379, %v4391
    %v4393 = vpop.f32.mrf.mxu0
    %4394 = vdwg.mxu0
    %4395 = vmatpush.bf16.msra.mxu0 %v4328
    %4396 = vmatpush.bf16.msra.mxu0 %v4327
    %4397 = vmatpush.bf16.msra.mxu0 %v4326
    %4398 = vmatpush.bf16.msra.mxu0 %v4325
    %4399 = vmatpush.bf16.msra.mxu0 %v4324
    %4400 = vmatpush.bf16.msra.mxu0 %v4323
    %4401 = vmatpush.bf16.msra.mxu0 %v4322
    %4402 = vmatpush.bf16.msra.mxu0 %v4321
    %4403 = vmatmul.bf16.gmra.mxu0 %v4107
    %v4404 = vpop.f32.mrf.mxu0
    %v4405 = vadd.f32 %v4392, %v4404
    %v4406 = vpop.f32.mrf.mxu0
    %4407 = vdwg.mxu0
    %4408 = vmatpush.bf16.msra.mxu0 %v4336
    %4409 = vmatpush.bf16.msra.mxu0 %v4335
    %4410 = vmatpush.bf16.msra.mxu0 %v4334
    %4411 = vmatpush.bf16.msra.mxu0 %v4333
    %4412 = vmatpush.bf16.msra.mxu0 %v4332
    %4413 = vmatpush.bf16.msra.mxu0 %v4331
    %4414 = vmatpush.bf16.msra.mxu0 %v4330
    %4415 = vmatpush.bf16.msra.mxu0 %v4329
    %4416 = vmatmul.bf16.gmra.mxu0 %v4108
    %v4417 = vpop.f32.mrf.mxu0
    %v4418 = vadd.f32 %v4405, %v4417
    %v4419 = vpop.f32.mrf.mxu0
    %4420 = vdwg.mxu0
    %vm4421 = vcmask 39936
    %4422 = vst.msk [vmem:[#allocation5] sm:$0xff] %vm4421, %v4418
    // Predicated region
    $region38: #{tpu_custom_call.1} parent=1 // pred_check
      _
    $region39: #{tpu_custom_call.1} parent=1 // pred_check_branch
      %4424 = sbr.rel (0) target = $region41
    $region40: #{tpu_custom_call.1} parent=1 // pred_region
      %4426 = vsyncadd [#allocation4], 0
      %s4428 = sshll.u32 [#allocation5], 4
      %s4429 = int_to_ptr.vmem [resolvable:$true] %s4428
      %s4430 = sshll.u32 %s8, 4
      %s4431 = int_to_ptr.hbm [resolvable:$true] %s4430
      %4433 = dma.vmem_to_hbm [thread:$0]  %s4429, 128, %s4431, [#allocation4]
    $region41: #{tpu_custom_call.1} parent=1 // pred_fallthru
      _
    // Predicated region
    $region42: #{tpu_custom_call.1} parent=1 // pred_check
      _
    $region43: #{tpu_custom_call.1} parent=1 // pred_check_branch
      %4435 = sbr.rel (0) target = $region45
    $region44: #{tpu_custom_call.1} parent=1 // pred_region
      %4437 = dma.done [#allocation4], 128
    $region45: #{tpu_custom_call.1} parent=1 // pred_fallthru
      _
    %4438 = vsyncpa [#allocation3], 1
    %4439 = vsyncpa [#allocation4], 1

</llo_original>
